<compile_context>
chip_gen: v7x
topology: tpu7x:2x2x1
jax: 0.10.0
libtpu: 0.0.40
codegen_flags: <defaults>
</compile_context>

<pallas_src>
import functools
import math

import jax
import jax.numpy as jnp
from jax.experimental import pallas as pl
from jax.experimental.pallas import tpu as pltpu


_LN_EPS = 1e-5      # PyTorch nn.LayerNorm default
_NEG = -1e30        # finite "-inf" so max/exp never see inf-inf -> NaN


# ----------------------------------------------------------------------------
# Generation-aware VMEM budget / tile candidates
# ----------------------------------------------------------------------------
def _device_budget():
    vmem_cap = None
    try:
        vmem_cap = getattr(pltpu.get_tpu_info(), "vmem_capacity_bytes", None)
    except Exception:
        vmem_cap = None          # unknown -> conservative (v7x-safe) defaults
    if vmem_cap is not None and vmem_cap >= 100 * 1024 * 1024:
        # v5e / v6e: 128 MiB VMEM, single TensorCore -> big tiles.
        return (96 * 1024 * 1024,
                (1024, 512, 384, 256, 128, 64, 32, 16, 8),   # row tiles
                (1024, 512, 384, 256, 128),                   # lane (N) tiles
                (1024, 512, 256, 128))                        # lane (K) tiles
    # v7x: 64 MiB VMEM per TensorCore.
    return (48 * 1024 * 1024,
            (512, 384, 256, 128, 64, 32, 16, 8),
            (512, 384, 256, 128),
            (512, 256, 128))


_VMEM_LIMIT, _ROW_CAND, _TN_CAND, _TK_CAND = _device_budget()


def _cparams(*sem):
    return pltpu.CompilerParams(dimension_semantics=sem,
                                vmem_limit_bytes=_VMEM_LIMIT)


def _pick_tile(n, candidates):
    for t in candidates:
        if t <= n and n % t == 0:
            return t
    return n  # fallback: full (possibly unaligned) dimension


# ----------------------------------------------------------------------------
# Linear (tiled matmul, f32 VMEM accumulator, bf16 MXU inputs)
# ----------------------------------------------------------------------------
def _linear_kernel(x_ref, w_ref, b_ref, o_ref, acc_ref, *, activation):
    @pl.when(pl.program_id(2) == 0)
    def _():
        acc_ref[...] = jnp.zeros_like(acc_ref)

    acc_ref[...] += jnp.dot(x_ref[...], w_ref[...],
                            preferred_element_type=jnp.float32)

    @pl.when(pl.program_id(2) == pl.num_programs(2) - 1)
    def _():
        y = acc_ref[...] + b_ref[...]
        if activation == "relu":
            y = jnp.maximum(y, 0.0)
        o_ref[...] = y.astype(o_ref.dtype)


def pallas_linear(x, w, b, activation=None, out_dtype=None):
    M, K = x.shape
    Kw, N = w.shape
    assert K == Kw
    out_dtype = out_dtype or x.dtype
    if x.dtype != w.dtype:                 # no-op in this model: x is bf16
        x = x.astype(w.dtype)

    tm = _pick_tile(M, _ROW_CAND)
    tn = _pick_tile(N, _TN_CAND)
    tk = _pick_tile(K, _TK_CAND)
    grid = (M // tm, N // tn, K // tk)

    return pl.pallas_call(
        functools.partial(_linear_kernel, activation=activation),
        out_shape=jax.ShapeDtypeStruct((M, N), out_dtype),
        grid=grid,
        in_specs=[
            pl.BlockSpec((tm, tk), lambda i, j, k: (i, k)),
            pl.BlockSpec((tk, tn), lambda i, j, k: (k, j)),
            pl.BlockSpec((1, tn), lambda i, j, k: (0, j)),
        ],
        out_specs=pl.BlockSpec((tm, tn), lambda i, j, k: (i, j)),
        scratch_shapes=[pltpu.VMEM((tm, tn), jnp.float32)],
        compiler_params=_cparams("parallel", "parallel", "arbitrary"),
    )(x, w, b.reshape(1, N))


# ----------------------------------------------------------------------------
# Flash-style multi-head attention (online softmax, masked-tile skipping)
# ----------------------------------------------------------------------------
def _flash_attn_kernel(flags_ref, q_ref, kv_ref, mask_ref, o_ref,
                       m_scr, l_scr, acc_scr,
                       *, num_heads, d_model, scale, nq, nk):
    # grid = (batch, q-tile, kv-tile); the kv axis is the reduction axis.
    b, qi, ki = pl.program_id(0), pl.program_id(1), pl.program_id(2)
    dh = d_model // num_heads

    @pl.when(ki == 0)
    def _():
        m_scr[...] = jnp.full_like(m_scr, _NEG)
        l_scr[...] = jnp.zeros_like(l_scr)
        acc_scr[...] = jnp.zeros_like(acc_scr)

    # Per-(batch, q-tile, kv-tile) activity flag (scalar-prefetched into SMEM)
    # -> skip every FLOP for fully-masked tiles (causal upper triangle).
    tile_live = flags_ref[b * (nq * nk) + qi * nk + ki]

    @pl.when(tile_live != 0)
    def _():
        # Fold 1/sqrt(dh) into q once per tile (O(tq*D), not O(H*tq*tk)).
        q_all = (q_ref[0].astype(jnp.float32) * scale).astype(jnp.bfloat16)
        kv = kv_ref[0]                      # (tk, 2*D) bf16: [K lanes | V lanes]
        keep = mask_ref[0] != 0             # (tq, tk) bool, True = attend
        for h in range(num_heads):
            q = q_all[:, h * dh:(h + 1) * dh]
            k = kv[:, h * dh:(h + 1) * dh]
            v = kv[:, d_model + h * dh:d_model + (h + 1) * dh]
            s = jax.lax.dot_general(q, k, (((1,), (1,)), ((), ())),
                                    preferred_element_type=jnp.float32)
            s = jnp.where(keep, s, _NEG)
            m_prev = m_scr[h]                                    # (tq, 1)
            m_new = jnp.maximum(m_prev, jnp.max(s, axis=-1, keepdims=True))
            alpha = jnp.exp(m_prev - m_new)
            p = jnp.exp(s - m_new)                               # unnormalized
            l_scr[h] = alpha * l_scr[h] + jnp.sum(p, axis=-1, keepdims=True)
            acc_scr[h] = alpha * acc_scr[h] + jnp.dot(
                p.astype(v.dtype), v, preferred_element_type=jnp.float32)
            m_scr[h] = m_new

    @pl.when(ki == pl.num_programs(2) - 1)
    def _():
        # Normalize AFTER the PV matmul: one exact reciprocal per (tq,1) head
        # column; single lane-dense (tq, D) store.
        outs = []
        for h in range(num_heads):
            inv = pl.reciprocal(l_scr[h], approx=False)
            outs.append(acc_scr[h] * inv)
        o_ref[0] = jnp.concatenate(outs, axis=-1).astype(o_ref.dtype)


def pallas_attention(q, kv, mask_i8, flags, num_heads, d_model, tq, tk):
    """q: (B,Sq,D) bf16, kv: (B,Skv,2D) bf16 ([K|V] lanes), mask_i8: (B,Sq,Skv)."""
    B, Sq, Dq = q.shape
    _, Skv, Dkv = kv.shape
    assert d_model % num_heads == 0
    dh = d_model // num_heads
    nq, nk = Sq // tq, Skv // tk
    scale = 1.0 / math.sqrt(dh)

    kernel = functools.partial(_flash_attn_kernel, num_heads=num_heads,
                               d_model=d_model, scale=scale, nq=nq, nk=nk)
    return pl.pallas_call(
        kernel,
        out_shape=jax.ShapeDtypeStruct((B, Sq, d_model), q.dtype),
        grid_spec=pltpu.PrefetchScalarGridSpec(
            num_scalar_prefetch=1,
            grid=(B, nq, nk),
            in_specs=[
                pl.BlockSpec((1, tq, Dq), lambda b, i, j, f: (b, i, 0)),
                pl.BlockSpec((1, tk, Dkv), lambda b, i, j, f: (b, j, 0)),
                pl.BlockSpec((1, tq, tk), lambda b, i, j, f: (b, i, j)),
            ],
            out_specs=pl.BlockSpec((1, tq, d_model),
                                   lambda b, i, j, f: (b, i, 0)),
            scratch_shapes=[
                pltpu.VMEM((num_heads, tq, 1), jnp.float32),   # running max
                pltpu.VMEM((num_heads, tq, 1), jnp.float32),   # running denom
                pltpu.VMEM((num_heads, tq, dh), jnp.float32),  # running PV acc
            ]),
        compiler_params=_cparams("parallel", "parallel", "arbitrary"),
    )(flags, q, kv, mask_i8)


def _prep_mask(mask_bool, tq, tk):
    """(B,Sq,Sk) bool -> (int8 mask, flattened int32 per-tile activity flags)."""
    B, Sq, Sk = mask_bool.shape
    nq, nk = Sq // tq, Sk // tk
    tiles = mask_bool.reshape(B, nq, tq, nk, tk)
    flags = jnp.any(tiles, axis=(2, 4)).astype(jnp.int32).reshape(-1)
    return mask_bool.astype(jnp.int8), flags


# ----------------------------------------------------------------------------
# LayerNorm kernels (residual-add fused; dual f32 + bf16 outputs)
# ----------------------------------------------------------------------------
def _add_layernorm_kernel(x_ref, y_ref, g_ref, b_ref, o32_ref, o16_ref, *, eps):
    x = x_ref[...].astype(jnp.float32) + y_ref[...].astype(jnp.float32)
    mean = jnp.mean(x, axis=-1, keepdims=True)
    var = jnp.mean((x - mean) ** 2, axis=-1, keepdims=True)
    y = (x - mean) * jax.lax.rsqrt(var + eps) * g_ref[...] + b_ref[...]
    o32_ref[...] = y                              # f32 residual stream
    o16_ref[...] = y.astype(jnp.bfloat16)         # bf16 activation stream


def _layernorm_kernel(x_ref, g_ref, b_ref, o_ref, *, eps):
    x = x_ref[...].astype(jnp.float32)
    mean = jnp.mean(x, axis=-1, keepdims=True)
    var = jnp.mean((x - mean) ** 2, axis=-1, keepdims=True)
    o_ref[...] = ((x - mean) * jax.lax.rsqrt(var + eps) * g_ref[...]
                  + b_ref[...]).astype(o_ref.dtype)


def pallas_add_layernorm(x2d, y2d, gamma, beta, eps=_LN_EPS):
    M, D = x2d.shape
    tm = _pick_tile(M, _ROW_CAND)
    return pl.pallas_call(
        functools.partial(_add_layernorm_kernel, eps=eps),
        out_shape=(jax.ShapeDtypeStruct((M, D), jnp.float32),
                   jax.ShapeDtypeStruct((M, D), jnp.bfloat16)),
        grid=(M // tm,),
        in_specs=[
            pl.BlockSpec((tm, D), lambda i: (i, 0)),
            pl.BlockSpec((tm, D), lambda i: (i, 0)),
            pl.BlockSpec((1, D), lambda i: (0, 0)),
            pl.BlockSpec((1, D), lambda i: (0, 0)),
        ],
        out_specs=(pl.BlockSpec((tm, D), lambda i: (i, 0)),
                   pl.BlockSpec((tm, D), lambda i: (i, 0))),
        compiler_params=_cparams("parallel"),
    )(x2d, y2d, gamma.reshape(1, D), beta.reshape(1, D))


def pallas_layernorm(x2d, gamma, beta, eps=_LN_EPS):
    M, D = x2d.shape
    tm = _pick_tile(M, _ROW_CAND)
    return pl.pallas_call(
        functools.partial(_layernorm_kernel, eps=eps),
        out_shape=jax.ShapeDtypeStruct((M, D), jnp.float32),
        grid=(M // tm,),
        in_specs=[
            pl.BlockSpec((tm, D), lambda i: (i, 0)),
            pl.BlockSpec((1, D), lambda i: (0, 0)),
            pl.BlockSpec((1, D), lambda i: (0, 0)),
        ],
        out_specs=pl.BlockSpec((tm, D), lambda i: (i, 0)),
        compiler_params=_cparams("parallel"),
    )(x2d, gamma.reshape(1, D), beta.reshape(1, D))


# ----------------------------------------------------------------------------
# Decoder built on the kernels
# ----------------------------------------------------------------------------
def decoder_layer(x_f32, x_bf16, mem_bf16, tgt_mask, tgt_flags,
                  src_mask, src_flags, p, num_heads,
                  B, S, Sk, tq, tk_tgt, tk_src):
    D = x_f32.shape[-1]

    # masked self-attention (+ residual + LN)
    q = pallas_linear(x_bf16, p["wq_self"], p["bq_self"], out_dtype=jnp.bfloat16)
    kv = pallas_linear(x_bf16, p["wkv_self"], p["bkv_self"],
                       out_dtype=jnp.bfloat16)
    a = pallas_attention(q.reshape(B, S, D), kv.reshape(B, S, 2 * D),
                         tgt_mask, tgt_flags, num_heads, D, tq, tk_tgt)
    a = pallas_linear(a.reshape(B * S, D), p["wo_self"], p["bo_self"],
                      out_dtype=jnp.float32)
    x_f32, x_bf16 = pallas_add_layernorm(x_f32, a, p["ln1_g"], p["ln1_b"])

    # cross-attention over encoder memory (+ residual + LN)
    q = pallas_linear(x_bf16, p["wq_cross"], p["bq_cross"], out_dtype=jnp.bfloat16)
    kv = pallas_linear(mem_bf16, p["wkv_cross"], p["bkv_cross"],
                       out_dtype=jnp.bfloat16)
    a = pallas_attention(q.reshape(B, S, D), kv.reshape(B, Sk, 2 * D),
                         src_mask, src_flags, num_heads, D, tq, tk_src)
    a = pallas_linear(a.reshape(B * S, D), p["wo_cross"], p["bo_cross"],
                      out_dtype=jnp.float32)
    x_f32, x_bf16 = pallas_add_layernorm(x_f32, a, p["ln2_g"], p["ln2_b"])

    # position-wise feed-forward (+ residual + LN)
    h = pallas_linear(x_bf16, p["w1"], p["b1"], activation="relu",
                      out_dtype=jnp.bfloat16)
    h = pallas_linear(h, p["w2"], p["b2"], out_dtype=jnp.float32)
    x_f32, x_bf16 = pallas_add_layernorm(x_f32, h, p["ln3_g"], p["ln3_b"])
    return x_f32, x_bf16


def decoder_forward(X, source_emb, source_mask, target_mask, params, num_heads):
    B, S, D = X.shape
    Sk = source_emb.shape[1]

    # Attention tiles: q rows sublane-aligned, kv cols 128-aligned or full.
    tq = _pick_tile(S, (256, 128, 64, 32, 16, 8))
    tk_tgt = _pick_tile(S, (512, 256, 128))
    tk_src = _pick_tile(Sk, (512, 256, 128))

    # Masks are identical for every layer: build the compact int8 masks and
    # per-tile activity flags ONCE (True = attend).
    tgt_mask, tgt_flags = _prep_mask(
        jnp.broadcast_to(target_mask[:, 0], (B, S, S)), tq, tk_tgt)
    src_mask, src_flags = _prep_mask(
        jnp.broadcast_to(source_mask[:, 0], (B, S, Sk)), tq, tk_src)

    x_f32 = X.reshape(B * S, D)
    x_bf16 = x_f32.astype(jnp.bfloat16)   # one-time cast; linears eat bf16
    mem_bf16 = source_emb.reshape(B * Sk, D).astype(jnp.bfloat16)

    for layer_p in params["layers"]:
        x_f32, x_bf16 = decoder_layer(x_f32, x_bf16, mem_bf16,
                                      tgt_mask, tgt_flags, src_mask, src_flags,
                                      layer_p, num_heads, B, S, Sk,
                                      tq, tk_tgt, tk_src)

    out = pallas_layernorm(x_f32, params["final_ln_g"], params["final_ln_b"])
    return out.reshape(B, S, D)


# ----------------------------------------------------------------------------
# Deterministic parameter construction (matmul weights bf16, rest f32)
# ----------------------------------------------------------------------------
def init_params(key, num_layers, d_model, d_ff):
    wdt = jnp.bfloat16

    def dense(k, din, dout):
        w = (0.02 * jax.random.normal(k, (din, dout), jnp.float32)).astype(wdt)
        return w, jnp.zeros((dout,), jnp.float32)

    layers = []
    for lk in jax.random.split(key, num_layers):
        ks = jax.random.split(lk, 8)
        wq_s, bq_s = dense(ks[0], d_model, d_model)
        wkv_s, bkv_s = dense(ks[1], d_model, 2 * d_model)
        wo_s, bo_s = dense(ks[2], d_model, d_model)
        wq_c, bq_c = dense(ks[3], d_model, d_model)
        wkv_c, bkv_c = dense(ks[4], d_model, 2 * d_model)
        wo_c, bo_c = dense(ks[5], d_model, d_model)
        w1, b1 = dense(ks[6], d_model, d_ff)
        w2, b2 = dense(ks[7], d_ff, d_model)
        ones = jnp.ones((d_model,), jnp.float32)
        zeros = jnp.zeros((d_model,), jnp.float32)
        layers.append(dict(
            wq_self=wq_s, bq_self=bq_s, wkv_self=wkv_s, bkv_self=bkv_s,
            wo_self=wo_s, bo_self=bo_s,
            wq_cross=wq_c, bq_cross=bq_c, wkv_cross=wkv_c, bkv_cross=bkv_c,
            wo_cross=wo_c, bo_cross=bo_c,
            w1=w1, b1=b1, w2=w2, b2=b2,
            ln1_g=ones, ln1_b=zeros, ln2_g=ones, ln2_b=zeros,
            ln3_g=ones, ln3_b=zeros))
    return dict(layers=layers,
                final_ln_g=jnp.ones((d_model,), jnp.float32),
                final_ln_b=jnp.zeros((d_model,), jnp.float32))


# ----------------------------------------------------------------------------
if __name__ == "__main__":
    B, S_TGT, S_SRC, D_MODEL, N_HEADS, D_FF = 2, 8, 8, 32, 4, 64
    N_LAYERS = 2  # Decoder(layer, N=...) ; small N for the example

    key = jax.random.PRNGKey(0)
    kx, km, kp = jax.random.split(key, 3)

    X = jax.random.normal(kx, (B, S_TGT, D_MODEL), jnp.float32)           # target embeddings
    source_emb = jax.random.normal(km, (B, S_SRC, D_MODEL), jnp.float32)  # encoder memory

    # source_mask: (B,1,1,S_src) all-visible; target_mask: causal (B,1,S_tgt,S_tgt)
    source_mask = jnp.ones((B, 1, 1, S_SRC), dtype=bool)
    target_mask = jnp.tril(jnp.ones((S_TGT, S_TGT), dtype=bool))[None, None]
    target_mask = jnp.broadcast_to(target_mask, (B, 1, S_TGT, S_TGT))

    params = init_params(kp, N_LAYERS, D_MODEL, D_FF)

    fwd = jax.jit(functools.partial(decoder_forward, num_heads=N_HEADS))
    out = jax.block_until_ready(
        fwd(X, source_emb, source_mask, target_mask, params))

    assert out.shape == (B, S_TGT, D_MODEL)
    assert bool(jnp.all(jnp.isfinite(out)))
    print("KERNEL_OK")
</pallas_src>

<mosaic_0001>
module attributes {stable_mosaic.version = 11 : i64} {
  func.func @_linear_kernel(%arg0: i32, %arg1: i32, %arg2: i32, %arg3: memref<16x32xbf16, #tpu.memory_space<vmem>>, %arg4: memref<32x64xbf16, #tpu.memory_space<vmem>>, %arg5: memref<1x64xf32, #tpu.memory_space<vmem>>, %arg6: memref<16x64xbf16, #tpu.memory_space<vmem>>, %arg7: memref<16x64xf32, #tpu.memory_space<vmem>>) attributes {dimension_semantics = [#tpu.dimension_semantics<parallel>, #tpu.dimension_semantics<parallel>, #tpu.dimension_semantics<arbitrary>], iteration_bounds = array<i64: 1, 1, 1>, scalar_prefetch = 0 : i64, scratch_operands = 1 : i64, tpu.core_type = #tpu.core_type<tc>, window_params = [{transform_indices = @transform_0, window_bounds = array<i64: 16, 32>}, {transform_indices = @transform_1, window_bounds = array<i64: 32, 64>}, {transform_indices = @transform_2, window_bounds = array<i64: 1, 64>}, {transform_indices = @transform_3, window_bounds = array<i64: 16, 64>}]} {
    %c0_i32 = arith.constant 0 : i32
    %0 = arith.cmpi eq, %arg2, %c0_i32 : i32
    %1 = arith.extui %0 : i1 to i32
    %c0_i32_0 = arith.constant 0 : i32
    %2 = arith.cmpi ne, %1, %c0_i32_0 : i32
    scf.if %2 {
      %cst_10 = arith.constant 0.000000e+00 : f32
      %12 = vector.broadcast %cst_10 : f32 to vector<16x64xf32>
      %c0_11 = arith.constant 0 : index
      %c0_12 = arith.constant 0 : index
      %13 = vector.load %arg7[%c0_11, %c0_12] : memref<16x64xf32, #tpu.memory_space<vmem>>, vector<16x64xf32>
      tpu.vector_store %arg7[%c0_11, %c0_12], %12 {strides = array<i32>} : memref<16x64xf32, #tpu.memory_space<vmem>>, vector<16x64xf32>,
    } else {
    }
    %c0 = arith.constant 0 : index
    %c0_1 = arith.constant 0 : index
    %3 = vector.load %arg7[%c0, %c0_1] : memref<16x64xf32, #tpu.memory_space<vmem>>, vector<16x64xf32>
    %c0_2 = arith.constant 0 : index
    %c0_3 = arith.constant 0 : index
    %4 = vector.load %arg3[%c0_2, %c0_3] : memref<16x32xbf16, #tpu.memory_space<vmem>>, vector<16x32xbf16>
    %c0_4 = arith.constant 0 : index
    %c0_5 = arith.constant 0 : index
    %5 = vector.load %arg4[%c0_4, %c0_5] : memref<32x64xbf16, #tpu.memory_space<vmem>>, vector<32x64xbf16>
    %cst = arith.constant dense<0.000000e+00> : vector<16x64xf32>
    %6 = tpu.matmul %4, %5, %cst {dimension_numbers = #tpu.dot_dimension_numbers<[1], [0], [0], [1], [0, 0, 1, 1], [], []>} : vector<16x32xbf16>, vector<32x64xbf16>, vector<16x64xf32> -> vector<16x64xf32>
    %7 = arith.addf %3, %6 : vector<16x64xf32>
    %c0_6 = arith.constant 0 : index
    %c0_7 = arith.constant 0 : index
    %8 = vector.load %arg7[%c0_6, %c0_7] : memref<16x64xf32, #tpu.memory_space<vmem>>, vector<16x64xf32>
    tpu.vector_store %arg7[%c0_6, %c0_7], %7 {strides = array<i32>} : memref<16x64xf32, #tpu.memory_space<vmem>>, vector<16x64xf32>,
    %c0_i32_8 = arith.constant 0 : i32
    %9 = arith.cmpi eq, %arg2, %c0_i32_8 : i32
    %10 = arith.extui %9 : i1 to i32
    %c0_i32_9 = arith.constant 0 : i32
    %11 = arith.cmpi ne, %10, %c0_i32_9 : i32
    scf.if %11 {
      %c0_10 = arith.constant 0 : index
      %c0_11 = arith.constant 0 : index
      %12 = vector.load %arg7[%c0_10, %c0_11] : memref<16x64xf32, #tpu.memory_space<vmem>>, vector<16x64xf32>
      %c0_12 = arith.constant 0 : index
      %c0_13 = arith.constant 0 : index
      %13 = vector.load %arg5[%c0_12, %c0_13] : memref<1x64xf32, #tpu.memory_space<vmem>>, vector<1x64xf32>
      %14 = vector.broadcast %13 : vector<1x64xf32> to vector<16x64xf32>
      %15 = arith.addf %12, %14 : vector<16x64xf32>
      %16 = arith.truncf %15 : vector<16x64xf32> to vector<16x64xbf16>
      %c0_14 = arith.constant 0 : index
      %c0_15 = arith.constant 0 : index
      %17 = vector.load %arg6[%c0_14, %c0_15] : memref<16x64xbf16, #tpu.memory_space<vmem>>, vector<16x64xbf16>
      tpu.vector_store %arg6[%c0_14, %c0_15], %16 {strides = array<i32>} : memref<16x64xbf16, #tpu.memory_space<vmem>>, vector<16x64xbf16>,
    } else {
    }
    return
  }
  func.func @transform_0(%arg0: i32, %arg1: i32, %arg2: i32) -> (i32, i32) {
    %c0_i32 = arith.constant 0 : i32
    return %arg0, %arg2 : i32, i32
  }
  func.func @transform_1(%arg0: i32, %arg1: i32, %arg2: i32) -> (i32, i32) {
    %c0_i32 = arith.constant 0 : i32
    return %arg2, %arg1 : i32, i32
  }
  func.func @transform_2(%arg0: i32, %arg1: i32, %arg2: i32) -> (i32, i32) {
    %c0_i32 = arith.constant 0 : i32
    %c0_i32_0 = arith.constant 0 : i32
    return %c0_i32, %arg1 : i32, i32
  }
  func.func @transform_3(%arg0: i32, %arg1: i32, %arg2: i32) -> (i32, i32) {
    %c0_i32 = arith.constant 0 : i32
    return %arg0, %arg1 : i32, i32
  }
}

module attributes {stable_mosaic.version = 11 : i64} {
  func.func @_flash_attn_kernel(%arg0: i32, %arg1: i32, %arg2: i32, %arg3: memref<2xi32, #tpu.memory_space<smem>>, %arg4: memref<1x8x32xbf16, #tpu.memory_space<vmem>>, %arg5: memref<1x8x64xbf16, #tpu.memory_space<vmem>>, %arg6: memref<1x8x8xi8, #tpu.memory_space<vmem>>, %arg7: memref<1x8x32xbf16, #tpu.memory_space<vmem>>, %arg8: memref<4x8x1xf32, #tpu.memory_space<vmem>>, %arg9: memref<4x8x1xf32, #tpu.memory_space<vmem>>, %arg10: memref<4x8x8xf32, #tpu.memory_space<vmem>>) attributes {dimension_semantics = [#tpu.dimension_semantics<parallel>, #tpu.dimension_semantics<parallel>, #tpu.dimension_semantics<arbitrary>], iteration_bounds = array<i64: 2, 1, 1>, scalar_prefetch = 1 : i64, scratch_operands = 3 : i64, tpu.core_type = #tpu.core_type<tc>, window_params = [{transform_indices = @transform_0, window_bounds = array<i64: 1, 8, 32>}, {transform_indices = @transform_1, window_bounds = array<i64: 1, 8, 64>}, {transform_indices = @transform_2, window_bounds = array<i64: 1, 8, 8>}, {transform_indices = @transform_3, window_bounds = array<i64: 1, 8, 32>}]} {
    %c0_i32 = arith.constant 0 : i32
    %0 = arith.cmpi eq, %arg2, %c0_i32 : i32
    %1 = arith.extui %0 : i1 to i32
    %c0_i32_0 = arith.constant 0 : i32
    %2 = arith.cmpi ne, %1, %c0_i32_0 : i32
    scf.if %2 {
      %cst = arith.constant -1.000000e+30 : f32
      %15 = vector.broadcast %cst : f32 to vector<4x8x1xf32>
      %c0 = arith.constant 0 : index
      %c0_6 = arith.constant 0 : index
      %c0_7 = arith.constant 0 : index
      %16 = vector.load %arg8[%c0, %c0_6, %c0_7] : memref<4x8x1xf32, #tpu.memory_space<vmem>>, vector<4x8x1xf32>
      tpu.vector_store %arg8[%c0, %c0_6, %c0_7], %15 {strides = array<i32>} : memref<4x8x1xf32, #tpu.memory_space<vmem>>, vector<4x8x1xf32>,
      %cst_8 = arith.constant 0.000000e+00 : f32
      %17 = vector.broadcast %cst_8 : f32 to vector<4x8x1xf32>
      %c0_9 = arith.constant 0 : index
      %c0_10 = arith.constant 0 : index
      %c0_11 = arith.constant 0 : index
      %18 = vector.load %arg9[%c0_9, %c0_10, %c0_11] : memref<4x8x1xf32, #tpu.memory_space<vmem>>, vector<4x8x1xf32>
      tpu.vector_store %arg9[%c0_9, %c0_10, %c0_11], %17 {strides = array<i32>} : memref<4x8x1xf32, #tpu.memory_space<vmem>>, vector<4x8x1xf32>,
      %cst_12 = arith.constant 0.000000e+00 : f32
      %19 = vector.broadcast %cst_12 : f32 to vector<4x8x8xf32>
      %c0_13 = arith.constant 0 : index
      %c0_14 = arith.constant 0 : index
      %c0_15 = arith.constant 0 : index
      %20 = vector.load %arg10[%c0_13, %c0_14, %c0_15] : memref<4x8x8xf32, #tpu.memory_space<vmem>>, vector<4x8x8xf32>
      tpu.vector_store %arg10[%c0_13, %c0_14, %c0_15], %19 {strides = array<i32>} : memref<4x8x8xf32, #tpu.memory_space<vmem>>, vector<4x8x8xf32>,
    } else {
    }
    %c1_i32 = arith.constant 1 : i32
    %3 = arith.muli %arg0, %c1_i32 : i32
    %c1_i32_1 = arith.constant 1 : i32
    %4 = arith.muli %arg1, %c1_i32_1 : i32
    %5 = arith.addi %3, %4 : i32
    %6 = arith.addi %5, %arg2 : i32
    %7 = arith.index_cast %6 : i32 to index
    %8 = memref.load %arg3[%7] : memref<2xi32, #tpu.memory_space<smem>>
    %c0_i32_2 = arith.constant 0 : i32
    %9 = arith.cmpi ne, %8, %c0_i32_2 : i32
    %10 = arith.extui %9 : i1 to i32
    %c0_i32_3 = arith.constant 0 : i32
    %11 = arith.cmpi ne, %10, %c0_i32_3 : i32
    scf.if %11 {
      %c0 = arith.constant 0 : index
      %c0_6 = arith.constant 0 : index
      %c0_7 = arith.constant 0 : index
      %15 = vector.load %arg4[%c0, %c0_6, %c0_7] : memref<1x8x32xbf16, #tpu.memory_space<vmem>>, vector<1x8x32xbf16>
      %16 = vector.shape_cast %15 : vector<1x8x32xbf16> to vector<8x32xbf16>
      %17 = arith.extf %16 : vector<8x32xbf16> to vector<8x32xf32>
      %cst = arith.constant 0.353553385 : f32
      %18 = vector.broadcast %cst : f32 to vector<8x32xf32>
      %19 = arith.mulf %17, %18 : vector<8x32xf32>
      %20 = arith.truncf %19 : vector<8x32xf32> to vector<8x32xbf16>
      %c0_8 = arith.constant 0 : index
      %c0_9 = arith.constant 0 : index
      %c0_10 = arith.constant 0 : index
      %21 = vector.load %arg5[%c0_8, %c0_9, %c0_10] : memref<1x8x64xbf16, #tpu.memory_space<vmem>>, vector<1x8x64xbf16>
      %22 = vector.shape_cast %21 : vector<1x8x64xbf16> to vector<8x64xbf16>
      %c0_11 = arith.constant 0 : index
      %c0_12 = arith.constant 0 : index
      %c0_13 = arith.constant 0 : index
      %23 = vector.load %arg6[%c0_11, %c0_12, %c0_13] : memref<1x8x8xi8, #tpu.memory_space<vmem>>, vector<1x8x8xi8>
      %24 = vector.shape_cast %23 : vector<1x8x8xi8> to vector<8x8xi8>
      %c0_i8 = arith.constant 0 : i8
      %25 = vector.broadcast %c0_i8 : i8 to vector<8x8xi8>
      %26 = arith.cmpi ne, %24, %25 : vector<8x8xi8>
      %27 = vector.extract_strided_slice %20 {offsets = [0, 0], sizes = [8, 8], strides = [1, 1]} : vector<8x32xbf16> to vector<8x8xbf16>
      %28 = vector.extract_strided_slice %22 {offsets = [0, 0], sizes = [8, 8], strides = [1, 1]} : vector<8x64xbf16> to vector<8x8xbf16>
      %29 = vector.extract_strided_slice %22 {offsets = [0, 32], sizes = [8, 8], strides = [1, 1]} : vector<8x64xbf16> to vector<8x8xbf16>
      %cst_14 = arith.constant dense<0.000000e+00> : vector<8x8xf32>
      %30 = tpu.matmul %27, %28, %cst_14 {dimension_numbers = #tpu.dot_dimension_numbers<[1], [1], [0], [0], [0, 0, 1, 0], [], []>} : vector<8x8xbf16>, vector<8x8xbf16>, vector<8x8xf32> -> vector<8x8xf32>
      %cst_15 = arith.constant -1.000000e+30 : f32
      %31 = vector.broadcast %cst_15 : f32 to vector<8x8xf32>
      %32 = arith.select %26, %30, %31 : vector<8x8xi1>, vector<8x8xf32>
      %c0_16 = arith.constant 0 : index
      %c0_17 = arith.constant 0 : index
      %c0_18 = arith.constant 0 : index
      %33 = vector.load %arg8[%c0_16, %c0_17, %c0_18] : memref<4x8x1xf32, #tpu.memory_space<vmem>>, vector<1x8x1xf32>
      %34 = vector.shape_cast %33 : vector<1x8x1xf32> to vector<8x1xf32>
      %cst_19 = arith.constant dense<0xFF800000> : vector<8xf32>
      %35 = vector.multi_reduction <maximumf>, %32, %cst_19 [1] : vector<8x8xf32> to vector<8xf32>
      %36 = vector.shape_cast %35 : vector<8xf32> to vector<8x1xf32>
      %37 = arith.maximumf %34, %36 : vector<8x1xf32>
      %38 = arith.subf %34, %37 : vector<8x1xf32>
      %39 = math.exp %38 : vector<8x1xf32>
      %40 = vector.broadcast %37 : vector<8x1xf32> to vector<8x8xf32>
      %41 = arith.subf %32, %40 : vector<8x8xf32>
      %42 = math.exp %41 : vector<8x8xf32>
      %c0_20 = arith.constant 0 : index
      %c0_21 = arith.constant 0 : index
      %c0_22 = arith.constant 0 : index
      %43 = vector.load %arg9[%c0_20, %c0_21, %c0_22] : memref<4x8x1xf32, #tpu.memory_space<vmem>>, vector<1x8x1xf32>
      %44 = vector.shape_cast %43 : vector<1x8x1xf32> to vector<8x1xf32>
      %45 = arith.mulf %39, %44 : vector<8x1xf32>
      %cst_23 = arith.constant dense<0.000000e+00> : vector<8xf32>
      %46 = vector.multi_reduction <add>, %42, %cst_23 [1] : vector<8x8xf32> to vector<8xf32>
      %47 = vector.shape_cast %46 : vector<8xf32> to vector<8x1xf32>
      %48 = arith.addf %45, %47 : vector<8x1xf32>
      %c0_24 = arith.constant 0 : index
      %c0_25 = arith.constant 0 : index
      %c0_26 = arith.constant 0 : index
      %49 = vector.load %arg9[%c0_24, %c0_25, %c0_26] : memref<4x8x1xf32, #tpu.memory_space<vmem>>, vector<1x8x1xf32>
      %50 = vector.shape_cast %49 : vector<1x8x1xf32> to vector<8x1xf32>
      %51 = vector.shape_cast %48 : vector<8x1xf32> to vector<1x8x1xf32>
      tpu.vector_store %arg9[%c0_24, %c0_25, %c0_26], %51 {strides = array<i32>} : memref<4x8x1xf32, #tpu.memory_space<vmem>>, vector<1x8x1xf32>,
      %c0_27 = arith.constant 0 : index
      %c0_28 = arith.constant 0 : index
      %c0_29 = arith.constant 0 : index
      %52 = vector.load %arg10[%c0_27, %c0_28, %c0_29] : memref<4x8x8xf32, #tpu.memory_space<vmem>>, vector<1x8x8xf32>
      %53 = vector.shape_cast %52 : vector<1x8x8xf32> to vector<8x8xf32>
      %54 = vector.broadcast %39 : vector<8x1xf32> to vector<8x8xf32>
      %55 = arith.mulf %54, %53 : vector<8x8xf32>
      %56 = arith.truncf %42 : vector<8x8xf32> to vector<8x8xbf16>
      %cst_30 = arith.constant dense<0.000000e+00> : vector<8x8xf32>
      %57 = tpu.matmul %56, %29, %cst_30 {dimension_numbers = #tpu.dot_dimension_numbers<[1], [0], [0], [1], [0, 0, 1, 1], [], []>} : vector<8x8xbf16>, vector<8x8xbf16>, vector<8x8xf32> -> vector<8x8xf32>
      %58 = arith.addf %55, %57 : vector<8x8xf32>
      %c0_31 = arith.constant 0 : index
      %c0_32 = arith.constant 0 : index
      %c0_33 = arith.constant 0 : index
      %59 = vector.load %arg10[%c0_31, %c0_32, %c0_33] : memref<4x8x8xf32, #tpu.memory_space<vmem>>, vector<1x8x8xf32>
      %60 = vector.shape_cast %59 : vector<1x8x8xf32> to vector<8x8xf32>
      %61 = vector.shape_cast %58 : vector<8x8xf32> to vector<1x8x8xf32>
      tpu.vector_store %arg10[%c0_31, %c0_32, %c0_33], %61 {strides = array<i32>} : memref<4x8x8xf32, #tpu.memory_space<vmem>>, vector<1x8x8xf32>,
      %c0_34 = arith.constant 0 : index
      %c0_35 = arith.constant 0 : index
      %c0_36 = arith.constant 0 : index
      %62 = vector.load %arg8[%c0_34, %c0_35, %c0_36] : memref<4x8x1xf32, #tpu.memory_space<vmem>>, vector<1x8x1xf32>
      %63 = vector.shape_cast %62 : vector<1x8x1xf32> to vector<8x1xf32>
      %64 = vector.shape_cast %37 : vector<8x1xf32> to vector<1x8x1xf32>
      tpu.vector_store %arg8[%c0_34, %c0_35, %c0_36], %64 {strides = array<i32>} : memref<4x8x1xf32, #tpu.memory_space<vmem>>, vector<1x8x1xf32>,
      %65 = vector.extract_strided_slice %20 {offsets = [0, 8], sizes = [8, 8], strides = [1, 1]} : vector<8x32xbf16> to vector<8x8xbf16>
      %66 = vector.extract_strided_slice %22 {offsets = [0, 8], sizes = [8, 8], strides = [1, 1]} : vector<8x64xbf16> to vector<8x8xbf16>
      %67 = vector.extract_strided_slice %22 {offsets = [0, 40], sizes = [8, 8], strides = [1, 1]} : vector<8x64xbf16> to vector<8x8xbf16>
      %cst_37 = arith.constant dense<0.000000e+00> : vector<8x8xf32>
      %68 = tpu.matmul %65, %66, %cst_37 {dimension_numbers = #tpu.dot_dimension_numbers<[1], [1], [0], [0], [0, 0, 1, 0], [], []>} : vector<8x8xbf16>, vector<8x8xbf16>, vector<8x8xf32> -> vector<8x8xf32>
      %cst_38 = arith.constant -1.000000e+30 : f32
      %69 = vector.broadcast %cst_38 : f32 to vector<8x8xf32>
      %70 = arith.select %26, %68, %69 : vector<8x8xi1>, vector<8x8xf32>
      %c1 = arith.constant 1 : index
      %c0_39 = arith.constant 0 : index
      %c0_40 = arith.constant 0 : index
      %71 = vector.load %arg8[%c1, %c0_39, %c0_40] : memref<4x8x1xf32, #tpu.memory_space<vmem>>, vector<1x8x1xf32>
      %72 = vector.shape_cast %71 : vector<1x8x1xf32> to vector<8x1xf32>
      %cst_41 = arith.constant dense<0xFF800000> : vector<8xf32>
      %73 = vector.multi_reduction <maximumf>, %70, %cst_41 [1] : vector<8x8xf32> to vector<8xf32>
      %74 = vector.shape_cast %73 : vector<8xf32> to vector<8x1xf32>
      %75 = arith.maximumf %72, %74 : vector<8x1xf32>
      %76 = arith.subf %72, %75 : vector<8x1xf32>
      %77 = math.exp %76 : vector<8x1xf32>
      %78 = vector.broadcast %75 : vector<8x1xf32> to vector<8x8xf32>
      %79 = arith.subf %70, %78 : vector<8x8xf32>
      %80 = math.exp %79 : vector<8x8xf32>
      %c1_42 = arith.constant 1 : index
      %c0_43 = arith.constant 0 : index
      %c0_44 = arith.constant 0 : index
      %81 = vector.load %arg9[%c1_42, %c0_43, %c0_44] : memref<4x8x1xf32, #tpu.memory_space<vmem>>, vector<1x8x1xf32>
      %82 = vector.shape_cast %81 : vector<1x8x1xf32> to vector<8x1xf32>
      %83 = arith.mulf %77, %82 : vector<8x1xf32>
      %cst_45 = arith.constant dense<0.000000e+00> : vector<8xf32>
      %84 = vector.multi_reduction <add>, %80, %cst_45 [1] : vector<8x8xf32> to vector<8xf32>
      %85 = vector.shape_cast %84 : vector<8xf32> to vector<8x1xf32>
      %86 = arith.addf %83, %85 : vector<8x1xf32>
      %c1_46 = arith.constant 1 : index
      %c0_47 = arith.constant 0 : index
      %c0_48 = arith.constant 0 : index
      %87 = vector.load %arg9[%c1_46, %c0_47, %c0_48] : memref<4x8x1xf32, #tpu.memory_space<vmem>>, vector<1x8x1xf32>
      %88 = vector.shape_cast %87 : vector<1x8x1xf32> to vector<8x1xf32>
      %89 = vector.shape_cast %86 : vector<8x1xf32> to vector<1x8x1xf32>
      tpu.vector_store %arg9[%c1_46, %c0_47, %c0_48], %89 {strides = array<i32>} : memref<4x8x1xf32, #tpu.memory_space<vmem>>, vector<1x8x1xf32>,
      %c1_49 = arith.constant 1 : index
      %c0_50 = arith.constant 0 : index
      %c0_51 = arith.constant 0 : index
      %90 = vector.load %arg10[%c1_49, %c0_50, %c0_51] : memref<4x8x8xf32, #tpu.memory_space<vmem>>, vector<1x8x8xf32>
      %91 = vector.shape_cast %90 : vector<1x8x8xf32> to vector<8x8xf32>
      %92 = vector.broadcast %77 : vector<8x1xf32> to vector<8x8xf32>
      %93 = arith.mulf %92, %91 : vector<8x8xf32>
      %94 = arith.truncf %80 : vector<8x8xf32> to vector<8x8xbf16>
      %cst_52 = arith.constant dense<0.000000e+00> : vector<8x8xf32>
      %95 = tpu.matmul %94, %67, %cst_52 {dimension_numbers = #tpu.dot_dimension_numbers<[1], [0], [0], [1], [0, 0, 1, 1], [], []>} : vector<8x8xbf16>, vector<8x8xbf16>, vector<8x8xf32> -> vector<8x8xf32>
      %96 = arith.addf %93, %95 : vector<8x8xf32>
      %c1_53 = arith.constant 1 : index
      %c0_54 = arith.constant 0 : index
      %c0_55 = arith.constant 0 : index
      %97 = vector.load %arg10[%c1_53, %c0_54, %c0_55] : memref<4x8x8xf32, #tpu.memory_space<vmem>>, vector<1x8x8xf32>
      %98 = vector.shape_cast %97 : vector<1x8x8xf32> to vector<8x8xf32>
      %99 = vector.shape_cast %96 : vector<8x8xf32> to vector<1x8x8xf32>
      tpu.vector_store %arg10[%c1_53, %c0_54, %c0_55], %99 {strides = array<i32>} : memref<4x8x8xf32, #tpu.memory_space<vmem>>, vector<1x8x8xf32>,
      %c1_56 = arith.constant 1 : index
      %c0_57 = arith.constant 0 : index
      %c0_58 = arith.constant 0 : index
      %100 = vector.load %arg8[%c1_56, %c0_57, %c0_58] : memref<4x8x1xf32, #tpu.memory_space<vmem>>, vector<1x8x1xf32>
      %101 = vector.shape_cast %100 : vector<1x8x1xf32> to vector<8x1xf32>
      %102 = vector.shape_cast %75 : vector<8x1xf32> to vector<1x8x1xf32>
      tpu.vector_store %arg8[%c1_56, %c0_57, %c0_58], %102 {strides = array<i32>} : memref<4x8x1xf32, #tpu.memory_space<vmem>>, vector<1x8x1xf32>,
      %103 = vector.extract_strided_slice %20 {offsets = [0, 16], sizes = [8, 8], strides = [1, 1]} : vector<8x32xbf16> to vector<8x8xbf16>
      %104 = vector.extract_strided_slice %22 {offsets = [0, 16], sizes = [8, 8], strides = [1, 1]} : vector<8x64xbf16> to vector<8x8xbf16>
      %105 = vector.extract_strided_slice %22 {offsets = [0, 48], sizes = [8, 8], strides = [1, 1]} : vector<8x64xbf16> to vector<8x8xbf16>
      %cst_59 = arith.constant dense<0.000000e+00> : vector<8x8xf32>
      %106 = tpu.matmul %103, %104, %cst_59 {dimension_numbers = #tpu.dot_dimension_numbers<[1], [1], [0], [0], [0, 0, 1, 0], [], []>} : vector<8x8xbf16>, vector<8x8xbf16>, vector<8x8xf32> -> vector<8x8xf32>
      %cst_60 = arith.constant -1.000000e+30 : f32
      %107 = vector.broadcast %cst_60 : f32 to vector<8x8xf32>
      %108 = arith.select %26, %106, %107 : vector<8x8xi1>, vector<8x8xf32>
      %c2 = arith.constant 2 : index
      %c0_61 = arith.constant 0 : index
      %c0_62 = arith.constant 0 : index
      %109 = vector.load %arg8[%c2, %c0_61, %c0_62] : memref<4x8x1xf32, #tpu.memory_space<vmem>>, vector<1x8x1xf32>
      %110 = vector.shape_cast %109 : vector<1x8x1xf32> to vector<8x1xf32>
      %cst_63 = arith.constant dense<0xFF800000> : vector<8xf32>
      %111 = vector.multi_reduction <maximumf>, %108, %cst_63 [1] : vector<8x8xf32> to vector<8xf32>
      %112 = vector.shape_cast %111 : vector<8xf32> to vector<8x1xf32>
      %113 = arith.maximumf %110, %112 : vector<8x1xf32>
      %114 = arith.subf %110, %113 : vector<8x1xf32>
      %115 = math.exp %114 : vector<8x1xf32>
      %116 = vector.broadcast %113 : vector<8x1xf32> to vector<8x8xf32>
      %117 = arith.subf %108, %116 : vector<8x8xf32>
      %118 = math.exp %117 : vector<8x8xf32>
      %c2_64 = arith.constant 2 : index
      %c0_65 = arith.constant 0 : index
      %c0_66 = arith.constant 0 : index
      %119 = vector.load %arg9[%c2_64, %c0_65, %c0_66] : memref<4x8x1xf32, #tpu.memory_space<vmem>>, vector<1x8x1xf32>
      %120 = vector.shape_cast %119 : vector<1x8x1xf32> to vector<8x1xf32>
      %121 = arith.mulf %115, %120 : vector<8x1xf32>
      %cst_67 = arith.constant dense<0.000000e+00> : vector<8xf32>
      %122 = vector.multi_reduction <add>, %118, %cst_67 [1] : vector<8x8xf32> to vector<8xf32>
      %123 = vector.shape_cast %122 : vector<8xf32> to vector<8x1xf32>
      %124 = arith.addf %121, %123 : vector<8x1xf32>
      %c2_68 = arith.constant 2 : index
      %c0_69 = arith.constant 0 : index
      %c0_70 = arith.constant 0 : index
      %125 = vector.load %arg9[%c2_68, %c0_69, %c0_70] : memref<4x8x1xf32, #tpu.memory_space<vmem>>, vector<1x8x1xf32>
      %126 = vector.shape_cast %125 : vector<1x8x1xf32> to vector<8x1xf32>
      %127 = vector.shape_cast %124 : vector<8x1xf32> to vector<1x8x1xf32>
      tpu.vector_store %arg9[%c2_68, %c0_69, %c0_70], %127 {strides = array<i32>} : memref<4x8x1xf32, #tpu.memory_space<vmem>>, vector<1x8x1xf32>,
      %c2_71 = arith.constant 2 : index
      %c0_72 = arith.constant 0 : index
      %c0_73 = arith.constant 0 : index
      %128 = vector.load %arg10[%c2_71, %c0_72, %c0_73] : memref<4x8x8xf32, #tpu.memory_space<vmem>>, vector<1x8x8xf32>
      %129 = vector.shape_cast %128 : vector<1x8x8xf32> to vector<8x8xf32>
      %130 = vector.broadcast %115 : vector<8x1xf32> to vector<8x8xf32>
      %131 = arith.mulf %130, %129 : vector<8x8xf32>
      %132 = arith.truncf %118 : vector<8x8xf32> to vector<8x8xbf16>
      %cst_74 = arith.constant dense<0.000000e+00> : vector<8x8xf32>
      %133 = tpu.matmul %132, %105, %cst_74 {dimension_numbers = #tpu.dot_dimension_numbers<[1], [0], [0], [1], [0, 0, 1, 1], [], []>} : vector<8x8xbf16>, vector<8x8xbf16>, vector<8x8xf32> -> vector<8x8xf32>
      %134 = arith.addf %131, %133 : vector<8x8xf32>
      %c2_75 = arith.constant 2 : index
      %c0_76 = arith.constant 0 : index
      %c0_77 = arith.constant 0 : index
      %135 = vector.load %arg10[%c2_75, %c0_76, %c0_77] : memref<4x8x8xf32, #tpu.memory_space<vmem>>, vector<1x8x8xf32>
      %136 = vector.shape_cast %135 : vector<1x8x8xf32> to vector<8x8xf32>
      %137 = vector.shape_cast %134 : vector<8x8xf32> to vector<1x8x8xf32>
      tpu.vector_store %arg10[%c2_75, %c0_76, %c0_77], %137 {strides = array<i32>} : memref<4x8x8xf32, #tpu.memory_space<vmem>>, vector<1x8x8xf32>,
      %c2_78 = arith.constant 2 : index
      %c0_79 = arith.constant 0 : index
      %c0_80 = arith.constant 0 : index
      %138 = vector.load %arg8[%c2_78, %c0_79, %c0_80] : memref<4x8x1xf32, #tpu.memory_space<vmem>>, vector<1x8x1xf32>
      %139 = vector.shape_cast %138 : vector<1x8x1xf32> to vector<8x1xf32>
      %140 = vector.shape_cast %113 : vector<8x1xf32> to vector<1x8x1xf32>
      tpu.vector_store %arg8[%c2_78, %c0_79, %c0_80], %140 {strides = array<i32>} : memref<4x8x1xf32, #tpu.memory_space<vmem>>, vector<1x8x1xf32>,
      %141 = vector.extract_strided_slice %20 {offsets = [0, 24], sizes = [8, 8], strides = [1, 1]} : vector<8x32xbf16> to vector<8x8xbf16>
      %142 = vector.extract_strided_slice %22 {offsets = [0, 24], sizes = [8, 8], strides = [1, 1]} : vector<8x64xbf16> to vector<8x8xbf16>
      %143 = vector.extract_strided_slice %22 {offsets = [0, 56], sizes = [8, 8], strides = [1, 1]} : vector<8x64xbf16> to vector<8x8xbf16>
      %cst_81 = arith.constant dense<0.000000e+00> : vector<8x8xf32>
      %144 = tpu.matmul %141, %142, %cst_81 {dimension_numbers = #tpu.dot_dimension_numbers<[1], [1], [0], [0], [0, 0, 1, 0], [], []>} : vector<8x8xbf16>, vector<8x8xbf16>, vector<8x8xf32> -> vector<8x8xf32>
      %cst_82 = arith.constant -1.000000e+30 : f32
      %145 = vector.broadcast %cst_82 : f32 to vector<8x8xf32>
      %146 = arith.select %26, %144, %145 : vector<8x8xi1>, vector<8x8xf32>
      %c3 = arith.constant 3 : index
      %c0_83 = arith.constant 0 : index
      %c0_84 = arith.constant 0 : index
      %147 = vector.load %arg8[%c3, %c0_83, %c0_84] : memref<4x8x1xf32, #tpu.memory_space<vmem>>, vector<1x8x1xf32>
      %148 = vector.shape_cast %147 : vector<1x8x1xf32> to vector<8x1xf32>
      %cst_85 = arith.constant dense<0xFF800000> : vector<8xf32>
      %149 = vector.multi_reduction <maximumf>, %146, %cst_85 [1] : vector<8x8xf32> to vector<8xf32>
      %150 = vector.shape_cast %149 : vector<8xf32> to vector<8x1xf32>
      %151 = arith.maximumf %148, %150 : vector<8x1xf32>
      %152 = arith.subf %148, %151 : vector<8x1xf32>
      %153 = math.exp %152 : vector<8x1xf32>
      %154 = vector.broadcast %151 : vector<8x1xf32> to vector<8x8xf32>
      %155 = arith.subf %146, %154 : vector<8x8xf32>
      %156 = math.exp %155 : vector<8x8xf32>
      %c3_86 = arith.constant 3 : index
      %c0_87 = arith.constant 0 : index
      %c0_88 = arith.constant 0 : index
      %157 = vector.load %arg9[%c3_86, %c0_87, %c0_88] : memref<4x8x1xf32, #tpu.memory_space<vmem>>, vector<1x8x1xf32>
      %158 = vector.shape_cast %157 : vector<1x8x1xf32> to vector<8x1xf32>
      %159 = arith.mulf %153, %158 : vector<8x1xf32>
      %cst_89 = arith.constant dense<0.000000e+00> : vector<8xf32>
      %160 = vector.multi_reduction <add>, %156, %cst_89 [1] : vector<8x8xf32> to vector<8xf32>
      %161 = vector.shape_cast %160 : vector<8xf32> to vector<8x1xf32>
      %162 = arith.addf %159, %161 : vector<8x1xf32>
      %c3_90 = arith.constant 3 : index
      %c0_91 = arith.constant 0 : index
      %c0_92 = arith.constant 0 : index
      %163 = vector.load %arg9[%c3_90, %c0_91, %c0_92] : memref<4x8x1xf32, #tpu.memory_space<vmem>>, vector<1x8x1xf32>
      %164 = vector.shape_cast %163 : vector<1x8x1xf32> to vector<8x1xf32>
      %165 = vector.shape_cast %162 : vector<8x1xf32> to vector<1x8x1xf32>
      tpu.vector_store %arg9[%c3_90, %c0_91, %c0_92], %165 {strides = array<i32>} : memref<4x8x1xf32, #tpu.memory_space<vmem>>, vector<1x8x1xf32>,
      %c3_93 = arith.constant 3 : index
      %c0_94 = arith.constant 0 : index
      %c0_95 = arith.constant 0 : index
      %166 = vector.load %arg10[%c3_93, %c0_94, %c0_95] : memref<4x8x8xf32, #tpu.memory_space<vmem>>, vector<1x8x8xf32>
      %167 = vector.shape_cast %166 : vector<1x8x8xf32> to vector<8x8xf32>
      %168 = vector.broadcast %153 : vector<8x1xf32> to vector<8x8xf32>
      %169 = arith.mulf %168, %167 : vector<8x8xf32>
      %170 = arith.truncf %156 : vector<8x8xf32> to vector<8x8xbf16>
      %cst_96 = arith.constant dense<0.000000e+00> : vector<8x8xf32>
      %171 = tpu.matmul %170, %143, %cst_96 {dimension_numbers = #tpu.dot_dimension_numbers<[1], [0], [0], [1], [0, 0, 1, 1], [], []>} : vector<8x8xbf16>, vector<8x8xbf16>, vector<8x8xf32> -> vector<8x8xf32>
      %172 = arith.addf %169, %171 : vector<8x8xf32>
      %c3_97 = arith.constant 3 : index
      %c0_98 = arith.constant 0 : index
      %c0_99 = arith.constant 0 : index
      %173 = vector.load %arg10[%c3_97, %c0_98, %c0_99] : memref<4x8x8xf32, #tpu.memory_space<vmem>>, vector<1x8x8xf32>
      %174 = vector.shape_cast %173 : vector<1x8x8xf32> to vector<8x8xf32>
      %175 = vector.shape_cast %172 : vector<8x8xf32> to vector<1x8x8xf32>
      tpu.vector_store %arg10[%c3_97, %c0_98, %c0_99], %175 {strides = array<i32>} : memref<4x8x8xf32, #tpu.memory_space<vmem>>, vector<1x8x8xf32>,
      %c3_100 = arith.constant 3 : index
      %c0_101 = arith.constant 0 : index
      %c0_102 = arith.constant 0 : index
      %176 = vector.load %arg8[%c3_100, %c0_101, %c0_102] : memref<4x8x1xf32, #tpu.memory_space<vmem>>, vector<1x8x1xf32>
      %177 = vector.shape_cast %176 : vector<1x8x1xf32> to vector<8x1xf32>
      %178 = vector.shape_cast %151 : vector<8x1xf32> to vector<1x8x1xf32>
      tpu.vector_store %arg8[%c3_100, %c0_101, %c0_102], %178 {strides = array<i32>} : memref<4x8x1xf32, #tpu.memory_space<vmem>>, vector<1x8x1xf32>,
    } else {
    }
    %c0_i32_4 = arith.constant 0 : i32
    %12 = arith.cmpi eq, %arg2, %c0_i32_4 : i32
    %13 = arith.extui %12 : i1 to i32
    %c0_i32_5 = arith.constant 0 : i32
    %14 = arith.cmpi ne, %13, %c0_i32_5 : i32
    scf.if %14 {
      %c0 = arith.constant 0 : index
      %c0_6 = arith.constant 0 : index
      %c0_7 = arith.constant 0 : index
      %15 = vector.load %arg9[%c0, %c0_6, %c0_7] : memref<4x8x1xf32, #tpu.memory_space<vmem>>, vector<1x8x1xf32>
      %16 = vector.shape_cast %15 : vector<1x8x1xf32> to vector<8x1xf32>
      %17 = tpu.reciprocal %16 : vector<8x1xf32> -> vector<8x1xf32>
      %c0_8 = arith.constant 0 : index
      %c0_9 = arith.constant 0 : index
      %c0_10 = arith.constant 0 : index
      %18 = vector.load %arg10[%c0_8, %c0_9, %c0_10] : memref<4x8x8xf32, #tpu.memory_space<vmem>>, vector<1x8x8xf32>
      %19 = vector.shape_cast %18 : vector<1x8x8xf32> to vector<8x8xf32>
      %20 = vector.broadcast %17 : vector<8x1xf32> to vector<8x8xf32>
      %21 = arith.mulf %19, %20 : vector<8x8xf32>
      %c1 = arith.constant 1 : index
      %c0_11 = arith.constant 0 : index
      %c0_12 = arith.constant 0 : index
      %22 = vector.load %arg9[%c1, %c0_11, %c0_12] : memref<4x8x1xf32, #tpu.memory_space<vmem>>, vector<1x8x1xf32>
      %23 = vector.shape_cast %22 : vector<1x8x1xf32> to vector<8x1xf32>
      %24 = tpu.reciprocal %23 : vector<8x1xf32> -> vector<8x1xf32>
      %c1_13 = arith.constant 1 : index
      %c0_14 = arith.constant 0 : index
      %c0_15 = arith.constant 0 : index
      %25 = vector.load %arg10[%c1_13, %c0_14, %c0_15] : memref<4x8x8xf32, #tpu.memory_space<vmem>>, vector<1x8x8xf32>
      %26 = vector.shape_cast %25 : vector<1x8x8xf32> to vector<8x8xf32>
      %27 = vector.broadcast %24 : vector<8x1xf32> to vector<8x8xf32>
      %28 = arith.mulf %26, %27 : vector<8x8xf32>
      %c2 = arith.constant 2 : index
      %c0_16 = arith.constant 0 : index
      %c0_17 = arith.constant 0 : index
      %29 = vector.load %arg9[%c2, %c0_16, %c0_17] : memref<4x8x1xf32, #tpu.memory_space<vmem>>, vector<1x8x1xf32>
      %30 = vector.shape_cast %29 : vector<1x8x1xf32> to vector<8x1xf32>
      %31 = tpu.reciprocal %30 : vector<8x1xf32> -> vector<8x1xf32>
      %c2_18 = arith.constant 2 : index
      %c0_19 = arith.constant 0 : index
      %c0_20 = arith.constant 0 : index
      %32 = vector.load %arg10[%c2_18, %c0_19, %c0_20] : memref<4x8x8xf32, #tpu.memory_space<vmem>>, vector<1x8x8xf32>
      %33 = vector.shape_cast %32 : vector<1x8x8xf32> to vector<8x8xf32>
      %34 = vector.broadcast %31 : vector<8x1xf32> to vector<8x8xf32>
      %35 = arith.mulf %33, %34 : vector<8x8xf32>
      %c3 = arith.constant 3 : index
      %c0_21 = arith.constant 0 : index
      %c0_22 = arith.constant 0 : index
      %36 = vector.load %arg9[%c3, %c0_21, %c0_22] : memref<4x8x1xf32, #tpu.memory_space<vmem>>, vector<1x8x1xf32>
      %37 = vector.shape_cast %36 : vector<1x8x1xf32> to vector<8x1xf32>
      %38 = tpu.reciprocal %37 : vector<8x1xf32> -> vector<8x1xf32>
      %c3_23 = arith.constant 3 : index
      %c0_24 = arith.constant 0 : index
      %c0_25 = arith.constant 0 : index
      %39 = vector.load %arg10[%c3_23, %c0_24, %c0_25] : memref<4x8x8xf32, #tpu.memory_space<vmem>>, vector<1x8x8xf32>
      %40 = vector.shape_cast %39 : vector<1x8x8xf32> to vector<8x8xf32>
      %41 = vector.broadcast %38 : vector<8x1xf32> to vector<8x8xf32>
      %42 = arith.mulf %40, %41 : vector<8x8xf32>
      %43 = tpu.concatenate %21, %28, %35, %42 in 1 : vector<8x8xf32>, vector<8x8xf32>, vector<8x8xf32>, vector<8x8xf32> -> vector<8x32xf32>
      %44 = arith.truncf %43 : vector<8x32xf32> to vector<8x32xbf16>
      %c0_26 = arith.constant 0 : index
      %c0_27 = arith.constant 0 : index
      %c0_28 = arith.constant 0 : index
      %45 = vector.load %arg7[%c0_26, %c0_27, %c0_28] : memref<1x8x32xbf16, #tpu.memory_space<vmem>>, vector<1x8x32xbf16>
      %46 = vector.shape_cast %45 : vector<1x8x32xbf16> to vector<8x32xbf16>
      %47 = vector.shape_cast %44 : vector<8x32xbf16> to vector<1x8x32xbf16>
      tpu.vector_store %arg7[%c0_26, %c0_27, %c0_28], %47 {strides = array<i32>} : memref<1x8x32xbf16, #tpu.memory_space<vmem>>, vector<1x8x32xbf16>,
    } else {
    }
    return
  }
  func.func @transform_0(%arg0: i32, %arg1: i32, %arg2: i32, %arg3: memref<2xi32, #tpu.memory_space<smem>>) -> (i32, i32, i32) {
    %c0_i32 = arith.constant 0 : i32
    %c0_i32_0 = arith.constant 0 : i32
    return %arg0, %arg1, %c0_i32 : i32, i32, i32
  }
  func.func @transform_1(%arg0: i32, %arg1: i32, %arg2: i32, %arg3: memref<2xi32, #tpu.memory_space<smem>>) -> (i32, i32, i32) {
    %c0_i32 = arith.constant 0 : i32
    %c0_i32_0 = arith.constant 0 : i32
    return %arg0, %arg2, %c0_i32 : i32, i32, i32
  }
  func.func @transform_2(%arg0: i32, %arg1: i32, %arg2: i32, %arg3: memref<2xi32, #tpu.memory_space<smem>>) -> (i32, i32, i32) {
    %c0_i32 = arith.constant 0 : i32
    return %arg0, %arg1, %arg2 : i32, i32, i32
  }
  func.func @transform_3(%arg0: i32, %arg1: i32, %arg2: i32, %arg3: memref<2xi32, #tpu.memory_space<smem>>) -> (i32, i32, i32) {
    %c0_i32 = arith.constant 0 : i32
    %c0_i32_0 = arith.constant 0 : i32
    return %arg0, %arg1, %c0_i32 : i32, i32, i32
  }
}

module attributes {stable_mosaic.version = 11 : i64} {
  func.func @_linear_kernel(%arg0: i32, %arg1: i32, %arg2: i32, %arg3: memref<16x32xbf16, #tpu.memory_space<vmem>>, %arg4: memref<32x32xbf16, #tpu.memory_space<vmem>>, %arg5: memref<1x32xf32, #tpu.memory_space<vmem>>, %arg6: memref<16x32xbf16, #tpu.memory_space<vmem>>, %arg7: memref<16x32xf32, #tpu.memory_space<vmem>>) attributes {dimension_semantics = [#tpu.dimension_semantics<parallel>, #tpu.dimension_semantics<parallel>, #tpu.dimension_semantics<arbitrary>], iteration_bounds = array<i64: 1, 1, 1>, scalar_prefetch = 0 : i64, scratch_operands = 1 : i64, tpu.core_type = #tpu.core_type<tc>, window_params = [{transform_indices = @transform_0, window_bounds = array<i64: 16, 32>}, {transform_indices = @transform_1, window_bounds = array<i64: 32, 32>}, {transform_indices = @transform_2, window_bounds = array<i64: 1, 32>}, {transform_indices = @transform_3, window_bounds = array<i64: 16, 32>}]} {
    %c0_i32 = arith.constant 0 : i32
    %0 = arith.cmpi eq, %arg2, %c0_i32 : i32
    %1 = arith.extui %0 : i1 to i32
    %c0_i32_0 = arith.constant 0 : i32
    %2 = arith.cmpi ne, %1, %c0_i32_0 : i32
    scf.if %2 {
      %cst_10 = arith.constant 0.000000e+00 : f32
      %12 = vector.broadcast %cst_10 : f32 to vector<16x32xf32>
      %c0_11 = arith.constant 0 : index
      %c0_12 = arith.constant 0 : index
      %13 = vector.load %arg7[%c0_11, %c0_12] : memref<16x32xf32, #tpu.memory_space<vmem>>, vector<16x32xf32>
      tpu.vector_store %arg7[%c0_11, %c0_12], %12 {strides = array<i32>} : memref<16x32xf32, #tpu.memory_space<vmem>>, vector<16x32xf32>,
    } else {
    }
    %c0 = arith.constant 0 : index
    %c0_1 = arith.constant 0 : index
    %3 = vector.load %arg7[%c0, %c0_1] : memref<16x32xf32, #tpu.memory_space<vmem>>, vector<16x32xf32>
    %c0_2 = arith.constant 0 : index
    %c0_3 = arith.constant 0 : index
    %4 = vector.load %arg3[%c0_2, %c0_3] : memref<16x32xbf16, #tpu.memory_space<vmem>>, vector<16x32xbf16>
    %c0_4 = arith.constant 0 : index
    %c0_5 = arith.constant 0 : index
    %5 = vector.load %arg4[%c0_4, %c0_5] : memref<32x32xbf16, #tpu.memory_space<vmem>>, vector<32x32xbf16>
    %cst = arith.constant dense<0.000000e+00> : vector<16x32xf32>
    %6 = tpu.matmul %4, %5, %cst {dimension_numbers = #tpu.dot_dimension_numbers<[1], [0], [0], [1], [0, 0, 1, 1], [], []>} : vector<16x32xbf16>, vector<32x32xbf16>, vector<16x32xf32> -> vector<16x32xf32>
    %7 = arith.addf %3, %6 : vector<16x32xf32>
    %c0_6 = arith.constant 0 : index
    %c0_7 = arith.constant 0 : index
    %8 = vector.load %arg7[%c0_6, %c0_7] : memref<16x32xf32, #tpu.memory_space<vmem>>, vector<16x32xf32>
    tpu.vector_store %arg7[%c0_6, %c0_7], %7 {strides = array<i32>} : memref<16x32xf32, #tpu.memory_space<vmem>>, vector<16x32xf32>,
    %c0_i32_8 = arith.constant 0 : i32
    %9 = arith.cmpi eq, %arg2, %c0_i32_8 : i32
    %10 = arith.extui %9 : i1 to i32
    %c0_i32_9 = arith.constant 0 : i32
    %11 = arith.cmpi ne, %10, %c0_i32_9 : i32
    scf.if %11 {
      %c0_10 = arith.constant 0 : index
      %c0_11 = arith.constant 0 : index
      %12 = vector.load %arg7[%c0_10, %c0_11] : memref<16x32xf32, #tpu.memory_space<vmem>>, vector<16x32xf32>
      %c0_12 = arith.constant 0 : index
      %c0_13 = arith.constant 0 : index
      %13 = vector.load %arg5[%c0_12, %c0_13] : memref<1x32xf32, #tpu.memory_space<vmem>>, vector<1x32xf32>
      %14 = vector.broadcast %13 : vector<1x32xf32> to vector<16x32xf32>
      %15 = arith.addf %12, %14 : vector<16x32xf32>
      %16 = arith.truncf %15 : vector<16x32xf32> to vector<16x32xbf16>
      %c0_14 = arith.constant 0 : index
      %c0_15 = arith.constant 0 : index
      %17 = vector.load %arg6[%c0_14, %c0_15] : memref<16x32xbf16, #tpu.memory_space<vmem>>, vector<16x32xbf16>
      tpu.vector_store %arg6[%c0_14, %c0_15], %16 {strides = array<i32>} : memref<16x32xbf16, #tpu.memory_space<vmem>>, vector<16x32xbf16>,
    } else {
    }
    return
  }
  func.func @transform_0(%arg0: i32, %arg1: i32, %arg2: i32) -> (i32, i32) {
    %c0_i32 = arith.constant 0 : i32
    return %arg0, %arg2 : i32, i32
  }
  func.func @transform_1(%arg0: i32, %arg1: i32, %arg2: i32) -> (i32, i32) {
    %c0_i32 = arith.constant 0 : i32
    return %arg2, %arg1 : i32, i32
  }
  func.func @transform_2(%arg0: i32, %arg1: i32, %arg2: i32) -> (i32, i32) {
    %c0_i32 = arith.constant 0 : i32
    %c0_i32_0 = arith.constant 0 : i32
    return %c0_i32, %arg1 : i32, i32
  }
  func.func @transform_3(%arg0: i32, %arg1: i32, %arg2: i32) -> (i32, i32) {
    %c0_i32 = arith.constant 0 : i32
    return %arg0, %arg1 : i32, i32
  }
}

module attributes {stable_mosaic.version = 11 : i64} {
  func.func @_linear_kernel(%arg0: i32, %arg1: i32, %arg2: i32, %arg3: memref<16x32xbf16, #tpu.memory_space<vmem>>, %arg4: memref<32x32xbf16, #tpu.memory_space<vmem>>, %arg5: memref<1x32xf32, #tpu.memory_space<vmem>>, %arg6: memref<16x32xf32, #tpu.memory_space<vmem>>, %arg7: memref<16x32xf32, #tpu.memory_space<vmem>>) attributes {dimension_semantics = [#tpu.dimension_semantics<parallel>, #tpu.dimension_semantics<parallel>, #tpu.dimension_semantics<arbitrary>], iteration_bounds = array<i64: 1, 1, 1>, scalar_prefetch = 0 : i64, scratch_operands = 1 : i64, tpu.core_type = #tpu.core_type<tc>, window_params = [{transform_indices = @transform_0, window_bounds = array<i64: 16, 32>}, {transform_indices = @transform_1, window_bounds = array<i64: 32, 32>}, {transform_indices = @transform_2, window_bounds = array<i64: 1, 32>}, {transform_indices = @transform_3, window_bounds = array<i64: 16, 32>}]} {
    %c0_i32 = arith.constant 0 : i32
    %0 = arith.cmpi eq, %arg2, %c0_i32 : i32
    %1 = arith.extui %0 : i1 to i32
    %c0_i32_0 = arith.constant 0 : i32
    %2 = arith.cmpi ne, %1, %c0_i32_0 : i32
    scf.if %2 {
      %cst_10 = arith.constant 0.000000e+00 : f32
      %12 = vector.broadcast %cst_10 : f32 to vector<16x32xf32>
      %c0_11 = arith.constant 0 : index
      %c0_12 = arith.constant 0 : index
      %13 = vector.load %arg7[%c0_11, %c0_12] : memref<16x32xf32, #tpu.memory_space<vmem>>, vector<16x32xf32>
      tpu.vector_store %arg7[%c0_11, %c0_12], %12 {strides = array<i32>} : memref<16x32xf32, #tpu.memory_space<vmem>>, vector<16x32xf32>,
    } else {
    }
    %c0 = arith.constant 0 : index
    %c0_1 = arith.constant 0 : index
    %3 = vector.load %arg7[%c0, %c0_1] : memref<16x32xf32, #tpu.memory_space<vmem>>, vector<16x32xf32>
    %c0_2 = arith.constant 0 : index
    %c0_3 = arith.constant 0 : index
    %4 = vector.load %arg3[%c0_2, %c0_3] : memref<16x32xbf16, #tpu.memory_space<vmem>>, vector<16x32xbf16>
    %c0_4 = arith.constant 0 : index
    %c0_5 = arith.constant 0 : index
    %5 = vector.load %arg4[%c0_4, %c0_5] : memref<32x32xbf16, #tpu.memory_space<vmem>>, vector<32x32xbf16>
    %cst = arith.constant dense<0.000000e+00> : vector<16x32xf32>
    %6 = tpu.matmul %4, %5, %cst {dimension_numbers = #tpu.dot_dimension_numbers<[1], [0], [0], [1], [0, 0, 1, 1], [], []>} : vector<16x32xbf16>, vector<32x32xbf16>, vector<16x32xf32> -> vector<16x32xf32>
    %7 = arith.addf %3, %6 : vector<16x32xf32>
    %c0_6 = arith.constant 0 : index
    %c0_7 = arith.constant 0 : index
    %8 = vector.load %arg7[%c0_6, %c0_7] : memref<16x32xf32, #tpu.memory_space<vmem>>, vector<16x32xf32>
    tpu.vector_store %arg7[%c0_6, %c0_7], %7 {strides = array<i32>} : memref<16x32xf32, #tpu.memory_space<vmem>>, vector<16x32xf32>,
    %c0_i32_8 = arith.constant 0 : i32
    %9 = arith.cmpi eq, %arg2, %c0_i32_8 : i32
    %10 = arith.extui %9 : i1 to i32
    %c0_i32_9 = arith.constant 0 : i32
    %11 = arith.cmpi ne, %10, %c0_i32_9 : i32
    scf.if %11 {
      %c0_10 = arith.constant 0 : index
      %c0_11 = arith.constant 0 : index
      %12 = vector.load %arg7[%c0_10, %c0_11] : memref<16x32xf32, #tpu.memory_space<vmem>>, vector<16x32xf32>
      %c0_12 = arith.constant 0 : index
      %c0_13 = arith.constant 0 : index
      %13 = vector.load %arg5[%c0_12, %c0_13] : memref<1x32xf32, #tpu.memory_space<vmem>>, vector<1x32xf32>
      %14 = vector.broadcast %13 : vector<1x32xf32> to vector<16x32xf32>
      %15 = arith.addf %12, %14 : vector<16x32xf32>
      %c0_14 = arith.constant 0 : index
      %c0_15 = arith.constant 0 : index
      %16 = vector.load %arg6[%c0_14, %c0_15] : memref<16x32xf32, #tpu.memory_space<vmem>>, vector<16x32xf32>
      tpu.vector_store %arg6[%c0_14, %c0_15], %15 {strides = array<i32>} : memref<16x32xf32, #tpu.memory_space<vmem>>, vector<16x32xf32>,
    } else {
    }
    return
  }
  func.func @transform_0(%arg0: i32, %arg1: i32, %arg2: i32) -> (i32, i32) {
    %c0_i32 = arith.constant 0 : i32
    return %arg0, %arg2 : i32, i32
  }
  func.func @transform_1(%arg0: i32, %arg1: i32, %arg2: i32) -> (i32, i32) {
    %c0_i32 = arith.constant 0 : i32
    return %arg2, %arg1 : i32, i32
  }
  func.func @transform_2(%arg0: i32, %arg1: i32, %arg2: i32) -> (i32, i32) {
    %c0_i32 = arith.constant 0 : i32
    %c0_i32_0 = arith.constant 0 : i32
    return %c0_i32, %arg1 : i32, i32
  }
  func.func @transform_3(%arg0: i32, %arg1: i32, %arg2: i32) -> (i32, i32) {
    %c0_i32 = arith.constant 0 : i32
    return %arg0, %arg1 : i32, i32
  }
}

module attributes {stable_mosaic.version = 11 : i64} {
  func.func @_linear_kernel(%arg0: i32, %arg1: i32, %arg2: i32, %arg3: memref<16x32xbf16, #tpu.memory_space<vmem>>, %arg4: memref<32x64xbf16, #tpu.memory_space<vmem>>, %arg5: memref<1x64xf32, #tpu.memory_space<vmem>>, %arg6: memref<16x64xbf16, #tpu.memory_space<vmem>>, %arg7: memref<16x64xf32, #tpu.memory_space<vmem>>) attributes {dimension_semantics = [#tpu.dimension_semantics<parallel>, #tpu.dimension_semantics<parallel>, #tpu.dimension_semantics<arbitrary>], iteration_bounds = array<i64: 1, 1, 1>, scalar_prefetch = 0 : i64, scratch_operands = 1 : i64, tpu.core_type = #tpu.core_type<tc>, window_params = [{transform_indices = @transform_0, window_bounds = array<i64: 16, 32>}, {transform_indices = @transform_1, window_bounds = array<i64: 32, 64>}, {transform_indices = @transform_2, window_bounds = array<i64: 1, 64>}, {transform_indices = @transform_3, window_bounds = array<i64: 16, 64>}]} {
    %c0_i32 = arith.constant 0 : i32
    %0 = arith.cmpi eq, %arg2, %c0_i32 : i32
    %1 = arith.extui %0 : i1 to i32
    %c0_i32_0 = arith.constant 0 : i32
    %2 = arith.cmpi ne, %1, %c0_i32_0 : i32
    scf.if %2 {
      %cst_10 = arith.constant 0.000000e+00 : f32
      %12 = vector.broadcast %cst_10 : f32 to vector<16x64xf32>
      %c0_11 = arith.constant 0 : index
      %c0_12 = arith.constant 0 : index
      %13 = vector.load %arg7[%c0_11, %c0_12] : memref<16x64xf32, #tpu.memory_space<vmem>>, vector<16x64xf32>
      tpu.vector_store %arg7[%c0_11, %c0_12], %12 {strides = array<i32>} : memref<16x64xf32, #tpu.memory_space<vmem>>, vector<16x64xf32>,
    } else {
    }
    %c0 = arith.constant 0 : index
    %c0_1 = arith.constant 0 : index
    %3 = vector.load %arg7[%c0, %c0_1] : memref<16x64xf32, #tpu.memory_space<vmem>>, vector<16x64xf32>
    %c0_2 = arith.constant 0 : index
    %c0_3 = arith.constant 0 : index
    %4 = vector.load %arg3[%c0_2, %c0_3] : memref<16x32xbf16, #tpu.memory_space<vmem>>, vector<16x32xbf16>
    %c0_4 = arith.constant 0 : index
    %c0_5 = arith.constant 0 : index
    %5 = vector.load %arg4[%c0_4, %c0_5] : memref<32x64xbf16, #tpu.memory_space<vmem>>, vector<32x64xbf16>
    %cst = arith.constant dense<0.000000e+00> : vector<16x64xf32>
    %6 = tpu.matmul %4, %5, %cst {dimension_numbers = #tpu.dot_dimension_numbers<[1], [0], [0], [1], [0, 0, 1, 1], [], []>} : vector<16x32xbf16>, vector<32x64xbf16>, vector<16x64xf32> -> vector<16x64xf32>
    %7 = arith.addf %3, %6 : vector<16x64xf32>
    %c0_6 = arith.constant 0 : index
    %c0_7 = arith.constant 0 : index
    %8 = vector.load %arg7[%c0_6, %c0_7] : memref<16x64xf32, #tpu.memory_space<vmem>>, vector<16x64xf32>
    tpu.vector_store %arg7[%c0_6, %c0_7], %7 {strides = array<i32>} : memref<16x64xf32, #tpu.memory_space<vmem>>, vector<16x64xf32>,
    %c0_i32_8 = arith.constant 0 : i32
    %9 = arith.cmpi eq, %arg2, %c0_i32_8 : i32
    %10 = arith.extui %9 : i1 to i32
    %c0_i32_9 = arith.constant 0 : i32
    %11 = arith.cmpi ne, %10, %c0_i32_9 : i32
    scf.if %11 {
      %c0_10 = arith.constant 0 : index
      %c0_11 = arith.constant 0 : index
      %12 = vector.load %arg7[%c0_10, %c0_11] : memref<16x64xf32, #tpu.memory_space<vmem>>, vector<16x64xf32>
      %c0_12 = arith.constant 0 : index
      %c0_13 = arith.constant 0 : index
      %13 = vector.load %arg5[%c0_12, %c0_13] : memref<1x64xf32, #tpu.memory_space<vmem>>, vector<1x64xf32>
      %14 = vector.broadcast %13 : vector<1x64xf32> to vector<16x64xf32>
      %15 = arith.addf %12, %14 : vector<16x64xf32>
      %cst_14 = arith.constant 0.000000e+00 : f32
      %16 = vector.broadcast %cst_14 : f32 to vector<16x64xf32>
      %17 = arith.maximumf %15, %16 : vector<16x64xf32>
      %18 = arith.truncf %17 : vector<16x64xf32> to vector<16x64xbf16>
      %c0_15 = arith.constant 0 : index
      %c0_16 = arith.constant 0 : index
      %19 = vector.load %arg6[%c0_15, %c0_16] : memref<16x64xbf16, #tpu.memory_space<vmem>>, vector<16x64xbf16>
      tpu.vector_store %arg6[%c0_15, %c0_16], %18 {strides = array<i32>} : memref<16x64xbf16, #tpu.memory_space<vmem>>, vector<16x64xbf16>,
    } else {
    }
    return
  }
  func.func @transform_0(%arg0: i32, %arg1: i32, %arg2: i32) -> (i32, i32) {
    %c0_i32 = arith.constant 0 : i32
    return %arg0, %arg2 : i32, i32
  }
  func.func @transform_1(%arg0: i32, %arg1: i32, %arg2: i32) -> (i32, i32) {
    %c0_i32 = arith.constant 0 : i32
    return %arg2, %arg1 : i32, i32
  }
  func.func @transform_2(%arg0: i32, %arg1: i32, %arg2: i32) -> (i32, i32) {
    %c0_i32 = arith.constant 0 : i32
    %c0_i32_0 = arith.constant 0 : i32
    return %c0_i32, %arg1 : i32, i32
  }
  func.func @transform_3(%arg0: i32, %arg1: i32, %arg2: i32) -> (i32, i32) {
    %c0_i32 = arith.constant 0 : i32
    return %arg0, %arg1 : i32, i32
  }
}

module attributes {stable_mosaic.version = 11 : i64} {
  func.func @_linear_kernel(%arg0: i32, %arg1: i32, %arg2: i32, %arg3: memref<16x64xbf16, #tpu.memory_space<vmem>>, %arg4: memref<64x32xbf16, #tpu.memory_space<vmem>>, %arg5: memref<1x32xf32, #tpu.memory_space<vmem>>, %arg6: memref<16x32xf32, #tpu.memory_space<vmem>>, %arg7: memref<16x32xf32, #tpu.memory_space<vmem>>) attributes {dimension_semantics = [#tpu.dimension_semantics<parallel>, #tpu.dimension_semantics<parallel>, #tpu.dimension_semantics<arbitrary>], iteration_bounds = array<i64: 1, 1, 1>, scalar_prefetch = 0 : i64, scratch_operands = 1 : i64, tpu.core_type = #tpu.core_type<tc>, window_params = [{transform_indices = @transform_0, window_bounds = array<i64: 16, 64>}, {transform_indices = @transform_1, window_bounds = array<i64: 64, 32>}, {transform_indices = @transform_2, window_bounds = array<i64: 1, 32>}, {transform_indices = @transform_3, window_bounds = array<i64: 16, 32>}]} {
    %c0_i32 = arith.constant 0 : i32
    %0 = arith.cmpi eq, %arg2, %c0_i32 : i32
    %1 = arith.extui %0 : i1 to i32
    %c0_i32_0 = arith.constant 0 : i32
    %2 = arith.cmpi ne, %1, %c0_i32_0 : i32
    scf.if %2 {
      %cst_10 = arith.constant 0.000000e+00 : f32
      %12 = vector.broadcast %cst_10 : f32 to vector<16x32xf32>
      %c0_11 = arith.constant 0 : index
      %c0_12 = arith.constant 0 : index
      %13 = vector.load %arg7[%c0_11, %c0_12] : memref<16x32xf32, #tpu.memory_space<vmem>>, vector<16x32xf32>
      tpu.vector_store %arg7[%c0_11, %c0_12], %12 {strides = array<i32>} : memref<16x32xf32, #tpu.memory_space<vmem>>, vector<16x32xf32>,
    } else {
    }
    %c0 = arith.constant 0 : index
    %c0_1 = arith.constant 0 : index
    %3 = vector.load %arg7[%c0, %c0_1] : memref<16x32xf32, #tpu.memory_space<vmem>>, vector<16x32xf32>
    %c0_2 = arith.constant 0 : index
    %c0_3 = arith.constant 0 : index
    %4 = vector.load %arg3[%c0_2, %c0_3] : memref<16x64xbf16, #tpu.memory_space<vmem>>, vector<16x64xbf16>
    %c0_4 = arith.constant 0 : index
    %c0_5 = arith.constant 0 : index
    %5 = vector.load %arg4[%c0_4, %c0_5] : memref<64x32xbf16, #tpu.memory_space<vmem>>, vector<64x32xbf16>
    %cst = arith.constant dense<0.000000e+00> : vector<16x32xf32>
    %6 = tpu.matmul %4, %5, %cst {dimension_numbers = #tpu.dot_dimension_numbers<[1], [0], [0], [1], [0, 0, 1, 1], [], []>} : vector<16x64xbf16>, vector<64x32xbf16>, vector<16x32xf32> -> vector<16x32xf32>
    %7 = arith.addf %3, %6 : vector<16x32xf32>
    %c0_6 = arith.constant 0 : index
    %c0_7 = arith.constant 0 : index
    %8 = vector.load %arg7[%c0_6, %c0_7] : memref<16x32xf32, #tpu.memory_space<vmem>>, vector<16x32xf32>
    tpu.vector_store %arg7[%c0_6, %c0_7], %7 {strides = array<i32>} : memref<16x32xf32, #tpu.memory_space<vmem>>, vector<16x32xf32>,
    %c0_i32_8 = arith.constant 0 : i32
    %9 = arith.cmpi eq, %arg2, %c0_i32_8 : i32
    %10 = arith.extui %9 : i1 to i32
    %c0_i32_9 = arith.constant 0 : i32
    %11 = arith.cmpi ne, %10, %c0_i32_9 : i32
    scf.if %11 {
      %c0_10 = arith.constant 0 : index
      %c0_11 = arith.constant 0 : index
      %12 = vector.load %arg7[%c0_10, %c0_11] : memref<16x32xf32, #tpu.memory_space<vmem>>, vector<16x32xf32>
      %c0_12 = arith.constant 0 : index
      %c0_13 = arith.constant 0 : index
      %13 = vector.load %arg5[%c0_12, %c0_13] : memref<1x32xf32, #tpu.memory_space<vmem>>, vector<1x32xf32>
      %14 = vector.broadcast %13 : vector<1x32xf32> to vector<16x32xf32>
      %15 = arith.addf %12, %14 : vector<16x32xf32>
      %c0_14 = arith.constant 0 : index
      %c0_15 = arith.constant 0 : index
      %16 = vector.load %arg6[%c0_14, %c0_15] : memref<16x32xf32, #tpu.memory_space<vmem>>, vector<16x32xf32>
      tpu.vector_store %arg6[%c0_14, %c0_15], %15 {strides = array<i32>} : memref<16x32xf32, #tpu.memory_space<vmem>>, vector<16x32xf32>,
    } else {
    }
    return
  }
  func.func @transform_0(%arg0: i32, %arg1: i32, %arg2: i32) -> (i32, i32) {
    %c0_i32 = arith.constant 0 : i32
    return %arg0, %arg2 : i32, i32
  }
  func.func @transform_1(%arg0: i32, %arg1: i32, %arg2: i32) -> (i32, i32) {
    %c0_i32 = arith.constant 0 : i32
    return %arg2, %arg1 : i32, i32
  }
  func.func @transform_2(%arg0: i32, %arg1: i32, %arg2: i32) -> (i32, i32) {
    %c0_i32 = arith.constant 0 : i32
    %c0_i32_0 = arith.constant 0 : i32
    return %c0_i32, %arg1 : i32, i32
  }
  func.func @transform_3(%arg0: i32, %arg1: i32, %arg2: i32) -> (i32, i32) {
    %c0_i32 = arith.constant 0 : i32
    return %arg0, %arg1 : i32, i32
  }
}

module attributes {stable_mosaic.version = 11 : i64} {
  func.func @_add_layernorm_kernel(%arg0: i32, %arg1: memref<16x32xf32, #tpu.memory_space<vmem>>, %arg2: memref<16x32xf32, #tpu.memory_space<vmem>>, %arg3: memref<1x32xf32, #tpu.memory_space<vmem>>, %arg4: memref<1x32xf32, #tpu.memory_space<vmem>>, %arg5: memref<16x32xf32, #tpu.memory_space<vmem>>, %arg6: memref<16x32xbf16, #tpu.memory_space<vmem>>) attributes {dimension_semantics = [#tpu.dimension_semantics<parallel>], iteration_bounds = array<i64: 1>, scalar_prefetch = 0 : i64, scratch_operands = 0 : i64, tpu.core_type = #tpu.core_type<tc>, window_params = [{transform_indices = @transform_0, window_bounds = array<i64: 16, 32>}, {transform_indices = @transform_1, window_bounds = array<i64: 16, 32>}, {pipeline_mode = #tpu.pipeline_mode<synchronous>, transform_indices = @transform_2, window_bounds = array<i64: 1, 32>}, {pipeline_mode = #tpu.pipeline_mode<synchronous>, transform_indices = @transform_3, window_bounds = array<i64: 1, 32>}, {transform_indices = @transform_4, window_bounds = array<i64: 16, 32>}, {transform_indices = @transform_5, window_bounds = array<i64: 16, 32>}]} {
    %c0 = arith.constant 0 : index
    %c0_0 = arith.constant 0 : index
    %0 = vector.load %arg1[%c0, %c0_0] : memref<16x32xf32, #tpu.memory_space<vmem>>, vector<16x32xf32>
    %c0_1 = arith.constant 0 : index
    %c0_2 = arith.constant 0 : index
    %1 = vector.load %arg2[%c0_1, %c0_2] : memref<16x32xf32, #tpu.memory_space<vmem>>, vector<16x32xf32>
    %2 = arith.addf %0, %1 : vector<16x32xf32>
    %cst = arith.constant dense<0.000000e+00> : vector<16xf32>
    %3 = vector.multi_reduction <add>, %2, %cst [1] : vector<16x32xf32> to vector<16xf32>
    %4 = vector.shape_cast %3 : vector<16xf32> to vector<16x1xf32>
    %cst_3 = arith.constant 3.200000e+01 : f32
    %5 = vector.broadcast %cst_3 : f32 to vector<16x1xf32>
    %6 = arith.divf %4, %5 : vector<16x1xf32>
    %7 = vector.broadcast %6 : vector<16x1xf32> to vector<16x32xf32>
    %8 = arith.subf %2, %7 : vector<16x32xf32>
    %9 = arith.mulf %8, %8 : vector<16x32xf32>
    %cst_4 = arith.constant dense<0.000000e+00> : vector<16xf32>
    %10 = vector.multi_reduction <add>, %9, %cst_4 [1] : vector<16x32xf32> to vector<16xf32>
    %11 = vector.shape_cast %10 : vector<16xf32> to vector<16x1xf32>
    %cst_5 = arith.constant 3.200000e+01 : f32
    %12 = vector.broadcast %cst_5 : f32 to vector<16x1xf32>
    %13 = arith.divf %11, %12 : vector<16x1xf32>
    %14 = vector.broadcast %6 : vector<16x1xf32> to vector<16x32xf32>
    %15 = arith.subf %2, %14 : vector<16x32xf32>
    %cst_6 = arith.constant 9.99999974E-6 : f32
    %16 = vector.broadcast %cst_6 : f32 to vector<16x1xf32>
    %17 = arith.addf %13, %16 : vector<16x1xf32>
    %18 = math.rsqrt %17 : vector<16x1xf32>
    %19 = vector.broadcast %18 : vector<16x1xf32> to vector<16x32xf32>
    %20 = arith.mulf %15, %19 : vector<16x32xf32>
    %c0_7 = arith.constant 0 : index
    %c0_8 = arith.constant 0 : index
    %21 = vector.load %arg3[%c0_7, %c0_8] : memref<1x32xf32, #tpu.memory_space<vmem>>, vector<1x32xf32>
    %22 = vector.broadcast %21 : vector<1x32xf32> to vector<16x32xf32>
    %23 = arith.mulf %20, %22 : vector<16x32xf32>
    %c0_9 = arith.constant 0 : index
    %c0_10 = arith.constant 0 : index
    %24 = vector.load %arg4[%c0_9, %c0_10] : memref<1x32xf32, #tpu.memory_space<vmem>>, vector<1x32xf32>
    %25 = vector.broadcast %24 : vector<1x32xf32> to vector<16x32xf32>
    %26 = arith.addf %23, %25 : vector<16x32xf32>
    %c0_11 = arith.constant 0 : index
    %c0_12 = arith.constant 0 : index
    %27 = vector.load %arg5[%c0_11, %c0_12] : memref<16x32xf32, #tpu.memory_space<vmem>>, vector<16x32xf32>
    tpu.vector_store %arg5[%c0_11, %c0_12], %26 {strides = array<i32>} : memref<16x32xf32, #tpu.memory_space<vmem>>, vector<16x32xf32>,
    %28 = arith.truncf %26 : vector<16x32xf32> to vector<16x32xbf16>
    %c0_13 = arith.constant 0 : index
    %c0_14 = arith.constant 0 : index
    %29 = vector.load %arg6[%c0_13, %c0_14] : memref<16x32xbf16, #tpu.memory_space<vmem>>, vector<16x32xbf16>
    tpu.vector_store %arg6[%c0_13, %c0_14], %28 {strides = array<i32>} : memref<16x32xbf16, #tpu.memory_space<vmem>>, vector<16x32xbf16>,
    return
  }
  func.func @transform_0(%arg0: i32) -> (i32, i32) {
    %c0_i32 = arith.constant 0 : i32
    %c0_i32_0 = arith.constant 0 : i32
    return %arg0, %c0_i32 : i32, i32
  }
  func.func @transform_1(%arg0: i32) -> (i32, i32) {
    %c0_i32 = arith.constant 0 : i32
    %c0_i32_0 = arith.constant 0 : i32
    return %arg0, %c0_i32 : i32, i32
  }
  func.func @transform_2(%arg0: i32) -> (i32, i32) {
    %c0_i32 = arith.constant 0 : i32
    %c0_i32_0 = arith.constant 0 : i32
    %c0_i32_1 = arith.constant 0 : i32
    return %c0_i32, %c0_i32_0 : i32, i32
  }
  func.func @transform_3(%arg0: i32) -> (i32, i32) {
    %c0_i32 = arith.constant 0 : i32
    %c0_i32_0 = arith.constant 0 : i32
    %c0_i32_1 = arith.constant 0 : i32
    return %c0_i32, %c0_i32_0 : i32, i32
  }
  func.func @transform_4(%arg0: i32) -> (i32, i32) {
    %c0_i32 = arith.constant 0 : i32
    %c0_i32_0 = arith.constant 0 : i32
    return %arg0, %c0_i32 : i32, i32
  }
  func.func @transform_5(%arg0: i32) -> (i32, i32) {
    %c0_i32 = arith.constant 0 : i32
    %c0_i32_0 = arith.constant 0 : i32
    return %arg0, %c0_i32 : i32, i32
  }
}

module attributes {stable_mosaic.version = 11 : i64} {
  func.func @_add_layernorm_kernel(%arg0: i32, %arg1: memref<16x32xf32, #tpu.memory_space<vmem>>, %arg2: memref<16x32xf32, #tpu.memory_space<vmem>>, %arg3: memref<1x32xf32, #tpu.memory_space<vmem>>, %arg4: memref<1x32xf32, #tpu.memory_space<vmem>>, %arg5: memref<16x32xf32, #tpu.memory_space<vmem>>, %arg6: memref<16x32xbf16, #tpu.memory_space<vmem>>) attributes {dimension_semantics = [#tpu.dimension_semantics<parallel>], iteration_bounds = array<i64: 1>, scalar_prefetch = 0 : i64, scratch_operands = 0 : i64, tpu.core_type = #tpu.core_type<tc>, window_params = [{transform_indices = @transform_0, window_bounds = array<i64: 16, 32>}, {transform_indices = @transform_1, window_bounds = array<i64: 16, 32>}, {pipeline_mode = #tpu.pipeline_mode<synchronous>, transform_indices = @transform_2, window_bounds = array<i64: 1, 32>}, {pipeline_mode = #tpu.pipeline_mode<synchronous>, transform_indices = @transform_3, window_bounds = array<i64: 1, 32>}, {transform_indices = @transform_4, window_bounds = array<i64: 16, 32>}, {transform_indices = @transform_5, window_bounds = array<i64: 16, 32>}]} {
    %c0 = arith.constant 0 : index
    %c0_0 = arith.constant 0 : index
    %0 = vector.load %arg1[%c0, %c0_0] : memref<16x32xf32, #tpu.memory_space<vmem>>, vector<16x32xf32>
    %c0_1 = arith.constant 0 : index
    %c0_2 = arith.constant 0 : index
    %1 = vector.load %arg2[%c0_1, %c0_2] : memref<16x32xf32, #tpu.memory_space<vmem>>, vector<16x32xf32>
    %2 = arith.addf %0, %1 : vector<16x32xf32>
    %cst = arith.constant dense<0.000000e+00> : vector<16xf32>
    %3 = vector.multi_reduction <add>, %2, %cst [1] : vector<16x32xf32> to vector<16xf32>
    %4 = vector.shape_cast %3 : vector<16xf32> to vector<16x1xf32>
    %cst_3 = arith.constant 3.200000e+01 : f32
    %5 = vector.broadcast %cst_3 : f32 to vector<16x1xf32>
    %6 = arith.divf %4, %5 : vector<16x1xf32>
    %7 = vector.broadcast %6 : vector<16x1xf32> to vector<16x32xf32>
    %8 = arith.subf %2, %7 : vector<16x32xf32>
    %9 = arith.mulf %8, %8 : vector<16x32xf32>
    %cst_4 = arith.constant dense<0.000000e+00> : vector<16xf32>
    %10 = vector.multi_reduction <add>, %9, %cst_4 [1] : vector<16x32xf32> to vector<16xf32>
    %11 = vector.shape_cast %10 : vector<16xf32> to vector<16x1xf32>
    %cst_5 = arith.constant 3.200000e+01 : f32
    %12 = vector.broadcast %cst_5 : f32 to vector<16x1xf32>
    %13 = arith.divf %11, %12 : vector<16x1xf32>
    %14 = vector.broadcast %6 : vector<16x1xf32> to vector<16x32xf32>
    %15 = arith.subf %2, %14 : vector<16x32xf32>
    %cst_6 = arith.constant 9.99999974E-6 : f32
    %16 = vector.broadcast %cst_6 : f32 to vector<16x1xf32>
    %17 = arith.addf %13, %16 : vector<16x1xf32>
    %18 = math.rsqrt %17 : vector<16x1xf32>
    %19 = vector.broadcast %18 : vector<16x1xf32> to vector<16x32xf32>
    %20 = arith.mulf %15, %19 : vector<16x32xf32>
    %c0_7 = arith.constant 0 : index
    %c0_8 = arith.constant 0 : index
    %21 = vector.load %arg3[%c0_7, %c0_8] : memref<1x32xf32, #tpu.memory_space<vmem>>, vector<1x32xf32>
    %22 = vector.broadcast %21 : vector<1x32xf32> to vector<16x32xf32>
    %23 = arith.mulf %20, %22 : vector<16x32xf32>
    %c0_9 = arith.constant 0 : index
    %c0_10 = arith.constant 0 : index
    %24 = vector.load %arg4[%c0_9, %c0_10] : memref<1x32xf32, #tpu.memory_space<vmem>>, vector<1x32xf32>
    %25 = vector.broadcast %24 : vector<1x32xf32> to vector<16x32xf32>
    %26 = arith.addf %23, %25 : vector<16x32xf32>
    %c0_11 = arith.constant 0 : index
    %c0_12 = arith.constant 0 : index
    %27 = vector.load %arg5[%c0_11, %c0_12] : memref<16x32xf32, #tpu.memory_space<vmem>>, vector<16x32xf32>
    tpu.vector_store %arg5[%c0_11, %c0_12], %26 {strides = array<i32>} : memref<16x32xf32, #tpu.memory_space<vmem>>, vector<16x32xf32>,
    %28 = arith.truncf %26 : vector<16x32xf32> to vector<16x32xbf16>
    %c0_13 = arith.constant 0 : index
    %c0_14 = arith.constant 0 : index
    %29 = vector.load %arg6[%c0_13, %c0_14] : memref<16x32xbf16, #tpu.memory_space<vmem>>, vector<16x32xbf16>
    tpu.vector_store %arg6[%c0_13, %c0_14], %28 {strides = array<i32>} : memref<16x32xbf16, #tpu.memory_space<vmem>>, vector<16x32xbf16>,
    return
  }
  func.func @transform_0(%arg0: i32) -> (i32, i32) {
    %c0_i32 = arith.constant 0 : i32
    %c0_i32_0 = arith.constant 0 : i32
    return %arg0, %c0_i32 : i32, i32
  }
  func.func @transform_1(%arg0: i32) -> (i32, i32) {
    %c0_i32 = arith.constant 0 : i32
    %c0_i32_0 = arith.constant 0 : i32
    return %arg0, %c0_i32 : i32, i32
  }
  func.func @transform_2(%arg0: i32) -> (i32, i32) {
    %c0_i32 = arith.constant 0 : i32
    %c0_i32_0 = arith.constant 0 : i32
    %c0_i32_1 = arith.constant 0 : i32
    return %c0_i32, %c0_i32_0 : i32, i32
  }
  func.func @transform_3(%arg0: i32) -> (i32, i32) {
    %c0_i32 = arith.constant 0 : i32
    %c0_i32_0 = arith.constant 0 : i32
    %c0_i32_1 = arith.constant 0 : i32
    return %c0_i32, %c0_i32_0 : i32, i32
  }
  func.func @transform_4(%arg0: i32) -> (i32, i32) {
    %c0_i32 = arith.constant 0 : i32
    %c0_i32_0 = arith.constant 0 : i32
    return %arg0, %c0_i32 : i32, i32
  }
  func.func @transform_5(%arg0: i32) -> (i32, i32) {
    %c0_i32 = arith.constant 0 : i32
    %c0_i32_0 = arith.constant 0 : i32
    return %arg0, %c0_i32 : i32, i32
  }
}

module attributes {stable_mosaic.version = 11 : i64} {
  func.func @_layernorm_kernel(%arg0: i32, %arg1: memref<16x32xf32, #tpu.memory_space<vmem>>, %arg2: memref<1x32xf32, #tpu.memory_space<vmem>>, %arg3: memref<1x32xf32, #tpu.memory_space<vmem>>, %arg4: memref<16x32xf32, #tpu.memory_space<vmem>>) attributes {dimension_semantics = [#tpu.dimension_semantics<parallel>], iteration_bounds = array<i64: 1>, scalar_prefetch = 0 : i64, scratch_operands = 0 : i64, tpu.core_type = #tpu.core_type<tc>, window_params = [{transform_indices = @transform_0, window_bounds = array<i64: 16, 32>}, {pipeline_mode = #tpu.pipeline_mode<synchronous>, transform_indices = @transform_1, window_bounds = array<i64: 1, 32>}, {pipeline_mode = #tpu.pipeline_mode<synchronous>, transform_indices = @transform_2, window_bounds = array<i64: 1, 32>}, {transform_indices = @transform_3, window_bounds = array<i64: 16, 32>}]} {
    %c0 = arith.constant 0 : index
    %c0_0 = arith.constant 0 : index
    %0 = vector.load %arg1[%c0, %c0_0] : memref<16x32xf32, #tpu.memory_space<vmem>>, vector<16x32xf32>
    %cst = arith.constant dense<0.000000e+00> : vector<16xf32>
    %1 = vector.multi_reduction <add>, %0, %cst [1] : vector<16x32xf32> to vector<16xf32>
    %2 = vector.shape_cast %1 : vector<16xf32> to vector<16x1xf32>
    %cst_1 = arith.constant 3.200000e+01 : f32
    %3 = vector.broadcast %cst_1 : f32 to vector<16x1xf32>
    %4 = arith.divf %2, %3 : vector<16x1xf32>
    %5 = vector.broadcast %4 : vector<16x1xf32> to vector<16x32xf32>
    %6 = arith.subf %0, %5 : vector<16x32xf32>
    %7 = arith.mulf %6, %6 : vector<16x32xf32>
    %cst_2 = arith.constant dense<0.000000e+00> : vector<16xf32>
    %8 = vector.multi_reduction <add>, %7, %cst_2 [1] : vector<16x32xf32> to vector<16xf32>
    %9 = vector.shape_cast %8 : vector<16xf32> to vector<16x1xf32>
    %cst_3 = arith.constant 3.200000e+01 : f32
    %10 = vector.broadcast %cst_3 : f32 to vector<16x1xf32>
    %11 = arith.divf %9, %10 : vector<16x1xf32>
    %12 = vector.broadcast %4 : vector<16x1xf32> to vector<16x32xf32>
    %13 = arith.subf %0, %12 : vector<16x32xf32>
    %cst_4 = arith.constant 9.99999974E-6 : f32
    %14 = vector.broadcast %cst_4 : f32 to vector<16x1xf32>
    %15 = arith.addf %11, %14 : vector<16x1xf32>
    %16 = math.rsqrt %15 : vector<16x1xf32>
    %17 = vector.broadcast %16 : vector<16x1xf32> to vector<16x32xf32>
    %18 = arith.mulf %13, %17 : vector<16x32xf32>
    %c0_5 = arith.constant 0 : index
    %c0_6 = arith.constant 0 : index
    %19 = vector.load %arg2[%c0_5, %c0_6] : memref<1x32xf32, #tpu.memory_space<vmem>>, vector<1x32xf32>
    %20 = vector.broadcast %19 : vector<1x32xf32> to vector<16x32xf32>
    %21 = arith.mulf %18, %20 : vector<16x32xf32>
    %c0_7 = arith.constant 0 : index
    %c0_8 = arith.constant 0 : index
    %22 = vector.load %arg3[%c0_7, %c0_8] : memref<1x32xf32, #tpu.memory_space<vmem>>, vector<1x32xf32>
    %23 = vector.broadcast %22 : vector<1x32xf32> to vector<16x32xf32>
    %24 = arith.addf %21, %23 : vector<16x32xf32>
    %c0_9 = arith.constant 0 : index
    %c0_10 = arith.constant 0 : index
    %25 = vector.load %arg4[%c0_9, %c0_10] : memref<16x32xf32, #tpu.memory_space<vmem>>, vector<16x32xf32>
    tpu.vector_store %arg4[%c0_9, %c0_10], %24 {strides = array<i32>} : memref<16x32xf32, #tpu.memory_space<vmem>>, vector<16x32xf32>,
    return
  }
  func.func @transform_0(%arg0: i32) -> (i32, i32) {
    %c0_i32 = arith.constant 0 : i32
    %c0_i32_0 = arith.constant 0 : i32
    return %arg0, %c0_i32 : i32, i32
  }
  func.func @transform_1(%arg0: i32) -> (i32, i32) {
    %c0_i32 = arith.constant 0 : i32
    %c0_i32_0 = arith.constant 0 : i32
    %c0_i32_1 = arith.constant 0 : i32
    return %c0_i32, %c0_i32_0 : i32, i32
  }
  func.func @transform_2(%arg0: i32) -> (i32, i32) {
    %c0_i32 = arith.constant 0 : i32
    %c0_i32_0 = arith.constant 0 : i32
    %c0_i32_1 = arith.constant 0 : i32
    return %c0_i32, %c0_i32_0 : i32, i32
  }
  func.func @transform_3(%arg0: i32) -> (i32, i32) {
    %c0_i32 = arith.constant 0 : i32
    %c0_i32_0 = arith.constant 0 : i32
    return %arg0, %c0_i32 : i32, i32
  }
}

</mosaic_0001>

<llo_original>
// kernel: decoder_forward.28
$region0: #{decoder_forward.28}
  #allocation0 [shape = 'u32[]', space=smem, size = 0x4, offset = 0x4, fixed_abs, tag = 'smem constant byte address 0x4 - core index']
  #allocation1 [shape = 'u32[144,128]{1,0:T(1,128)}', space=vmem, size = 0x12000, scoped, tag = 'internal scratch']
  #allocation2 [shape = 'f32[16,64]{1,0:T(8,128)}', space=vmem, size = 0x2000, scoped, tag = 'scratch operand']
  %s0 = inlined_call_operand.vmem [shape: bf16[16,32], index: 0, kind: input, shape index: {}]
  %s1 = inlined_call_operand.vmem [shape: bf16[32,64], index: 1, kind: input, shape index: {}]
  %s2 = inlined_call_operand.vmem [shape: f32[1,64], index: 2, kind: input, shape index: {}]
  %s3 = inlined_call_operand.vmem [shape: bf16[16,64], index: 3, kind: output, shape index: {}]
  %s4 = sld [smem:[#allocation0]]
  $region30: #{decoder_forward.28} parent=0
    _
  %s6 = ssub.s32 1, %s4
  %s7 = scalar_select 0, %s6, %s4
  // Predicated region
  $region2: #{decoder_forward.28} parent=0 // pred_check
    _
  $region3: #{decoder_forward.28} parent=0 // pred_check_branch
    %9 = sbr.rel (0) target = $region5
  $region4: #{decoder_forward.28} parent=0 // pred_region
    _
  $region5: #{decoder_forward.28} parent=0 // pred_fallthru
    _
  // Predicated region
  $region6: #{decoder_forward.28} parent=0 // pred_check
    _
  $region7: #{decoder_forward.28} parent=0 // pred_check_branch
    %11 = sbr.rel (0) target = $region9
  $region8: #{decoder_forward.28} parent=0 // pred_region
    _
  $region9: #{decoder_forward.28} parent=0 // pred_fallthru
    _
  // Predicated region
  $region10: #{decoder_forward.28} parent=0 // pred_check
    _
  $region11: #{decoder_forward.28} parent=0 // pred_check_branch
    %13 = sbr.rel (0) target = $region13
  $region12: #{decoder_forward.28} parent=0 // pred_region
    _
  $region13: #{decoder_forward.28} parent=0 // pred_fallthru
    _
  %p15 = scmp.eq.s32.totalorder 0, 0
  // Predicated region
  $region14: #{decoder_forward.28} parent=0 // pred_check
    %p16 = pneg %p15
  $region15: #{decoder_forward.28} parent=0 // pred_check_branch
    %18 = sbr.rel (%p16) target = $region17
  $region16: #{decoder_forward.28} parent=0 // pred_region
    %vm19 = vcmask 523264
    %20 = vst.msk [vmem:[#allocation2] sm:$0xff] %vm19, 0.0
    %21 = vst.msk [vmem:[#allocation2 + $0x8] sm:$0xff] %vm19, 0.0
  $region17: #{decoder_forward.28} parent=0 // pred_fallthru
    _
  %v22 = vld [vmem:[#allocation2] sm:$0xff]
  %v23 = vld [vmem:[#allocation2 + $0x8] sm:$0xff]
  %v24 = vld [vmem:[%s0] sm:$0xf]
  %v25 = vld [vmem:[%s0 + $0x4] sm:$0xf]
  %v26 = vld [vmem:[%s1] sm:$0xf]
  %v27 = vld [vmem:[%s1 + $0x4] sm:$0xf]
  %v28 = vld [vmem:[%s1 + $0x8] sm:$0xf]
  %v29 = vld [vmem:[%s1 + $0xc] sm:$0xf]
  %v32 = vunpack.c.l.b16 %v24
  %v33 = vunpack.c.l.b16 %v25
  %v34 = vpack.c.b16 %v33, %v32
  %v39 = vunpack.c.l.b16 %v26
  %v40 = vunpack.c.l.b16 %v27
  %v41 = vunpack.c.l.b16 %v28
  %v42 = vunpack.c.l.b16 %v29
  %v43 = vpack.c.b16 %v40, %v39
  %v44 = vpack.c.b16 %v42, %v41
  %vm47 = vcmask 261120
  %v49 = vsel %vm47, %v34, 0
  %51 = vmatprep.subr.bf16.mxu0 0
  %52 = vmatpush1.bf16.msra.mxu0 %v43
  %53 = vmatprep.subr.bf16.mxu0 0
  %54 = vmatpush1.bf16.msra.mxu0 %v44
  %55 = vmatprep.subr.bf16.mxu0 0
  %56 = vmatpush1.bf16.msra.mxu0 0
  %57 = vmatprep.subr.bf16.mxu0 0
  %58 = vmatpush1.bf16.msra.mxu0 0
  %59 = vmatprep.subr.bf16.mxu0 0
  %60 = vmatpush1.bf16.msra.mxu0 0
  %61 = vmatprep.subr.bf16.mxu0 0
  %62 = vmatpush1.bf16.msra.mxu0 0
  %63 = vmatprep.subr.bf16.mxu0 0
  %64 = vmatpush1.bf16.msra.mxu0 0
  %65 = vmatprep.subr.bf16.mxu0 0
  %66 = vmatpush1.bf16.msra.mxu0 0
  %67 = vmatprep.subr.bf16.mxu0 0
  %68 = vmatpush1.bf16.msra.mxu0 0
  %69 = vmatprep.subr.bf16.mxu0 0
  %70 = vmatpush1.bf16.msra.mxu0 0
  %71 = vmatprep.subr.bf16.mxu0 0
  %72 = vmatpush1.bf16.msra.mxu0 0
  %73 = vmatprep.subr.bf16.mxu0 0
  %74 = vmatpush1.bf16.msra.mxu0 0
  %75 = vmatprep.subr.bf16.mxu0 0
  %76 = vmatpush1.bf16.msra.mxu0 0
  %77 = vmatprep.subr.bf16.mxu0 0
  %78 = vmatpush1.bf16.msra.mxu0 0
  %79 = vmatprep.subr.bf16.mxu0 0
  %80 = vmatpush1.bf16.msra.mxu0 0
  %81 = vmatprep.subr.bf16.mxu0 0
  %82 = vmatpush1.bf16.msra.mxu0 0
  %83 = vmatprep.mubr.bf16.mxu0 0
  %84 = vmatmul.mubr.bf16.gmra.mrb[0].mxu0 %v49
  %v85 = vpop.f32.mrb[0].mxu0
  %v86 = vadd.f32 0.0, %v85
  %v87 = vpop.f32.mrb[0].mxu0
  %v88 = vpop.f32.mrb[0].mxu0
  %v89 = vadd.f32 0.0, %v88
  %v90 = vpop.f32.mrb[0].mxu0
  %91 = vdwg.mxu0
  %v92 = vadd.f32 %v22, %v86
  %v93 = vadd.f32 %v23, %v89
  %vm94 = vcmask 523264
  %95 = vst.msk [vmem:[#allocation2] sm:$0xff] %vm94, %v92
  %96 = vst.msk [vmem:[#allocation2 + $0x8] sm:$0xff] %vm94, %v93
  // Predicated region
  $region18: #{decoder_forward.28} parent=0 // pred_check
    %p97 = pneg %p15
  $region19: #{decoder_forward.28} parent=0 // pred_check_branch
    %99 = sbr.rel (%p97) target = $region21
  $region20: #{decoder_forward.28} parent=0 // pred_region
    %v100 = vld [vmem:[#allocation2] sm:$0xff]
    %v101 = vld [vmem:[#allocation2 + $0x8] sm:$0xff]
    %v102 = vld [vmem:[%s2] sm:$0x1]
    %v104 = vlaneseq
    %v105 = vshrl.u32 %v104, 7
    %v106 = vsub.s32 0, %v105
    %v107 = vrot.slane %v102, %v106
    %v109 = vadd.f32 %v100, %v107
    %v110 = vadd.f32 %v101, %v107
    %v111 = vpack.c.bf16 %v110, %v109
    %v113 = vunpack.c.l.b16 %v111
    %v114 = vunpack.c.h.b16 %v111
    %v115 = vpack.c.b16 %v113, %v113
    %v116 = vpack.c.b16 %v114, %v114
    %vm119 = vcmask 519168
    %120 = vst.msk [vmem:[%s3] sm:$0xf] %vm119, %v115
    %121 = vst.msk [vmem:[%s3 + $0x4] sm:$0xf] %vm119, %v116
  $region21: #{decoder_forward.28} parent=0 // pred_fallthru
    _
  // Predicated region
  $region22: #{decoder_forward.28} parent=0 // pred_check
    _
  $region23: #{decoder_forward.28} parent=0 // pred_check_branch
    %123 = sbr.rel (0) target = $region25
  $region24: #{decoder_forward.28} parent=0 // pred_region
    _
  $region25: #{decoder_forward.28} parent=0 // pred_fallthru
    _
  // Predicated region
  $region26: #{decoder_forward.28} parent=0 // pred_check
    _
  $region27: #{decoder_forward.28} parent=0 // pred_check_branch
    %125 = sbr.rel (0) target = $region29
  $region28: #{decoder_forward.28} parent=0 // pred_region
    _
  $region29: #{decoder_forward.28} parent=0 // pred_fallthru
    _

// kernel: decoder_forward.27
$region0: #{decoder_forward.27}
  #allocation0 [shape = 'u32[]', space=smem, size = 0x4, offset = 0x4, fixed_abs, tag = 'smem constant byte address 0x4 - core index']
  #allocation1 [shape = 'u32[144,128]{1,0:T(1,128)}', space=vmem, size = 0x12000, scoped, tag = 'internal scratch']
  #allocation2 [shape = 'f32[16,32]{1,0:T(8,128)}', space=vmem, size = 0x2000, scoped, tag = 'scratch operand']
  %s0 = inlined_call_operand.vmem [shape: bf16[16,32], index: 0, kind: input, shape index: {}]
  %s1 = inlined_call_operand.vmem [shape: bf16[32,32], index: 1, kind: input, shape index: {}]
  %s2 = inlined_call_operand.vmem [shape: f32[1,32], index: 2, kind: input, shape index: {}]
  %s3 = inlined_call_operand.vmem [shape: bf16[16,32], index: 3, kind: output, shape index: {}]
  %s4 = sld [smem:[#allocation0]]
  $region30: #{decoder_forward.27} parent=0
    _
  %s6 = ssub.s32 1, %s4
  %s7 = scalar_select 0, %s6, %s4
  // Predicated region
  $region2: #{decoder_forward.27} parent=0 // pred_check
    _
  $region3: #{decoder_forward.27} parent=0 // pred_check_branch
    %9 = sbr.rel (0) target = $region5
  $region4: #{decoder_forward.27} parent=0 // pred_region
    _
  $region5: #{decoder_forward.27} parent=0 // pred_fallthru
    _
  // Predicated region
  $region6: #{decoder_forward.27} parent=0 // pred_check
    _
  $region7: #{decoder_forward.27} parent=0 // pred_check_branch
    %11 = sbr.rel (0) target = $region9
  $region8: #{decoder_forward.27} parent=0 // pred_region
    _
  $region9: #{decoder_forward.27} parent=0 // pred_fallthru
    _
  // Predicated region
  $region10: #{decoder_forward.27} parent=0 // pred_check
    _
  $region11: #{decoder_forward.27} parent=0 // pred_check_branch
    %13 = sbr.rel (0) target = $region13
  $region12: #{decoder_forward.27} parent=0 // pred_region
    _
  $region13: #{decoder_forward.27} parent=0 // pred_fallthru
    _
  %p15 = scmp.eq.s32.totalorder 0, 0
  // Predicated region
  $region14: #{decoder_forward.27} parent=0 // pred_check
    %p16 = pneg %p15
  $region15: #{decoder_forward.27} parent=0 // pred_check_branch
    %18 = sbr.rel (%p16) target = $region17
  $region16: #{decoder_forward.27} parent=0 // pred_region
    %vm19 = vcmask 261120
    %20 = vst.msk [vmem:[#allocation2] sm:$0xff] %vm19, 0.0
    %21 = vst.msk [vmem:[#allocation2 + $0x8] sm:$0xff] %vm19, 0.0
  $region17: #{decoder_forward.27} parent=0 // pred_fallthru
    _
  %v22 = vld [vmem:[#allocation2] sm:$0xff]
  %v23 = vld [vmem:[#allocation2 + $0x8] sm:$0xff]
  %v24 = vld [vmem:[%s0] sm:$0xf]
  %v25 = vld [vmem:[%s0 + $0x4] sm:$0xf]
  %v26 = vld [vmem:[%s1] sm:$0xf]
  %v27 = vld [vmem:[%s1 + $0x4] sm:$0xf]
  %v28 = vld [vmem:[%s1 + $0x8] sm:$0xf]
  %v29 = vld [vmem:[%s1 + $0xc] sm:$0xf]
  %v32 = vunpack.c.l.b16 %v24
  %v33 = vunpack.c.l.b16 %v25
  %v34 = vpack.c.b16 %v33, %v32
  %v39 = vunpack.c.l.b16 %v26
  %v40 = vunpack.c.l.b16 %v27
  %v41 = vunpack.c.l.b16 %v28
  %v42 = vunpack.c.l.b16 %v29
  %v43 = vpack.c.b16 %v40, %v39
  %v44 = vpack.c.b16 %v42, %v41
  %vm47 = vcmask 261120
  %v49 = vsel %vm47, %v34, 0
  %51 = vmatprep.subr.bf16.mxu0 0
  %52 = vmatpush1.bf16.msra.mxu0 %v43
  %53 = vmatprep.subr.bf16.mxu0 0
  %54 = vmatpush1.bf16.msra.mxu0 %v44
  %55 = vmatprep.subr.bf16.mxu0 0
  %56 = vmatpush1.bf16.msra.mxu0 0
  %57 = vmatprep.subr.bf16.mxu0 0
  %58 = vmatpush1.bf16.msra.mxu0 0
  %59 = vmatprep.subr.bf16.mxu0 0
  %60 = vmatpush1.bf16.msra.mxu0 0
  %61 = vmatprep.subr.bf16.mxu0 0
  %62 = vmatpush1.bf16.msra.mxu0 0
  %63 = vmatprep.subr.bf16.mxu0 0
  %64 = vmatpush1.bf16.msra.mxu0 0
  %65 = vmatprep.subr.bf16.mxu0 0
  %66 = vmatpush1.bf16.msra.mxu0 0
  %67 = vmatprep.subr.bf16.mxu0 0
  %68 = vmatpush1.bf16.msra.mxu0 0
  %69 = vmatprep.subr.bf16.mxu0 0
  %70 = vmatpush1.bf16.msra.mxu0 0
  %71 = vmatprep.subr.bf16.mxu0 0
  %72 = vmatpush1.bf16.msra.mxu0 0
  %73 = vmatprep.subr.bf16.mxu0 0
  %74 = vmatpush1.bf16.msra.mxu0 0
  %75 = vmatprep.subr.bf16.mxu0 0
  %76 = vmatpush1.bf16.msra.mxu0 0
  %77 = vmatprep.subr.bf16.mxu0 0
  %78 = vmatpush1.bf16.msra.mxu0 0
  %79 = vmatprep.subr.bf16.mxu0 0
  %80 = vmatpush1.bf16.msra.mxu0 0
  %81 = vmatprep.subr.bf16.mxu0 0
  %82 = vmatpush1.bf16.msra.mxu0 0
  %83 = vmatprep.mubr.bf16.mxu0 0
  %84 = vmatmul.mubr.bf16.gmra.mrb[0].mxu0 %v49
  %v85 = vpop.f32.mrb[0].mxu0
  %v86 = vadd.f32 0.0, %v85
  %v87 = vpop.f32.mrb[0].mxu0
  %v88 = vpop.f32.mrb[0].mxu0
  %v89 = vadd.f32 0.0, %v88
  %v90 = vpop.f32.mrb[0].mxu0
  %91 = vdwg.mxu0
  %v92 = vadd.f32 %v22, %v86
  %v93 = vadd.f32 %v23, %v89
  %94 = vst.msk [vmem:[#allocation2] sm:$0xff] %vm47, %v92
  %95 = vst.msk [vmem:[#allocation2 + $0x8] sm:$0xff] %vm47, %v93
  // Predicated region
  $region18: #{decoder_forward.27} parent=0 // pred_check
    %p96 = pneg %p15
  $region19: #{decoder_forward.27} parent=0 // pred_check_branch
    %98 = sbr.rel (%p96) target = $region21
  $region20: #{decoder_forward.27} parent=0 // pred_region
    %v99 = vld [vmem:[#allocation2] sm:$0xff]
    %v100 = vld [vmem:[#allocation2 + $0x8] sm:$0xff]
    %v101 = vld [vmem:[%s2] sm:$0x1]
    %v103 = vlaneseq
    %v104 = vshrl.u32 %v103, 7
    %v105 = vsub.s32 0, %v104
    %v106 = vrot.slane %v101, %v105
    %v108 = vadd.f32 %v99, %v106
    %v109 = vadd.f32 %v100, %v106
    %v110 = vpack.c.bf16 %v109, %v108
    %v112 = vunpack.c.l.b16 %v110
    %v113 = vunpack.c.h.b16 %v110
    %v114 = vpack.c.b16 %v112, %v112
    %v115 = vpack.c.b16 %v113, %v113
    %vm118 = vcmask 257024
    %119 = vst.msk [vmem:[%s3] sm:$0xf] %vm118, %v114
    %120 = vst.msk [vmem:[%s3 + $0x4] sm:$0xf] %vm118, %v115
  $region21: #{decoder_forward.27} parent=0 // pred_fallthru
    _
  // Predicated region
  $region22: #{decoder_forward.27} parent=0 // pred_check
    _
  $region23: #{decoder_forward.27} parent=0 // pred_check_branch
    %122 = sbr.rel (0) target = $region25
  $region24: #{decoder_forward.27} parent=0 // pred_region
    _
  $region25: #{decoder_forward.27} parent=0 // pred_fallthru
    _
  // Predicated region
  $region26: #{decoder_forward.27} parent=0 // pred_check
    _
  $region27: #{decoder_forward.27} parent=0 // pred_check_branch
    %124 = sbr.rel (0) target = $region29
  $region28: #{decoder_forward.27} parent=0 // pred_region
    _
  $region29: #{decoder_forward.27} parent=0 // pred_fallthru
    _

// kernel: decoder_forward.30
$region0: #{decoder_forward.30}
  #allocation0 [shape = 'u32[]', space=smem, size = 0x4, offset = 0x4, fixed_abs, tag = 'smem constant byte address 0x4 - core index']
  #allocation1 [shape = 'u32[144,128]{1,0:T(1,128)}', space=vmem, size = 0x12000, scoped, tag = 'internal scratch']
  #allocation2 [shape = 'f32[16,32]{1,0:T(8,128)}', space=vmem, size = 0x2000, scoped, tag = 'scratch operand']
  %s0 = inlined_call_operand.vmem [shape: bf16[16,32], index: 0, kind: input, shape index: {}]
  %s1 = inlined_call_operand.vmem [shape: bf16[32,32], index: 1, kind: input, shape index: {}]
  %s2 = inlined_call_operand.vmem [shape: f32[1,32], index: 2, kind: input, shape index: {}]
  %s3 = inlined_call_operand.vmem [shape: f32[16,32], index: 3, kind: output, shape index: {}]
  %s4 = sld [smem:[#allocation0]]
  $region30: #{decoder_forward.30} parent=0
    _
  %s6 = ssub.s32 1, %s4
  %s7 = scalar_select 0, %s6, %s4
  // Predicated region
  $region2: #{decoder_forward.30} parent=0 // pred_check
    _
  $region3: #{decoder_forward.30} parent=0 // pred_check_branch
    %9 = sbr.rel (0) target = $region5
  $region4: #{decoder_forward.30} parent=0 // pred_region
    _
  $region5: #{decoder_forward.30} parent=0 // pred_fallthru
    _
  // Predicated region
  $region6: #{decoder_forward.30} parent=0 // pred_check
    _
  $region7: #{decoder_forward.30} parent=0 // pred_check_branch
    %11 = sbr.rel (0) target = $region9
  $region8: #{decoder_forward.30} parent=0 // pred_region
    _
  $region9: #{decoder_forward.30} parent=0 // pred_fallthru
    _
  // Predicated region
  $region10: #{decoder_forward.30} parent=0 // pred_check
    _
  $region11: #{decoder_forward.30} parent=0 // pred_check_branch
    %13 = sbr.rel (0) target = $region13
  $region12: #{decoder_forward.30} parent=0 // pred_region
    _
  $region13: #{decoder_forward.30} parent=0 // pred_fallthru
    _
  %p15 = scmp.eq.s32.totalorder 0, 0
  // Predicated region
  $region14: #{decoder_forward.30} parent=0 // pred_check
    %p16 = pneg %p15
  $region15: #{decoder_forward.30} parent=0 // pred_check_branch
    %18 = sbr.rel (%p16) target = $region17
  $region16: #{decoder_forward.30} parent=0 // pred_region
    %vm19 = vcmask 261120
    %20 = vst.msk [vmem:[#allocation2] sm:$0xff] %vm19, 0.0
    %21 = vst.msk [vmem:[#allocation2 + $0x8] sm:$0xff] %vm19, 0.0
  $region17: #{decoder_forward.30} parent=0 // pred_fallthru
    _
  %v22 = vld [vmem:[#allocation2] sm:$0xff]
  %v23 = vld [vmem:[#allocation2 + $0x8] sm:$0xff]
  %v24 = vld [vmem:[%s0] sm:$0xf]
  %v25 = vld [vmem:[%s0 + $0x4] sm:$0xf]
  %v26 = vld [vmem:[%s1] sm:$0xf]
  %v27 = vld [vmem:[%s1 + $0x4] sm:$0xf]
  %v28 = vld [vmem:[%s1 + $0x8] sm:$0xf]
  %v29 = vld [vmem:[%s1 + $0xc] sm:$0xf]
  %v32 = vunpack.c.l.b16 %v24
  %v33 = vunpack.c.l.b16 %v25
  %v34 = vpack.c.b16 %v33, %v32
  %v39 = vunpack.c.l.b16 %v26
  %v40 = vunpack.c.l.b16 %v27
  %v41 = vunpack.c.l.b16 %v28
  %v42 = vunpack.c.l.b16 %v29
  %v43 = vpack.c.b16 %v40, %v39
  %v44 = vpack.c.b16 %v42, %v41
  %vm47 = vcmask 261120
  %v49 = vsel %vm47, %v34, 0
  %51 = vmatprep.subr.bf16.mxu0 0
  %52 = vmatpush1.bf16.msra.mxu0 %v43
  %53 = vmatprep.subr.bf16.mxu0 0
  %54 = vmatpush1.bf16.msra.mxu0 %v44
  %55 = vmatprep.subr.bf16.mxu0 0
  %56 = vmatpush1.bf16.msra.mxu0 0
  %57 = vmatprep.subr.bf16.mxu0 0
  %58 = vmatpush1.bf16.msra.mxu0 0
  %59 = vmatprep.subr.bf16.mxu0 0
  %60 = vmatpush1.bf16.msra.mxu0 0
  %61 = vmatprep.subr.bf16.mxu0 0
  %62 = vmatpush1.bf16.msra.mxu0 0
  %63 = vmatprep.subr.bf16.mxu0 0
  %64 = vmatpush1.bf16.msra.mxu0 0
  %65 = vmatprep.subr.bf16.mxu0 0
  %66 = vmatpush1.bf16.msra.mxu0 0
  %67 = vmatprep.subr.bf16.mxu0 0
  %68 = vmatpush1.bf16.msra.mxu0 0
  %69 = vmatprep.subr.bf16.mxu0 0
  %70 = vmatpush1.bf16.msra.mxu0 0
  %71 = vmatprep.subr.bf16.mxu0 0
  %72 = vmatpush1.bf16.msra.mxu0 0
  %73 = vmatprep.subr.bf16.mxu0 0
  %74 = vmatpush1.bf16.msra.mxu0 0
  %75 = vmatprep.subr.bf16.mxu0 0
  %76 = vmatpush1.bf16.msra.mxu0 0
  %77 = vmatprep.subr.bf16.mxu0 0
  %78 = vmatpush1.bf16.msra.mxu0 0
  %79 = vmatprep.subr.bf16.mxu0 0
  %80 = vmatpush1.bf16.msra.mxu0 0
  %81 = vmatprep.subr.bf16.mxu0 0
  %82 = vmatpush1.bf16.msra.mxu0 0
  %83 = vmatprep.mubr.bf16.mxu0 0
  %84 = vmatmul.mubr.bf16.gmra.mrb[0].mxu0 %v49
  %v85 = vpop.f32.mrb[0].mxu0
  %v86 = vadd.f32 0.0, %v85
  %v87 = vpop.f32.mrb[0].mxu0
  %v88 = vpop.f32.mrb[0].mxu0
  %v89 = vadd.f32 0.0, %v88
  %v90 = vpop.f32.mrb[0].mxu0
  %91 = vdwg.mxu0
  %v92 = vadd.f32 %v22, %v86
  %v93 = vadd.f32 %v23, %v89
  %94 = vst.msk [vmem:[#allocation2] sm:$0xff] %vm47, %v92
  %95 = vst.msk [vmem:[#allocation2 + $0x8] sm:$0xff] %vm47, %v93
  // Predicated region
  $region18: #{decoder_forward.30} parent=0 // pred_check
    %p96 = pneg %p15
  $region19: #{decoder_forward.30} parent=0 // pred_check_branch
    %98 = sbr.rel (%p96) target = $region21
  $region20: #{decoder_forward.30} parent=0 // pred_region
    %v99 = vld [vmem:[#allocation2] sm:$0xff]
    %v100 = vld [vmem:[#allocation2 + $0x8] sm:$0xff]
    %v101 = vld [vmem:[%s2] sm:$0x1]
    %v103 = vlaneseq
    %v104 = vshrl.u32 %v103, 7
    %v105 = vsub.s32 0, %v104
    %v106 = vrot.slane %v101, %v105
    %v108 = vadd.f32 %v99, %v106
    %v109 = vadd.f32 %v100, %v106
    %110 = vst.msk [vmem:[%s3] sm:$0xff] %vm47, %v108
    %111 = vst.msk [vmem:[%s3 + $0x8] sm:$0xff] %vm47, %v109
  $region21: #{decoder_forward.30} parent=0 // pred_fallthru
    _
  // Predicated region
  $region22: #{decoder_forward.30} parent=0 // pred_check
    _
  $region23: #{decoder_forward.30} parent=0 // pred_check_branch
    %113 = sbr.rel (0) target = $region25
  $region24: #{decoder_forward.30} parent=0 // pred_region
    _
  $region25: #{decoder_forward.30} parent=0 // pred_fallthru
    _
  // Predicated region
  $region26: #{decoder_forward.30} parent=0 // pred_check
    _
  $region27: #{decoder_forward.30} parent=0 // pred_check_branch
    %115 = sbr.rel (0) target = $region29
  $region28: #{decoder_forward.30} parent=0 // pred_region
    _
  $region29: #{decoder_forward.30} parent=0 // pred_fallthru
    _

// kernel: decoder_forward.29
$region0: #{decoder_forward.29}
  #allocation0 [shape = 'u32[]', space=smem, size = 0x4, offset = 0x4, fixed_abs, tag = 'smem constant byte address 0x4 - core index']
  #allocation1 [shape = 'u32[144,128]{1,0:T(1,128)}', space=vmem, size = 0x12000, scoped, tag = 'internal scratch']
  #allocation2 [shape = 'f32[4,8,1]{2,1,0:T(8,128)}', space=vmem, size = 0x4000, scoped, tag = 'scratch operand']
  #allocation3 [shape = 'f32[4,8,1]{2,1,0:T(8,128)}', space=vmem, size = 0x4000, scoped, tag = 'scratch operand']
  #allocation4 [shape = 'f32[4,8,8]{2,1,0:T(8,128)}', space=vmem, size = 0x4000, scoped, tag = 'scratch operand']
  #allocation5 [shape = 's32[1]{0}', space=sflag, size = 0x4, scoped, tag = 'scoped memory for decoder_forward.29']
  #allocation6 [shape = 'u8[512]{0}', space=smem, size = 0x200, scoped, tag = 'prefetched SMEM operand 0']
  %s0 = inlined_call_operand.vmem [shape: s32[2], index: 0, kind: input, shape index: {}]
  %s1 = inlined_call_operand.vmem [shape: bf16[2,8,32], index: 1, kind: input, shape index: {}]
  %s2 = inlined_call_operand.vmem [shape: bf16[2,8,64], index: 2, kind: input, shape index: {}]
  %s3 = inlined_call_operand.vmem [shape: s8[2,8,8], index: 3, kind: input, shape index: {}]
  %s4 = inlined_call_operand.vmem [shape: bf16[2,8,32], index: 4, kind: output, shape index: {}]
  %s5 = sld [smem:[#allocation0]]
  $region57: #{decoder_forward.29} parent=0
    _
  %s7 = ssub.s32 1, %s5
  %s8 = scalar_select 0, %s7, %s5
  %s9 = sshll.u32 %s0, 4
  %s10 = int_to_ptr.vmem [resolvable:$true] %s9
  %12 = dma.vmem_to_smem %s10, 16, [#allocation6], [#allocation5]
  %13 = dma.done [#allocation5], 16
  %14 = sfence
  loop: start=0, step=1, limit=4
  $region2: #{decoder_forward.29} parent=0 // loop_pre_header
    _
  $region3: #{decoder_forward.29} parent=0 // loop_header
    %s16 = sphi 0, %s20
    %p17 = scmp.ge.s32.totalorder %s16, 4
    %s23 = sphi 0, %s42
    %s24 = sphi 0, %s38
    %s25 = sphi 0, %s34
    %s26 = sphi 0, %s23
    %s27 = sphi 0, %s24
    %s28 = sphi 0, %s25
    %s29 = sphi 0, %s26
    %s30 = sphi 0, %s27
    %s31 = sphi 0, %s28
    %s47 = sphi 0, %s49
    %s50 = sphi 0, %s47
    %s51 = sphi 0, %s50
    %s67 = sphi 0, %s51
    %s75 = sphi 0, %s77
    %s78 = sphi 0, %s75
    %s79 = sphi 0, %s78
    %s95 = sphi 0, %s79
    %s105 = sphi 0, %s107
    %s108 = sphi 0, %s105
    %s109 = sphi 0, %s108
    %s125 = sphi 0, %s109
    %s133 = sphi 0, %s135
    %s136 = sphi 0, %s133
    %s137 = sphi 0, %s136
    %s153 = sphi 0, %s137
  $region4: #{decoder_forward.29} parent=0 // loop_header_branch
    %19 = sbr.rel (%p17) target = $region8
  $region5: #{decoder_forward.29} parent=0 // loop_body
    %s21 = ssub.s32 %s16, 1
    %s22 = ssub.s32 %s16, 2
    %s32 = sadd.s32 1, %s25
    %p33 = scmp.ge.s32.totalorder %s32, 1
    %s34 = scalar_select %p33, 0, %s32
    %s35 = sadd.s32 1, %s24
    %s36 = scalar_select %p33, %s35, %s24
    %p37 = scmp.ge.s32.totalorder %s36, 1
    %s38 = scalar_select %p37, 0, %s36
    %s39 = sadd.s32 1, %s23
    %s40 = scalar_select %p37, %s39, %s23
    %p41 = scmp.ge.s32.totalorder %s40, 2
    %s42 = scalar_select %p41, 0, %s40
    %s43 = ssub.s32 %s23, %s42
    %s44 = ssub.s32 %s24, %s38
    %s45 = sor.u32 %s43, %s44
    %p46 = scmp.eq.s32.totalorder %s45, 0
    %s48 = sadd.s32 %s47, 1
    %s49 = scalar_select %p46, %s47, %s48
    %p52 = pneg %p46
    %p53 = scmp.eq.s32.totalorder %s16, 1
    %p54 = por %p52, %p53
    %p55 = scmp.ne.s32.totalorder %s47, %s50
    %p56 = scmp.eq.s32.totalorder %s16, 0
    %p57 = por %p55, %p56
    %p58 = scmp.ne.s32.totalorder %s47, %s50
    %p59 = scmp.eq.s32.totalorder %s21, 1
    %p60 = por %p58, %p59
    %p61 = scmp.ne.s32.totalorder %s50, %s51
    %p62 = scmp.eq.s32.totalorder %s21, 0
    %p63 = por %p61, %p62
    %p64 = scmp.ne.s32.totalorder %s50, %s51
    %p65 = scmp.eq.s32.totalorder %s22, 1
    %p66 = por %p64, %p65
    %p68 = scmp.ne.s32.totalorder %s51, %s67
    %p69 = scmp.eq.s32.totalorder %s22, 0
    %p70 = por %p68, %p69
    %s71 = ssub.s32 %s23, %s42
    %s72 = ssub.s32 %s25, %s34
    %s73 = sor.u32 %s71, %s72
    %p74 = scmp.eq.s32.totalorder %s73, 0
    %s76 = sadd.s32 %s75, 1
    %s77 = scalar_select %p74, %s75, %s76
    %p80 = pneg %p74
    %p81 = scmp.eq.s32.totalorder %s16, 1
    %p82 = por %p80, %p81
    %p83 = scmp.ne.s32.totalorder %s75, %s78
    %p84 = scmp.eq.s32.totalorder %s16, 0
    %p85 = por %p83, %p84
    %p86 = scmp.ne.s32.totalorder %s75, %s78
    %p87 = scmp.eq.s32.totalorder %s21, 1
    %p88 = por %p86, %p87
    %p89 = scmp.ne.s32.totalorder %s78, %s79
    %p90 = scmp.eq.s32.totalorder %s21, 0
    %p91 = por %p89, %p90
    %p92 = scmp.ne.s32.totalorder %s78, %s79
    %p93 = scmp.eq.s32.totalorder %s22, 1
    %p94 = por %p92, %p93
    %p96 = scmp.ne.s32.totalorder %s79, %s95
    %p97 = scmp.eq.s32.totalorder %s22, 0
    %p98 = por %p96, %p97
    %s99 = ssub.s32 %s23, %s42
    %s100 = ssub.s32 %s24, %s38
    %s101 = sor.u32 %s99, %s100
    %s102 = ssub.s32 %s25, %s34
    %s103 = sor.u32 %s101, %s102
    %p104 = scmp.eq.s32.totalorder %s103, 0
    %s106 = sadd.s32 %s105, 1
    %s107 = scalar_select %p104, %s105, %s106
    %p110 = pneg %p104
    %p111 = scmp.eq.s32.totalorder %s16, 1
    %p112 = por %p110, %p111
    %p113 = scmp.ne.s32.totalorder %s105, %s108
    %p114 = scmp.eq.s32.totalorder %s16, 0
    %p115 = por %p113, %p114
    %p116 = scmp.ne.s32.totalorder %s105, %s108
    %p117 = scmp.eq.s32.totalorder %s21, 1
    %p118 = por %p116, %p117
    %p119 = scmp.ne.s32.totalorder %s108, %s109
    %p120 = scmp.eq.s32.totalorder %s21, 0
    %p121 = por %p119, %p120
    %p122 = scmp.ne.s32.totalorder %s108, %s109
    %p123 = scmp.eq.s32.totalorder %s22, 1
    %p124 = por %p122, %p123
    %p126 = scmp.ne.s32.totalorder %s109, %s125
    %p127 = scmp.eq.s32.totalorder %s22, 0
    %p128 = por %p126, %p127
    %s129 = ssub.s32 %s23, %s42
    %s130 = ssub.s32 %s24, %s38
    %s131 = sor.u32 %s129, %s130
    %p132 = scmp.eq.s32.totalorder %s131, 0
    %s134 = sadd.s32 %s133, 1
    %s135 = scalar_select %p132, %s133, %s134
    %p138 = pneg %p132
    %p139 = scmp.eq.s32.totalorder %s16, 1
    %p140 = por %p138, %p139
    %p141 = scmp.ne.s32.totalorder %s133, %s136
    %p142 = scmp.eq.s32.totalorder %s16, 0
    %p143 = por %p141, %p142
    %p144 = scmp.ne.s32.totalorder %s133, %s136
    %p145 = scmp.eq.s32.totalorder %s21, 1
    %p146 = por %p144, %p145
    %p147 = scmp.ne.s32.totalorder %s136, %s137
    %p148 = scmp.eq.s32.totalorder %s21, 0
    %p149 = por %p147, %p148
    %p150 = scmp.ne.s32.totalorder %s136, %s137
    %p151 = scmp.eq.s32.totalorder %s22, 1
    %p152 = por %p150, %p151
    %p154 = scmp.ne.s32.totalorder %s137, %s153
    %p155 = scmp.eq.s32.totalorder %s22, 0
    %p156 = por %p154, %p155
    %p157 = scmp.le.s32.totalorder 1, %s16
    %p158 = scmp.lt.s32.totalorder %s16, 3
    %p159 = pnand %p157, %p158
    %p160 = pneg %p159
    // Predicated region
    $region9: #{decoder_forward.29} parent=5 // pred_check
      _
    $region10: #{decoder_forward.29} parent=5 // pred_check_branch
      %162 = sbr.rel (%p159) target = $region12
    $region11: #{decoder_forward.29} parent=5 // pred_region
      %s163 = ssub.s32 %s16, 1
    $region12: #{decoder_forward.29} parent=5 // pred_fallthru
      _
    %p164 = scmp.lt.s32.totalorder %s16, 2
    // Predicated region
    $region13: #{decoder_forward.29} parent=5 // pred_check
      %p165 = pneg %p164
    $region14: #{decoder_forward.29} parent=5 // pred_check_branch
      %167 = sbr.rel (%p165) target = $region16
    $region15: #{decoder_forward.29} parent=5 // pred_region
      // Predicated region
      $region17: #{decoder_forward.29} parent=15 // pred_check
        %p168 = pneg %p57
      $region18: #{decoder_forward.29} parent=15 // pred_check_branch
        %170 = sbr.rel (%p168) target = $region20
      $region19: #{decoder_forward.29} parent=15 // pred_region
        %p171 = scmp.lt.s32.totalorder %s23, 1
        %s172 = scalar_select %p171, %s23, 1
        %p173 = scmp.lt.s32.totalorder %s24, 0
        %s174 = scalar_select %p173, %s24, 0
        %s175 = sadd.s32 %s174, %s172
        %s176 = smul.addr %s175, 4
        %s177 = scalar_lea.vmem %s1, %s176
      $region20: #{decoder_forward.29} parent=15 // pred_fallthru
        _
      // Predicated region
      $region21: #{decoder_forward.29} parent=15 // pred_check
        %p178 = pneg %p85
      $region22: #{decoder_forward.29} parent=15 // pred_check_branch
        %180 = sbr.rel (%p178) target = $region24
      $region23: #{decoder_forward.29} parent=15 // pred_region
        %p181 = scmp.lt.s32.totalorder %s23, 1
        %s182 = scalar_select %p181, %s23, 1
        %p183 = scmp.lt.s32.totalorder %s25, 0
        %s184 = scalar_select %p183, %s25, 0
        %s185 = sadd.s32 %s184, %s182
        %s186 = smul.addr %s185, 4
        %s187 = scalar_lea.vmem %s2, %s186
      $region24: #{decoder_forward.29} parent=15 // pred_fallthru
        _
      // Predicated region
      $region25: #{decoder_forward.29} parent=15 // pred_check
        %p188 = pneg %p115
      $region26: #{decoder_forward.29} parent=15 // pred_check_branch
        %190 = sbr.rel (%p188) target = $region28
      $region27: #{decoder_forward.29} parent=15 // pred_region
        %p191 = scmp.lt.s32.totalorder %s23, 1
        %s192 = scalar_select %p191, %s23, 1
        %p193 = scmp.lt.s32.totalorder %s24, 0
        %s194 = scalar_select %p193, %s24, 0
        %p195 = scmp.lt.s32.totalorder %s25, 0
        %s196 = scalar_select %p195, %s25, 0
        %s197 = sadd.s32 %s196, %s194
        %s198 = sadd.s32 %s197, %s192
        %s199 = smul.addr %s198, 2
        %s200 = scalar_lea.vmem %s3, %s199
      $region28: #{decoder_forward.29} parent=15 // pred_fallthru
        _
    $region16: #{decoder_forward.29} parent=5 // pred_fallthru
      _
    %p201 = scmp.le.s32.totalorder 1, %s16
    %p202 = scmp.lt.s32.totalorder %s16, 3
    %p203 = pnand %p201, %p202
    %p204 = pneg %p203
    // Predicated region
    $region29: #{decoder_forward.29} parent=5 // pred_check
      _
    $region30: #{decoder_forward.29} parent=5 // pred_check_branch
      %206 = sbr.rel (%p203) target = $region32
    $region31: #{decoder_forward.29} parent=5 // pred_region
      %s207 = ssub.s32 %s16, 1
      %p208 = scmp.lt.s32.totalorder %s26, 1
      %s209 = scalar_select %p208, %s26, 1
      %p210 = scmp.lt.s32.totalorder %s27, 0
      %s211 = scalar_select %p210, %s27, 0
      %s212 = sadd.s32 %s211, %s209
      %s213 = smul.addr %s212, 4
      %s214 = scalar_lea.vmem %s1, %s213
      %p215 = pneg %p63
      %p216 = pneg %p60
      %p217 = scmp.lt.s32.totalorder %s26, 1
      %s218 = scalar_select %p217, %s26, 1
      %p219 = scmp.lt.s32.totalorder %s28, 0
      %s220 = scalar_select %p219, %s28, 0
      %s221 = sadd.s32 %s220, %s218
      %s222 = smul.addr %s221, 4
      %s223 = scalar_lea.vmem %s2, %s222
      %p224 = pneg %p91
      %p225 = pneg %p88
      %p226 = scmp.lt.s32.totalorder %s26, 1
      %s227 = scalar_select %p226, %s26, 1
      %p228 = scmp.lt.s32.totalorder %s27, 0
      %s229 = scalar_select %p228, %s27, 0
      %p230 = scmp.lt.s32.totalorder %s28, 0
      %s231 = scalar_select %p230, %s28, 0
      %s232 = sadd.s32 %s231, %s229
      %s233 = sadd.s32 %s232, %s227
      %s234 = smul.addr %s233, 2
      %s235 = scalar_lea.vmem %s3, %s234
      %p236 = pneg %p121
      %p237 = pneg %p118
      %p238 = pneg %p149
      %p239 = pneg %p146
      %p240 = scmp.lt.s32.totalorder %s26, 1
      %s241 = scalar_select %p240, %s26, 1
      %p242 = scmp.lt.s32.totalorder %s27, 0
      %s243 = scalar_select %p242, %s27, 0
      %s244 = sadd.s32 %s243, %s241
      %s245 = smul.addr %s244, 4
      %s246 = scalar_lea.vmem %s4, %s245
      %p247 = scmp.lt.s32.totalorder %s26, 1
      %s248 = scalar_select %p247, %s26, 1
      %p249 = scmp.lt.s32.totalorder %s27, 0
      %s250 = scalar_select %p249, %s27, 0
      %s251 = sadd.s32 %s250, %s248
      %s252 = smul.addr %s251, 4
      %s253 = scalar_lea.vmem %s1, %s252
      %p254 = scmp.lt.s32.totalorder %s26, 1
      %s255 = scalar_select %p254, %s26, 1
      %p256 = scmp.lt.s32.totalorder %s28, 0
      %s257 = scalar_select %p256, %s28, 0
      %s258 = sadd.s32 %s257, %s255
      %s259 = smul.addr %s258, 4
      %s260 = scalar_lea.vmem %s2, %s259
      %p261 = scmp.lt.s32.totalorder %s26, 1
      %s262 = scalar_select %p261, %s26, 1
      %p263 = scmp.lt.s32.totalorder %s27, 0
      %s264 = scalar_select %p263, %s27, 0
      %p265 = scmp.lt.s32.totalorder %s28, 0
      %s266 = scalar_select %p265, %s28, 0
      %s267 = sadd.s32 %s266, %s264
      %s268 = sadd.s32 %s267, %s262
      %s269 = smul.addr %s268, 2
      %s270 = scalar_lea.vmem %s3, %s269
      %p271 = scmp.lt.s32.totalorder %s26, 1
      %s272 = scalar_select %p271, %s26, 1
      %p273 = scmp.lt.s32.totalorder %s27, 0
      %s274 = scalar_select %p273, %s27, 0
      %s275 = sadd.s32 %s274, %s272
      %s276 = smul.addr %s275, 4
      %s277 = scalar_lea.vmem %s4, %s276
      %p281 = scmp.eq.s32.totalorder %s28, 0
      // Predicated region
      $region33: #{decoder_forward.29} parent=31 // pred_check
        %p282 = pneg %p281
      $region34: #{decoder_forward.29} parent=31 // pred_check_branch
        %284 = sbr.rel (%p282) target = $region36
      $region35: #{decoder_forward.29} parent=31 // pred_region
        %vm285 = vcmask 7168
        %286 = vst.msk [vmem:[#allocation2] sm:$0xff] %vm285, -1e+30
        %287 = vst.msk [vmem:[#allocation2 + $0x8] sm:$0xff] %vm285, -1e+30
        %288 = vst.msk [vmem:[#allocation2 + $0x10] sm:$0xff] %vm285, -1e+30
        %289 = vst.msk [vmem:[#allocation2 + $0x18] sm:$0xff] %vm285, -1e+30
        %290 = vst.msk [vmem:[#allocation3] sm:$0xff] %vm285, 0.0
        %291 = vst.msk [vmem:[#allocation3 + $0x8] sm:$0xff] %vm285, 0.0
        %292 = vst.msk [vmem:[#allocation3 + $0x10] sm:$0xff] %vm285, 0.0
        %293 = vst.msk [vmem:[#allocation3 + $0x18] sm:$0xff] %vm285, 0.0
        %vm294 = vcmask 64512
        %295 = vst.msk [vmem:[#allocation4] sm:$0xff] %vm294, 0.0
        %296 = vst.msk [vmem:[#allocation4 + $0x8] sm:$0xff] %vm294, 0.0
        %297 = vst.msk [vmem:[#allocation4 + $0x10] sm:$0xff] %vm294, 0.0
        %298 = vst.msk [vmem:[#allocation4 + $0x18] sm:$0xff] %vm294, 0.0
      $region36: #{decoder_forward.29} parent=31 // pred_fallthru
        _
      %s299 = sadd.s32 %s26, %s27
      %s300 = sadd.s32 %s299, %s28
      %s301 = sld [smem:[#allocation6 + %s300]]
      %p302 = scmp.ne.s32.totalorder %s301, 0
      // Predicated region
      $region37: #{decoder_forward.29} parent=31 // pred_check
        %p303 = pneg %p302
      $region38: #{decoder_forward.29} parent=31 // pred_check_branch
        %305 = sbr.rel (%p303) target = $region40
      $region39: #{decoder_forward.29} parent=31 // pred_region
        %v306 = vld [vmem:[%s253] sm:$0xf]
        %v307 = vunpack.c.l.bf16 %v306
        %v308 = vmul.f32 %v307, 0.35355338
        %v309 = vpack.c.bf16 %v308, %v308
        %v310 = vld [vmem:[%s260] sm:$0xf]
        %v311 = vld [vmem:[%s270] sm:$0x3]
        %vm312 = vnez %v311
        %vm313 = vcmask 64512
        %v315 = vsel %vm313, %v309, 0
        %v318 = vsel %vm313, %v310, 0
        %320 = vmatprep.subr.bf16.mxu0 0
        %321 = vmatpush1.bf16.xpose.msra.mxu0 %v318
        %322 = vmatprep.subr.bf16.mxu0 0
        %323 = vmatpush1.bf16.xpose.msra.mxu0 0
        %324 = vmatprep.subr.bf16.mxu0 0
        %325 = vmatpush1.bf16.xpose.msra.mxu0 0
        %326 = vmatprep.subr.bf16.mxu0 0
        %327 = vmatpush1.bf16.xpose.msra.mxu0 0
        %328 = vmatprep.subr.bf16.mxu0 0
        %329 = vmatpush1.bf16.xpose.msra.mxu0 0
        %330 = vmatprep.subr.bf16.mxu0 0
        %331 = vmatpush1.bf16.xpose.msra.mxu0 0
        %332 = vmatprep.subr.bf16.mxu0 0
        %333 = vmatpush1.bf16.xpose.msra.mxu0 0
        %334 = vmatprep.subr.bf16.mxu0 0
        %335 = vmatpush1.bf16.xpose.msra.mxu0 0
        %336 = vmatprep.subr.bf16.mxu0 0
        %337 = vmatpush1.bf16.xpose.msra.mxu0 0
        %338 = vmatprep.subr.bf16.mxu0 0
        %339 = vmatpush1.bf16.xpose.msra.mxu0 0
        %340 = vmatprep.subr.bf16.mxu0 0
        %341 = vmatpush1.bf16.xpose.msra.mxu0 0
        %342 = vmatprep.subr.bf16.mxu0 0
        %343 = vmatpush1.bf16.xpose.msra.mxu0 0
        %344 = vmatprep.subr.bf16.mxu0 0
        %345 = vmatpush1.bf16.xpose.msra.mxu0 0
        %346 = vmatprep.subr.bf16.mxu0 0
        %347 = vmatpush1.bf16.xpose.msra.mxu0 0
        %348 = vmatprep.subr.bf16.mxu0 0
        %349 = vmatpush1.bf16.xpose.msra.mxu0 0
        %350 = vmatprep.subr.bf16.mxu0 0
        %351 = vmatpush1.bf16.xpose.msra.mxu0 0
        %352 = vmatprep.mubr.bf16.mxu0 0
        %353 = vmatmul.mubr.bf16.gmra.mrb[0].mxu0 %v315
        %v354 = vpop.f32.mrb[0].mxu0
        %v355 = vadd.f32 0.0, %v354
        %v356 = vpop.f32.mrb[0].mxu0
        %v357 = vpop.f32.mrb[0].mxu0
        %v358 = vpop.f32.mrb[0].mxu0
        %359 = vdwg.mxu0
        %v360 = vsel %vm312, 16843009, 0
        %v361 = vunpack.c.0.s8 %v360
        %vm362 = vcmp.ne.s32.totalorder %v361, 0
        %v363 = vsel %vm362, %v355, -1e+30
        %v364 = vld [vmem:[#allocation2] sm:$0xff]
        %v365 = vsel %vm313, %v363, -inf
        %366 = vmax.xlane.f32.xlu0 %v365
        %v367 = vpop.xlane.xlu0 %366
        %v368 = vmax.f32 %v364, %v367
        %v369 = vsub.f32 %v364, %v368
        %v370 = vmul.f32 %v369, 1.442695
        %v371 = vpow.pop %v370
        %373 = vset.pattern.permute.xlu0 0
        %374 = vperm.xlu0 %373, %v368
        %v375 = vpop.permute.xlu0 %374
        %v377 = vsub.f32 %v363, %v375
        %v378 = vmul.f32 %v377, 1.442695
        %v379 = vpow.pop %v378
        %v380 = vld [vmem:[#allocation3] sm:$0xff]
        %v381 = vmul.f32 %v371, %v380
        %v382 = vsel %vm313, %v379, 0.0
        %383 = vadd.xlane.f32.xlu0 %v382
        %v384 = vpop.xlane.xlu0 %383
        %v385 = vadd.f32 %v381, %v384
        %vm386 = vcmask 7168
        %387 = vst.msk [vmem:[#allocation3] sm:$0xff] %vm386, %v385
        %v388 = vld [vmem:[#allocation4] sm:$0xff]
        %390 = vset.pattern.permute.xlu0 0
        %391 = vperm.xlu0 %390, %v371
        %v392 = vpop.permute.xlu0 %391
        %v394 = vmul.f32 %v392, %v388
        %v395 = vpack.c.bf16 %v379, %v379
        %v397 = vunpack.c.l.b16 %v310
        %v398 = vpack.c.b16 %v397, %v397
        %399 = vrot.lane.b32.xlu0 %v398, 96
        %v400 = vpop.permute.xlu0 %399
        %v402 = vsel %vm313, %v395, 0
        %vm404 = vcmask 1043456
        %v406 = vsel %vm404, %v400, 0
        %408 = vmatprep.subr.bf16.mxu0 0
        %409 = vmatpush1.bf16.msra.mxu0 %v406
        %410 = vmatprep.subr.bf16.mxu0 0
        %411 = vmatpush1.bf16.msra.mxu0 0
        %412 = vmatprep.subr.bf16.mxu0 0
        %413 = vmatpush1.bf16.msra.mxu0 0
        %414 = vmatprep.subr.bf16.mxu0 0
        %415 = vmatpush1.bf16.msra.mxu0 0
        %416 = vmatprep.subr.bf16.mxu0 0
        %417 = vmatpush1.bf16.msra.mxu0 0
        %418 = vmatprep.subr.bf16.mxu0 0
        %419 = vmatpush1.bf16.msra.mxu0 0
        %420 = vmatprep.subr.bf16.mxu0 0
        %421 = vmatpush1.bf16.msra.mxu0 0
        %422 = vmatprep.subr.bf16.mxu0 0
        %423 = vmatpush1.bf16.msra.mxu0 0
        %424 = vmatprep.subr.bf16.mxu0 0
        %425 = vmatpush1.bf16.msra.mxu0 0
        %426 = vmatprep.subr.bf16.mxu0 0
        %427 = vmatpush1.bf16.msra.mxu0 0
        %428 = vmatprep.subr.bf16.mxu0 0
        %429 = vmatpush1.bf16.msra.mxu0 0
        %430 = vmatprep.subr.bf16.mxu0 0
        %431 = vmatpush1.bf16.msra.mxu0 0
        %432 = vmatprep.subr.bf16.mxu0 0
        %433 = vmatpush1.bf16.msra.mxu0 0
        %434 = vmatprep.subr.bf16.mxu0 0
        %435 = vmatpush1.bf16.msra.mxu0 0
        %436 = vmatprep.subr.bf16.mxu0 0
        %437 = vmatpush1.bf16.msra.mxu0 0
        %438 = vmatprep.subr.bf16.mxu0 0
        %439 = vmatpush1.bf16.msra.mxu0 0
        %440 = vmatprep.mubr.bf16.mxu0 0
        %441 = vmatmul.mubr.bf16.gmra.mrb[0].mxu0 %v402
        %v442 = vpop.f32.mrb[0].mxu0
        %v443 = vadd.f32 0.0, %v442
        %v444 = vpop.f32.mrb[0].mxu0
        %v445 = vpop.f32.mrb[0].mxu0
        %v446 = vpop.f32.mrb[0].mxu0
        %447 = vdwg.mxu0
        %v448 = vadd.f32 %v394, %v443
        %449 = vst.msk [vmem:[#allocation4] sm:$0xff] %vm313, %v448
        %450 = vst.msk [vmem:[#allocation2] sm:$0xff] %vm386, %v368
        %452 = vrot.lane.b32.xlu0 %v309, 120
        %v453 = vpop.permute.xlu0 %452
        %454 = vrot.lane.b32.xlu0 %v398, 120
        %v455 = vpop.permute.xlu0 %454
        %v457 = vsel %vm313, %v453, 0
        %v460 = vsel %vm313, %v455, 0
        %462 = vmatprep.subr.bf16.mxu0 0
        %463 = vmatpush1.bf16.xpose.msra.mxu0 %v460
        %464 = vmatprep.subr.bf16.mxu0 0
        %465 = vmatpush1.bf16.xpose.msra.mxu0 0
        %466 = vmatprep.subr.bf16.mxu0 0
        %467 = vmatpush1.bf16.xpose.msra.mxu0 0
        %468 = vmatprep.subr.bf16.mxu0 0
        %469 = vmatpush1.bf16.xpose.msra.mxu0 0
        %470 = vmatprep.subr.bf16.mxu0 0
        %471 = vmatpush1.bf16.xpose.msra.mxu0 0
        %472 = vmatprep.subr.bf16.mxu0 0
        %473 = vmatpush1.bf16.xpose.msra.mxu0 0
        %474 = vmatprep.subr.bf16.mxu0 0
        %475 = vmatpush1.bf16.xpose.msra.mxu0 0
        %476 = vmatprep.subr.bf16.mxu0 0
        %477 = vmatpush1.bf16.xpose.msra.mxu0 0
        %478 = vmatprep.subr.bf16.mxu0 0
        %479 = vmatpush1.bf16.xpose.msra.mxu0 0
        %480 = vmatprep.subr.bf16.mxu0 0
        %481 = vmatpush1.bf16.xpose.msra.mxu0 0
        %482 = vmatprep.subr.bf16.mxu0 0
        %483 = vmatpush1.bf16.xpose.msra.mxu0 0
        %484 = vmatprep.subr.bf16.mxu0 0
        %485 = vmatpush1.bf16.xpose.msra.mxu0 0
        %486 = vmatprep.subr.bf16.mxu0 0
        %487 = vmatpush1.bf16.xpose.msra.mxu0 0
        %488 = vmatprep.subr.bf16.mxu0 0
        %489 = vmatpush1.bf16.xpose.msra.mxu0 0
        %490 = vmatprep.subr.bf16.mxu0 0
        %491 = vmatpush1.bf16.xpose.msra.mxu0 0
        %492 = vmatprep.subr.bf16.mxu0 0
        %493 = vmatpush1.bf16.xpose.msra.mxu0 0
        %494 = vmatprep.mubr.bf16.mxu0 0
        %495 = vmatmul.mubr.bf16.gmra.mrb[0].mxu0 %v457
        %v496 = vpop.f32.mrb[0].mxu0
        %v497 = vadd.f32 0.0, %v496
        %v498 = vpop.f32.mrb[0].mxu0
        %v499 = vpop.f32.mrb[0].mxu0
        %v500 = vpop.f32.mrb[0].mxu0
        %501 = vdwg.mxu0
        %v502 = vsel %vm362, %v497, -1e+30
        %s503 = scalar_lea.vmem [#allocation2], 8
        %v504 = vld [vmem:[%s503] sm:$0xff]
        %v505 = vsel %vm313, %v502, -inf
        %506 = vmax.xlane.f32.xlu0 %v505
        %v507 = vpop.xlane.xlu0 %506
        %v508 = vmax.f32 %v504, %v507
        %v509 = vsub.f32 %v504, %v508
        %v510 = vmul.f32 %v509, 1.442695
        %v511 = vpow.pop %v510
        %513 = vset.pattern.permute.xlu0 0
        %514 = vperm.xlu0 %513, %v508
        %v515 = vpop.permute.xlu0 %514
        %v517 = vsub.f32 %v502, %v515
        %v518 = vmul.f32 %v517, 1.442695
        %v519 = vpow.pop %v518
        %s520 = scalar_lea.vmem [#allocation3], 8
        %v521 = vld [vmem:[%s520] sm:$0xff]
        %v522 = vmul.f32 %v511, %v521
        %v523 = vsel %vm313, %v519, 0.0
        %524 = vadd.xlane.f32.xlu0 %v523
        %v525 = vpop.xlane.xlu0 %524
        %v526 = vadd.f32 %v522, %v525
        %527 = vst.msk [vmem:[%s520] sm:$0xff] %vm386, %v526
        %s528 = scalar_lea.vmem [#allocation4], 8
        %v529 = vld [vmem:[%s528] sm:$0xff]
        %531 = vset.pattern.permute.xlu0 0
        %532 = vperm.xlu0 %531, %v511
        %v533 = vpop.permute.xlu0 %532
        %v535 = vmul.f32 %v533, %v529
        %v536 = vpack.c.bf16 %v519, %v519
        %537 = vrot.lane.b32.xlu0 %v398, 88
        %v538 = vpop.permute.xlu0 %537
        %v540 = vsel %vm313, %v536, 0
        %v543 = vsel %vm404, %v538, 0
        %545 = vmatprep.subr.bf16.mxu0 0
        %546 = vmatpush1.bf16.msra.mxu0 %v543
        %547 = vmatprep.subr.bf16.mxu0 0
        %548 = vmatpush1.bf16.msra.mxu0 0
        %549 = vmatprep.subr.bf16.mxu0 0
        %550 = vmatpush1.bf16.msra.mxu0 0
        %551 = vmatprep.subr.bf16.mxu0 0
        %552 = vmatpush1.bf16.msra.mxu0 0
        %553 = vmatprep.subr.bf16.mxu0 0
        %554 = vmatpush1.bf16.msra.mxu0 0
        %555 = vmatprep.subr.bf16.mxu0 0
        %556 = vmatpush1.bf16.msra.mxu0 0
        %557 = vmatprep.subr.bf16.mxu0 0
        %558 = vmatpush1.bf16.msra.mxu0 0
        %559 = vmatprep.subr.bf16.mxu0 0
        %560 = vmatpush1.bf16.msra.mxu0 0
        %561 = vmatprep.subr.bf16.mxu0 0
        %562 = vmatpush1.bf16.msra.mxu0 0
        %563 = vmatprep.subr.bf16.mxu0 0
        %564 = vmatpush1.bf16.msra.mxu0 0
        %565 = vmatprep.subr.bf16.mxu0 0
        %566 = vmatpush1.bf16.msra.mxu0 0
        %567 = vmatprep.subr.bf16.mxu0 0
        %568 = vmatpush1.bf16.msra.mxu0 0
        %569 = vmatprep.subr.bf16.mxu0 0
        %570 = vmatpush1.bf16.msra.mxu0 0
        %571 = vmatprep.subr.bf16.mxu0 0
        %572 = vmatpush1.bf16.msra.mxu0 0
        %573 = vmatprep.subr.bf16.mxu0 0
        %574 = vmatpush1.bf16.msra.mxu0 0
        %575 = vmatprep.subr.bf16.mxu0 0
        %576 = vmatpush1.bf16.msra.mxu0 0
        %577 = vmatprep.mubr.bf16.mxu0 0
        %578 = vmatmul.mubr.bf16.gmra.mrb[0].mxu0 %v540
        %v579 = vpop.f32.mrb[0].mxu0
        %v580 = vadd.f32 0.0, %v579
        %v581 = vpop.f32.mrb[0].mxu0
        %v582 = vpop.f32.mrb[0].mxu0
        %v583 = vpop.f32.mrb[0].mxu0
        %584 = vdwg.mxu0
        %v585 = vadd.f32 %v535, %v580
        %586 = vst.msk [vmem:[%s528] sm:$0xff] %vm313, %v585
        %587 = vst.msk [vmem:[%s503] sm:$0xff] %vm386, %v508
        %588 = vrot.lane.b32.xlu0 %v309, 112
        %v589 = vpop.permute.xlu0 %588
        %590 = vrot.lane.b32.xlu0 %v398, 112
        %v591 = vpop.permute.xlu0 %590
        %v593 = vsel %vm313, %v589, 0
        %v596 = vsel %vm313, %v591, 0
        %598 = vmatprep.subr.bf16.mxu0 0
        %599 = vmatpush1.bf16.xpose.msra.mxu0 %v596
        %600 = vmatprep.subr.bf16.mxu0 0
        %601 = vmatpush1.bf16.xpose.msra.mxu0 0
        %602 = vmatprep.subr.bf16.mxu0 0
        %603 = vmatpush1.bf16.xpose.msra.mxu0 0
        %604 = vmatprep.subr.bf16.mxu0 0
        %605 = vmatpush1.bf16.xpose.msra.mxu0 0
        %606 = vmatprep.subr.bf16.mxu0 0
        %607 = vmatpush1.bf16.xpose.msra.mxu0 0
        %608 = vmatprep.subr.bf16.mxu0 0
        %609 = vmatpush1.bf16.xpose.msra.mxu0 0
        %610 = vmatprep.subr.bf16.mxu0 0
        %611 = vmatpush1.bf16.xpose.msra.mxu0 0
        %612 = vmatprep.subr.bf16.mxu0 0
        %613 = vmatpush1.bf16.xpose.msra.mxu0 0
        %614 = vmatprep.subr.bf16.mxu0 0
        %615 = vmatpush1.bf16.xpose.msra.mxu0 0
        %616 = vmatprep.subr.bf16.mxu0 0
        %617 = vmatpush1.bf16.xpose.msra.mxu0 0
        %618 = vmatprep.subr.bf16.mxu0 0
        %619 = vmatpush1.bf16.xpose.msra.mxu0 0
        %620 = vmatprep.subr.bf16.mxu0 0
        %621 = vmatpush1.bf16.xpose.msra.mxu0 0
        %622 = vmatprep.subr.bf16.mxu0 0
        %623 = vmatpush1.bf16.xpose.msra.mxu0 0
        %624 = vmatprep.subr.bf16.mxu0 0
        %625 = vmatpush1.bf16.xpose.msra.mxu0 0
        %626 = vmatprep.subr.bf16.mxu0 0
        %627 = vmatpush1.bf16.xpose.msra.mxu0 0
        %628 = vmatprep.subr.bf16.mxu0 0
        %629 = vmatpush1.bf16.xpose.msra.mxu0 0
        %630 = vmatprep.mubr.bf16.mxu0 0
        %631 = vmatmul.mubr.bf16.gmra.mrb[0].mxu0 %v593
        %v632 = vpop.f32.mrb[0].mxu0
        %v633 = vadd.f32 0.0, %v632
        %v634 = vpop.f32.mrb[0].mxu0
        %v635 = vpop.f32.mrb[0].mxu0
        %v636 = vpop.f32.mrb[0].mxu0
        %637 = vdwg.mxu0
        %v638 = vsel %vm362, %v633, -1e+30
        %s639 = scalar_lea.vmem [#allocation2], 16
        %v640 = vld [vmem:[%s639] sm:$0xff]
        %v641 = vsel %vm313, %v638, -inf
        %642 = vmax.xlane.f32.xlu0 %v641
        %v643 = vpop.xlane.xlu0 %642
        %v644 = vmax.f32 %v640, %v643
        %v645 = vsub.f32 %v640, %v644
        %v646 = vmul.f32 %v645, 1.442695
        %v647 = vpow.pop %v646
        %649 = vset.pattern.permute.xlu0 0
        %650 = vperm.xlu0 %649, %v644
        %v651 = vpop.permute.xlu0 %650
        %v653 = vsub.f32 %v638, %v651
        %v654 = vmul.f32 %v653, 1.442695
        %v655 = vpow.pop %v654
        %s656 = scalar_lea.vmem [#allocation3], 16
        %v657 = vld [vmem:[%s656] sm:$0xff]
        %v658 = vmul.f32 %v647, %v657
        %v659 = vsel %vm313, %v655, 0.0
        %660 = vadd.xlane.f32.xlu0 %v659
        %v661 = vpop.xlane.xlu0 %660
        %v662 = vadd.f32 %v658, %v661
        %663 = vst.msk [vmem:[%s656] sm:$0xff] %vm386, %v662
        %s664 = scalar_lea.vmem [#allocation4], 16
        %v665 = vld [vmem:[%s664] sm:$0xff]
        %667 = vset.pattern.permute.xlu0 0
        %668 = vperm.xlu0 %667, %v647
        %v669 = vpop.permute.xlu0 %668
        %v671 = vmul.f32 %v669, %v665
        %v672 = vpack.c.bf16 %v655, %v655
        %673 = vrot.lane.b32.xlu0 %v398, 80
        %v674 = vpop.permute.xlu0 %673
        %v676 = vsel %vm313, %v672, 0
        %v679 = vsel %vm404, %v674, 0
        %681 = vmatprep.subr.bf16.mxu0 0
        %682 = vmatpush1.bf16.msra.mxu0 %v679
        %683 = vmatprep.subr.bf16.mxu0 0
        %684 = vmatpush1.bf16.msra.mxu0 0
        %685 = vmatprep.subr.bf16.mxu0 0
        %686 = vmatpush1.bf16.msra.mxu0 0
        %687 = vmatprep.subr.bf16.mxu0 0
        %688 = vmatpush1.bf16.msra.mxu0 0
        %689 = vmatprep.subr.bf16.mxu0 0
        %690 = vmatpush1.bf16.msra.mxu0 0
        %691 = vmatprep.subr.bf16.mxu0 0
        %692 = vmatpush1.bf16.msra.mxu0 0
        %693 = vmatprep.subr.bf16.mxu0 0
        %694 = vmatpush1.bf16.msra.mxu0 0
        %695 = vmatprep.subr.bf16.mxu0 0
        %696 = vmatpush1.bf16.msra.mxu0 0
        %697 = vmatprep.subr.bf16.mxu0 0
        %698 = vmatpush1.bf16.msra.mxu0 0
        %699 = vmatprep.subr.bf16.mxu0 0
        %700 = vmatpush1.bf16.msra.mxu0 0
        %701 = vmatprep.subr.bf16.mxu0 0
        %702 = vmatpush1.bf16.msra.mxu0 0
        %703 = vmatprep.subr.bf16.mxu0 0
        %704 = vmatpush1.bf16.msra.mxu0 0
        %705 = vmatprep.subr.bf16.mxu0 0
        %706 = vmatpush1.bf16.msra.mxu0 0
        %707 = vmatprep.subr.bf16.mxu0 0
        %708 = vmatpush1.bf16.msra.mxu0 0
        %709 = vmatprep.subr.bf16.mxu0 0
        %710 = vmatpush1.bf16.msra.mxu0 0
        %711 = vmatprep.subr.bf16.mxu0 0
        %712 = vmatpush1.bf16.msra.mxu0 0
        %713 = vmatprep.mubr.bf16.mxu0 0
        %714 = vmatmul.mubr.bf16.gmra.mrb[0].mxu0 %v676
        %v715 = vpop.f32.mrb[0].mxu0
        %v716 = vadd.f32 0.0, %v715
        %v717 = vpop.f32.mrb[0].mxu0
        %v718 = vpop.f32.mrb[0].mxu0
        %v719 = vpop.f32.mrb[0].mxu0
        %720 = vdwg.mxu0
        %v721 = vadd.f32 %v671, %v716
        %722 = vst.msk [vmem:[%s664] sm:$0xff] %vm313, %v721
        %723 = vst.msk [vmem:[%s639] sm:$0xff] %vm386, %v644
        %724 = vrot.lane.b32.xlu0 %v309, 104
        %v725 = vpop.permute.xlu0 %724
        %726 = vrot.lane.b32.xlu0 %v398, 104
        %v727 = vpop.permute.xlu0 %726
        %v729 = vsel %vm313, %v725, 0
        %v732 = vsel %vm313, %v727, 0
        %734 = vmatprep.subr.bf16.mxu0 0
        %735 = vmatpush1.bf16.xpose.msra.mxu0 %v732
        %736 = vmatprep.subr.bf16.mxu0 0
        %737 = vmatpush1.bf16.xpose.msra.mxu0 0
        %738 = vmatprep.subr.bf16.mxu0 0
        %739 = vmatpush1.bf16.xpose.msra.mxu0 0
        %740 = vmatprep.subr.bf16.mxu0 0
        %741 = vmatpush1.bf16.xpose.msra.mxu0 0
        %742 = vmatprep.subr.bf16.mxu0 0
        %743 = vmatpush1.bf16.xpose.msra.mxu0 0
        %744 = vmatprep.subr.bf16.mxu0 0
        %745 = vmatpush1.bf16.xpose.msra.mxu0 0
        %746 = vmatprep.subr.bf16.mxu0 0
        %747 = vmatpush1.bf16.xpose.msra.mxu0 0
        %748 = vmatprep.subr.bf16.mxu0 0
        %749 = vmatpush1.bf16.xpose.msra.mxu0 0
        %750 = vmatprep.subr.bf16.mxu0 0
        %751 = vmatpush1.bf16.xpose.msra.mxu0 0
        %752 = vmatprep.subr.bf16.mxu0 0
        %753 = vmatpush1.bf16.xpose.msra.mxu0 0
        %754 = vmatprep.subr.bf16.mxu0 0
        %755 = vmatpush1.bf16.xpose.msra.mxu0 0
        %756 = vmatprep.subr.bf16.mxu0 0
        %757 = vmatpush1.bf16.xpose.msra.mxu0 0
        %758 = vmatprep.subr.bf16.mxu0 0
        %759 = vmatpush1.bf16.xpose.msra.mxu0 0
        %760 = vmatprep.subr.bf16.mxu0 0
        %761 = vmatpush1.bf16.xpose.msra.mxu0 0
        %762 = vmatprep.subr.bf16.mxu0 0
        %763 = vmatpush1.bf16.xpose.msra.mxu0 0
        %764 = vmatprep.subr.bf16.mxu0 0
        %765 = vmatpush1.bf16.xpose.msra.mxu0 0
        %766 = vmatprep.mubr.bf16.mxu0 0
        %767 = vmatmul.mubr.bf16.gmra.mrb[0].mxu0 %v729
        %v768 = vpop.f32.mrb[0].mxu0
        %v769 = vadd.f32 0.0, %v768
        %v770 = vpop.f32.mrb[0].mxu0
        %v771 = vpop.f32.mrb[0].mxu0
        %v772 = vpop.f32.mrb[0].mxu0
        %773 = vdwg.mxu0
        %v774 = vsel %vm362, %v769, -1e+30
        %s775 = scalar_lea.vmem [#allocation2], 24
        %v776 = vld [vmem:[%s775] sm:$0xff]
        %v777 = vsel %vm313, %v774, -inf
        %778 = vmax.xlane.f32.xlu0 %v777
        %v779 = vpop.xlane.xlu0 %778
        %v780 = vmax.f32 %v776, %v779
        %v781 = vsub.f32 %v776, %v780
        %v782 = vmul.f32 %v781, 1.442695
        %v783 = vpow.pop %v782
        %785 = vset.pattern.permute.xlu0 0
        %786 = vperm.xlu0 %785, %v780
        %v787 = vpop.permute.xlu0 %786
        %v789 = vsub.f32 %v774, %v787
        %v790 = vmul.f32 %v789, 1.442695
        %v791 = vpow.pop %v790
        %s792 = scalar_lea.vmem [#allocation3], 24
        %v793 = vld [vmem:[%s792] sm:$0xff]
        %v794 = vmul.f32 %v783, %v793
        %v795 = vsel %vm313, %v791, 0.0
        %796 = vadd.xlane.f32.xlu0 %v795
        %v797 = vpop.xlane.xlu0 %796
        %v798 = vadd.f32 %v794, %v797
        %799 = vst.msk [vmem:[%s792] sm:$0xff] %vm386, %v798
        %s800 = scalar_lea.vmem [#allocation4], 24
        %v801 = vld [vmem:[%s800] sm:$0xff]
        %803 = vset.pattern.permute.xlu0 0
        %804 = vperm.xlu0 %803, %v783
        %v805 = vpop.permute.xlu0 %804
        %v807 = vmul.f32 %v805, %v801
        %v808 = vpack.c.bf16 %v791, %v791
        %809 = vrot.lane.b32.xlu0 %v398, 72
        %v810 = vpop.permute.xlu0 %809
        %v812 = vsel %vm313, %v808, 0
        %v815 = vsel %vm404, %v810, 0
        %817 = vmatprep.subr.bf16.mxu0 0
        %818 = vmatpush1.bf16.msra.mxu0 %v815
        %819 = vmatprep.subr.bf16.mxu0 0
        %820 = vmatpush1.bf16.msra.mxu0 0
        %821 = vmatprep.subr.bf16.mxu0 0
        %822 = vmatpush1.bf16.msra.mxu0 0
        %823 = vmatprep.subr.bf16.mxu0 0
        %824 = vmatpush1.bf16.msra.mxu0 0
        %825 = vmatprep.subr.bf16.mxu0 0
        %826 = vmatpush1.bf16.msra.mxu0 0
        %827 = vmatprep.subr.bf16.mxu0 0
        %828 = vmatpush1.bf16.msra.mxu0 0
        %829 = vmatprep.subr.bf16.mxu0 0
        %830 = vmatpush1.bf16.msra.mxu0 0
        %831 = vmatprep.subr.bf16.mxu0 0
        %832 = vmatpush1.bf16.msra.mxu0 0
        %833 = vmatprep.subr.bf16.mxu0 0
        %834 = vmatpush1.bf16.msra.mxu0 0
        %835 = vmatprep.subr.bf16.mxu0 0
        %836 = vmatpush1.bf16.msra.mxu0 0
        %837 = vmatprep.subr.bf16.mxu0 0
        %838 = vmatpush1.bf16.msra.mxu0 0
        %839 = vmatprep.subr.bf16.mxu0 0
        %840 = vmatpush1.bf16.msra.mxu0 0
        %841 = vmatprep.subr.bf16.mxu0 0
        %842 = vmatpush1.bf16.msra.mxu0 0
        %843 = vmatprep.subr.bf16.mxu0 0
        %844 = vmatpush1.bf16.msra.mxu0 0
        %845 = vmatprep.subr.bf16.mxu0 0
        %846 = vmatpush1.bf16.msra.mxu0 0
        %847 = vmatprep.subr.bf16.mxu0 0
        %848 = vmatpush1.bf16.msra.mxu0 0
        %849 = vmatprep.mubr.bf16.mxu0 0
        %850 = vmatmul.mubr.bf16.gmra.mrb[0].mxu0 %v812
        %v851 = vpop.f32.mrb[0].mxu0
        %v852 = vadd.f32 0.0, %v851
        %v853 = vpop.f32.mrb[0].mxu0
        %v854 = vpop.f32.mrb[0].mxu0
        %v855 = vpop.f32.mrb[0].mxu0
        %856 = vdwg.mxu0
        %v857 = vadd.f32 %v807, %v852
        %858 = vst.msk [vmem:[%s800] sm:$0xff] %vm313, %v857
        %859 = vst.msk [vmem:[%s775] sm:$0xff] %vm386, %v780
      $region40: #{decoder_forward.29} parent=31 // pred_fallthru
        _
      // Predicated region
      $region41: #{decoder_forward.29} parent=31 // pred_check
        %p860 = pneg %p281
      $region42: #{decoder_forward.29} parent=31 // pred_check_branch
        %862 = sbr.rel (%p860) target = $region44
      $region43: #{decoder_forward.29} parent=31 // pred_region
        %v863 = vld [vmem:[#allocation3] sm:$0xff]
        %v864 = vrcp.pop %v863
        %v865 = vld [vmem:[#allocation4] sm:$0xff]
        %867 = vset.pattern.permute.xlu0 0
        %868 = vperm.xlu0 %867, %v864
        %v869 = vpop.permute.xlu0 %868
        %v871 = vmul.f32 %v865, %v869
        %s872 = scalar_lea.vmem [#allocation3], 8
        %v873 = vld [vmem:[%s872] sm:$0xff]
        %v874 = vrcp.pop %v873
        %s875 = scalar_lea.vmem [#allocation4], 8
        %v876 = vld [vmem:[%s875] sm:$0xff]
        %878 = vset.pattern.permute.xlu0 0
        %879 = vperm.xlu0 %878, %v874
        %v880 = vpop.permute.xlu0 %879
        %v882 = vmul.f32 %v876, %v880
        %s883 = scalar_lea.vmem [#allocation3], 16
        %v884 = vld [vmem:[%s883] sm:$0xff]
        %v885 = vrcp.pop %v884
        %s886 = scalar_lea.vmem [#allocation4], 16
        %v887 = vld [vmem:[%s886] sm:$0xff]
        %889 = vset.pattern.permute.xlu0 0
        %890 = vperm.xlu0 %889, %v885
        %v891 = vpop.permute.xlu0 %890
        %v893 = vmul.f32 %v887, %v891
        %s894 = scalar_lea.vmem [#allocation3], 24
        %v895 = vld [vmem:[%s894] sm:$0xff]
        %v896 = vrcp.pop %v895
        %s897 = scalar_lea.vmem [#allocation4], 24
        %v898 = vld [vmem:[%s897] sm:$0xff]
        %900 = vset.pattern.permute.xlu0 0
        %901 = vperm.xlu0 %900, %v896
        %v902 = vpop.permute.xlu0 %901
        %v904 = vmul.f32 %v898, %v902
        %906 = vrot.lane.b32.xlu0 %v882, 8
        %v907 = vpop.permute.xlu0 %906
        %910 = vrot.lane.b32.xlu0 %v893, 16
        %v911 = vpop.permute.xlu0 %910
        %914 = vrot.lane.b32.xlu0 %v904, 24
        %v915 = vpop.permute.xlu0 %914
        %vm917 = vcmask 64512
        %v918 = vsel %vm917, %v871, %v907
        %vm919 = vcmask 130048
        %v920 = vsel %vm919, %v918, %v911
        %vm921 = vcmask 195584
        %v922 = vsel %vm921, %v920, %v915
        %v923 = vpack.c.bf16 %v922, %v922
        %vm924 = vcmask 257024
        %925 = vst.msk [vmem:[%s277] sm:$0xf] %vm924, %v923
      $region44: #{decoder_forward.29} parent=31 // pred_fallthru
        _
      %p926 = scmp.lt.s32.totalorder %s26, 1
      %s927 = scalar_select %p926, %s26, 1
      %p928 = scmp.lt.s32.totalorder %s27, 0
      %s929 = scalar_select %p928, %s27, 0
      %s930 = sadd.s32 %s929, %s927
      %s931 = smul.addr %s930, 4
      %s932 = scalar_lea.vmem %s4, %s931
      // Predicated region
      $region45: #{decoder_forward.29} parent=31 // pred_check
        %p933 = pneg %p146
      $region46: #{decoder_forward.29} parent=31 // pred_check_branch
        %935 = sbr.rel (%p933) target = $region48
      $region47: #{decoder_forward.29} parent=31 // pred_region
        _
      $region48: #{decoder_forward.29} parent=31 // pred_fallthru
        _
    $region32: #{decoder_forward.29} parent=5 // pred_fallthru
      _
    %p936 = scmp.le.s32.totalorder 2, %s16
    // Predicated region
    $region49: #{decoder_forward.29} parent=5 // pred_check
      %p937 = pneg %p936
    $region50: #{decoder_forward.29} parent=5 // pred_check_branch
      %939 = sbr.rel (%p937) target = $region52
    $region51: #{decoder_forward.29} parent=5 // pred_region
      %s940 = ssub.s32 %s16, 2
      // Predicated region
      $region53: #{decoder_forward.29} parent=51 // pred_check
        %p941 = pneg %p152
      $region54: #{decoder_forward.29} parent=51 // pred_check_branch
        %943 = sbr.rel (%p941) target = $region56
      $region55: #{decoder_forward.29} parent=51 // pred_region
        %p944 = scmp.lt.s32.totalorder %s29, 1
        %s945 = scalar_select %p944, %s29, 1
        %p946 = scmp.lt.s32.totalorder %s30, 0
        %s947 = scalar_select %p946, %s30, 0
        %s948 = sadd.s32 %s947, %s945
        %s949 = smul.addr %s948, 4
        %s950 = scalar_lea.vmem %s4, %s949
      $region56: #{decoder_forward.29} parent=51 // pred_fallthru
        _
    $region52: #{decoder_forward.29} parent=5 // pred_fallthru
      _
  $region6: #{decoder_forward.29} parent=0 // loop_footer
    %s20 = sadd.s32 1, %s16
  $region7: #{decoder_forward.29} parent=0 // loop_footer_branch
    %15 = sbr.rel target = $region3
  $region8: #{decoder_forward.29} parent=0 // loop_exit
    _

// kernel: decoder_forward.37
$region0: #{decoder_forward.37}
  #allocation0 [shape = 'u32[]', space=smem, size = 0x4, offset = 0x4, fixed_abs, tag = 'smem constant byte address 0x4 - core index']
  #allocation1 [shape = 'u32[144,128]{1,0:T(1,128)}', space=vmem, size = 0x12000, scoped, tag = 'internal scratch']
  #allocation2 [shape = 'f32[16,64]{1,0:T(8,128)}', space=vmem, size = 0x2000, scoped, tag = 'scratch operand']
  %s0 = inlined_call_operand.vmem [shape: bf16[16,32], index: 0, kind: input, shape index: {}]
  %s1 = inlined_call_operand.vmem [shape: bf16[32,64], index: 1, kind: input, shape index: {}]
  %s2 = inlined_call_operand.vmem [shape: f32[1,64], index: 2, kind: input, shape index: {}]
  %s3 = inlined_call_operand.vmem [shape: bf16[16,64], index: 3, kind: output, shape index: {}]
  %s4 = sld [smem:[#allocation0]]
  $region30: #{decoder_forward.37} parent=0
    _
  %s6 = ssub.s32 1, %s4
  %s7 = scalar_select 0, %s6, %s4
  // Predicated region
  $region2: #{decoder_forward.37} parent=0 // pred_check
    _
  $region3: #{decoder_forward.37} parent=0 // pred_check_branch
    %9 = sbr.rel (0) target = $region5
  $region4: #{decoder_forward.37} parent=0 // pred_region
    _
  $region5: #{decoder_forward.37} parent=0 // pred_fallthru
    _
  // Predicated region
  $region6: #{decoder_forward.37} parent=0 // pred_check
    _
  $region7: #{decoder_forward.37} parent=0 // pred_check_branch
    %11 = sbr.rel (0) target = $region9
  $region8: #{decoder_forward.37} parent=0 // pred_region
    _
  $region9: #{decoder_forward.37} parent=0 // pred_fallthru
    _
  // Predicated region
  $region10: #{decoder_forward.37} parent=0 // pred_check
    _
  $region11: #{decoder_forward.37} parent=0 // pred_check_branch
    %13 = sbr.rel (0) target = $region13
  $region12: #{decoder_forward.37} parent=0 // pred_region
    _
  $region13: #{decoder_forward.37} parent=0 // pred_fallthru
    _
  %p15 = scmp.eq.s32.totalorder 0, 0
  // Predicated region
  $region14: #{decoder_forward.37} parent=0 // pred_check
    %p16 = pneg %p15
  $region15: #{decoder_forward.37} parent=0 // pred_check_branch
    %18 = sbr.rel (%p16) target = $region17
  $region16: #{decoder_forward.37} parent=0 // pred_region
    %vm19 = vcmask 523264
    %20 = vst.msk [vmem:[#allocation2] sm:$0xff] %vm19, 0.0
    %21 = vst.msk [vmem:[#allocation2 + $0x8] sm:$0xff] %vm19, 0.0
  $region17: #{decoder_forward.37} parent=0 // pred_fallthru
    _
  %v22 = vld [vmem:[#allocation2] sm:$0xff]
  %v23 = vld [vmem:[#allocation2 + $0x8] sm:$0xff]
  %v24 = vld [vmem:[%s0] sm:$0xf]
  %v25 = vld [vmem:[%s0 + $0x4] sm:$0xf]
  %v26 = vld [vmem:[%s1] sm:$0xf]
  %v27 = vld [vmem:[%s1 + $0x4] sm:$0xf]
  %v28 = vld [vmem:[%s1 + $0x8] sm:$0xf]
  %v29 = vld [vmem:[%s1 + $0xc] sm:$0xf]
  %v32 = vunpack.c.l.b16 %v24
  %v33 = vunpack.c.l.b16 %v25
  %v34 = vpack.c.b16 %v33, %v32
  %v39 = vunpack.c.l.b16 %v26
  %v40 = vunpack.c.l.b16 %v27
  %v41 = vunpack.c.l.b16 %v28
  %v42 = vunpack.c.l.b16 %v29
  %v43 = vpack.c.b16 %v40, %v39
  %v44 = vpack.c.b16 %v42, %v41
  %vm47 = vcmask 261120
  %v49 = vsel %vm47, %v34, 0
  %51 = vmatprep.subr.bf16.mxu0 0
  %52 = vmatpush1.bf16.msra.mxu0 %v43
  %53 = vmatprep.subr.bf16.mxu0 0
  %54 = vmatpush1.bf16.msra.mxu0 %v44
  %55 = vmatprep.subr.bf16.mxu0 0
  %56 = vmatpush1.bf16.msra.mxu0 0
  %57 = vmatprep.subr.bf16.mxu0 0
  %58 = vmatpush1.bf16.msra.mxu0 0
  %59 = vmatprep.subr.bf16.mxu0 0
  %60 = vmatpush1.bf16.msra.mxu0 0
  %61 = vmatprep.subr.bf16.mxu0 0
  %62 = vmatpush1.bf16.msra.mxu0 0
  %63 = vmatprep.subr.bf16.mxu0 0
  %64 = vmatpush1.bf16.msra.mxu0 0
  %65 = vmatprep.subr.bf16.mxu0 0
  %66 = vmatpush1.bf16.msra.mxu0 0
  %67 = vmatprep.subr.bf16.mxu0 0
  %68 = vmatpush1.bf16.msra.mxu0 0
  %69 = vmatprep.subr.bf16.mxu0 0
  %70 = vmatpush1.bf16.msra.mxu0 0
  %71 = vmatprep.subr.bf16.mxu0 0
  %72 = vmatpush1.bf16.msra.mxu0 0
  %73 = vmatprep.subr.bf16.mxu0 0
  %74 = vmatpush1.bf16.msra.mxu0 0
  %75 = vmatprep.subr.bf16.mxu0 0
  %76 = vmatpush1.bf16.msra.mxu0 0
  %77 = vmatprep.subr.bf16.mxu0 0
  %78 = vmatpush1.bf16.msra.mxu0 0
  %79 = vmatprep.subr.bf16.mxu0 0
  %80 = vmatpush1.bf16.msra.mxu0 0
  %81 = vmatprep.subr.bf16.mxu0 0
  %82 = vmatpush1.bf16.msra.mxu0 0
  %83 = vmatprep.mubr.bf16.mxu0 0
  %84 = vmatmul.mubr.bf16.gmra.mrb[0].mxu0 %v49
  %v85 = vpop.f32.mrb[0].mxu0
  %v86 = vadd.f32 0.0, %v85
  %v87 = vpop.f32.mrb[0].mxu0
  %v88 = vpop.f32.mrb[0].mxu0
  %v89 = vadd.f32 0.0, %v88
  %v90 = vpop.f32.mrb[0].mxu0
  %91 = vdwg.mxu0
  %v92 = vadd.f32 %v22, %v86
  %v93 = vadd.f32 %v23, %v89
  %vm94 = vcmask 523264
  %95 = vst.msk [vmem:[#allocation2] sm:$0xff] %vm94, %v92
  %96 = vst.msk [vmem:[#allocation2 + $0x8] sm:$0xff] %vm94, %v93
  // Predicated region
  $region18: #{decoder_forward.37} parent=0 // pred_check
    %p97 = pneg %p15
  $region19: #{decoder_forward.37} parent=0 // pred_check_branch
    %99 = sbr.rel (%p97) target = $region21
  $region20: #{decoder_forward.37} parent=0 // pred_region
    %v100 = vld [vmem:[#allocation2] sm:$0xff]
    %v101 = vld [vmem:[#allocation2 + $0x8] sm:$0xff]
    %v102 = vld [vmem:[%s2] sm:$0x1]
    %v104 = vlaneseq
    %v105 = vshrl.u32 %v104, 7
    %v106 = vsub.s32 0, %v105
    %v107 = vrot.slane %v102, %v106
    %v109 = vadd.f32 %v100, %v107
    %v110 = vadd.f32 %v101, %v107
    %v111 = vmax.f32 %v109, 0.0
    %v112 = vmax.f32 %v110, 0.0
    %v113 = vpack.c.bf16 %v112, %v111
    %v115 = vunpack.c.l.b16 %v113
    %v116 = vunpack.c.h.b16 %v113
    %v117 = vpack.c.b16 %v115, %v115
    %v118 = vpack.c.b16 %v116, %v116
    %vm121 = vcmask 519168
    %122 = vst.msk [vmem:[%s3] sm:$0xf] %vm121, %v117
    %123 = vst.msk [vmem:[%s3 + $0x4] sm:$0xf] %vm121, %v118
  $region21: #{decoder_forward.37} parent=0 // pred_fallthru
    _
  // Predicated region
  $region22: #{decoder_forward.37} parent=0 // pred_check
    _
  $region23: #{decoder_forward.37} parent=0 // pred_check_branch
    %125 = sbr.rel (0) target = $region25
  $region24: #{decoder_forward.37} parent=0 // pred_region
    _
  $region25: #{decoder_forward.37} parent=0 // pred_fallthru
    _
  // Predicated region
  $region26: #{decoder_forward.37} parent=0 // pred_check
    _
  $region27: #{decoder_forward.37} parent=0 // pred_check_branch
    %127 = sbr.rel (0) target = $region29
  $region28: #{decoder_forward.37} parent=0 // pred_region
    _
  $region29: #{decoder_forward.37} parent=0 // pred_fallthru
    _

// kernel: decoder_forward.38
$region0: #{decoder_forward.38}
  #allocation0 [shape = 'u32[]', space=smem, size = 0x4, offset = 0x4, fixed_abs, tag = 'smem constant byte address 0x4 - core index']
  #allocation1 [shape = 'u32[144,128]{1,0:T(1,128)}', space=vmem, size = 0x12000, scoped, tag = 'internal scratch']
  #allocation2 [shape = 'f32[16,32]{1,0:T(8,128)}', space=vmem, size = 0x2000, scoped, tag = 'scratch operand']
  %s0 = inlined_call_operand.vmem [shape: bf16[16,64], index: 0, kind: input, shape index: {}]
  %s1 = inlined_call_operand.vmem [shape: bf16[64,32], index: 1, kind: input, shape index: {}]
  %s2 = inlined_call_operand.vmem [shape: f32[1,32], index: 2, kind: input, shape index: {}]
  %s3 = inlined_call_operand.vmem [shape: f32[16,32], index: 3, kind: output, shape index: {}]
  %s4 = sld [smem:[#allocation0]]
  $region30: #{decoder_forward.38} parent=0
    _
  %s6 = ssub.s32 1, %s4
  %s7 = scalar_select 0, %s6, %s4
  // Predicated region
  $region2: #{decoder_forward.38} parent=0 // pred_check
    _
  $region3: #{decoder_forward.38} parent=0 // pred_check_branch
    %9 = sbr.rel (0) target = $region5
  $region4: #{decoder_forward.38} parent=0 // pred_region
    _
  $region5: #{decoder_forward.38} parent=0 // pred_fallthru
    _
  // Predicated region
  $region6: #{decoder_forward.38} parent=0 // pred_check
    _
  $region7: #{decoder_forward.38} parent=0 // pred_check_branch
    %11 = sbr.rel (0) target = $region9
  $region8: #{decoder_forward.38} parent=0 // pred_region
    _
  $region9: #{decoder_forward.38} parent=0 // pred_fallthru
    _
  // Predicated region
  $region10: #{decoder_forward.38} parent=0 // pred_check
    _
  $region11: #{decoder_forward.38} parent=0 // pred_check_branch
    %13 = sbr.rel (0) target = $region13
  $region12: #{decoder_forward.38} parent=0 // pred_region
    _
  $region13: #{decoder_forward.38} parent=0 // pred_fallthru
    _
  %p15 = scmp.eq.s32.totalorder 0, 0
  // Predicated region
  $region14: #{decoder_forward.38} parent=0 // pred_check
    %p16 = pneg %p15
  $region15: #{decoder_forward.38} parent=0 // pred_check_branch
    %18 = sbr.rel (%p16) target = $region17
  $region16: #{decoder_forward.38} parent=0 // pred_region
    %vm19 = vcmask 261120
    %20 = vst.msk [vmem:[#allocation2] sm:$0xff] %vm19, 0.0
    %21 = vst.msk [vmem:[#allocation2 + $0x8] sm:$0xff] %vm19, 0.0
  $region17: #{decoder_forward.38} parent=0 // pred_fallthru
    _
  %v22 = vld [vmem:[#allocation2] sm:$0xff]
  %v23 = vld [vmem:[#allocation2 + $0x8] sm:$0xff]
  %v24 = vld [vmem:[%s0] sm:$0xf]
  %v25 = vld [vmem:[%s0 + $0x4] sm:$0xf]
  %v26 = vld [vmem:[%s1] sm:$0xf]
  %v27 = vld [vmem:[%s1 + $0x4] sm:$0xf]
  %v28 = vld [vmem:[%s1 + $0x8] sm:$0xf]
  %v29 = vld [vmem:[%s1 + $0xc] sm:$0xf]
  %v30 = vld [vmem:[%s1 + $0x10] sm:$0xf]
  %v31 = vld [vmem:[%s1 + $0x14] sm:$0xf]
  %v32 = vld [vmem:[%s1 + $0x18] sm:$0xf]
  %v33 = vld [vmem:[%s1 + $0x1c] sm:$0xf]
  %v36 = vunpack.c.l.b16 %v24
  %v37 = vunpack.c.l.b16 %v25
  %v38 = vpack.c.b16 %v37, %v36
  %v47 = vunpack.c.l.b16 %v26
  %v48 = vunpack.c.l.b16 %v27
  %v49 = vunpack.c.l.b16 %v28
  %v50 = vunpack.c.l.b16 %v29
  %v51 = vunpack.c.l.b16 %v30
  %v52 = vunpack.c.l.b16 %v31
  %v53 = vunpack.c.l.b16 %v32
  %v54 = vunpack.c.l.b16 %v33
  %v55 = vpack.c.b16 %v48, %v47
  %v56 = vpack.c.b16 %v50, %v49
  %v57 = vpack.c.b16 %v52, %v51
  %v58 = vpack.c.b16 %v54, %v53
  %vm63 = vcmask 523264
  %v65 = vsel %vm63, %v38, 0
  %67 = vmatprep.subr.bf16.mxu0 0
  %68 = vmatpush1.bf16.msra.mxu0 %v55
  %69 = vmatprep.subr.bf16.mxu0 0
  %70 = vmatpush1.bf16.msra.mxu0 %v56
  %71 = vmatprep.subr.bf16.mxu0 0
  %72 = vmatpush1.bf16.msra.mxu0 %v57
  %73 = vmatprep.subr.bf16.mxu0 0
  %74 = vmatpush1.bf16.msra.mxu0 %v58
  %75 = vmatprep.subr.bf16.mxu0 0
  %76 = vmatpush1.bf16.msra.mxu0 0
  %77 = vmatprep.subr.bf16.mxu0 0
  %78 = vmatpush1.bf16.msra.mxu0 0
  %79 = vmatprep.subr.bf16.mxu0 0
  %80 = vmatpush1.bf16.msra.mxu0 0
  %81 = vmatprep.subr.bf16.mxu0 0
  %82 = vmatpush1.bf16.msra.mxu0 0
  %83 = vmatprep.subr.bf16.mxu0 0
  %84 = vmatpush1.bf16.msra.mxu0 0
  %85 = vmatprep.subr.bf16.mxu0 0
  %86 = vmatpush1.bf16.msra.mxu0 0
  %87 = vmatprep.subr.bf16.mxu0 0
  %88 = vmatpush1.bf16.msra.mxu0 0
  %89 = vmatprep.subr.bf16.mxu0 0
  %90 = vmatpush1.bf16.msra.mxu0 0
  %91 = vmatprep.subr.bf16.mxu0 0
  %92 = vmatpush1.bf16.msra.mxu0 0
  %93 = vmatprep.subr.bf16.mxu0 0
  %94 = vmatpush1.bf16.msra.mxu0 0
  %95 = vmatprep.subr.bf16.mxu0 0
  %96 = vmatpush1.bf16.msra.mxu0 0
  %97 = vmatprep.subr.bf16.mxu0 0
  %98 = vmatpush1.bf16.msra.mxu0 0
  %99 = vmatprep.mubr.bf16.mxu0 0
  %100 = vmatmul.mubr.bf16.gmra.mrb[0].mxu0 %v65
  %v101 = vpop.f32.mrb[0].mxu0
  %v102 = vadd.f32 0.0, %v101
  %v103 = vpop.f32.mrb[0].mxu0
  %v104 = vpop.f32.mrb[0].mxu0
  %v105 = vadd.f32 0.0, %v104
  %v106 = vpop.f32.mrb[0].mxu0
  %107 = vdwg.mxu0
  %v108 = vadd.f32 %v22, %v102
  %v109 = vadd.f32 %v23, %v105
  %vm110 = vcmask 261120
  %111 = vst.msk [vmem:[#allocation2] sm:$0xff] %vm110, %v108
  %112 = vst.msk [vmem:[#allocation2 + $0x8] sm:$0xff] %vm110, %v109
  // Predicated region
  $region18: #{decoder_forward.38} parent=0 // pred_check
    %p113 = pneg %p15
  $region19: #{decoder_forward.38} parent=0 // pred_check_branch
    %115 = sbr.rel (%p113) target = $region21
  $region20: #{decoder_forward.38} parent=0 // pred_region
    %v116 = vld [vmem:[#allocation2] sm:$0xff]
    %v117 = vld [vmem:[#allocation2 + $0x8] sm:$0xff]
    %v118 = vld [vmem:[%s2] sm:$0x1]
    %v120 = vlaneseq
    %v121 = vshrl.u32 %v120, 7
    %v122 = vsub.s32 0, %v121
    %v123 = vrot.slane %v118, %v122
    %v125 = vadd.f32 %v116, %v123
    %v126 = vadd.f32 %v117, %v123
    %127 = vst.msk [vmem:[%s3] sm:$0xff] %vm110, %v125
    %128 = vst.msk [vmem:[%s3 + $0x8] sm:$0xff] %vm110, %v126
  $region21: #{decoder_forward.38} parent=0 // pred_fallthru
    _
  // Predicated region
  $region22: #{decoder_forward.38} parent=0 // pred_check
    _
  $region23: #{decoder_forward.38} parent=0 // pred_check_branch
    %130 = sbr.rel (0) target = $region25
  $region24: #{decoder_forward.38} parent=0 // pred_region
    _
  $region25: #{decoder_forward.38} parent=0 // pred_fallthru
    _
  // Predicated region
  $region26: #{decoder_forward.38} parent=0 // pred_check
    _
  $region27: #{decoder_forward.38} parent=0 // pred_check_branch
    %132 = sbr.rel (0) target = $region29
  $region28: #{decoder_forward.38} parent=0 // pred_region
    _
  $region29: #{decoder_forward.38} parent=0 // pred_fallthru
    _

// kernel: decoder_forward.31
$region0: #{decoder_forward.31}
  #allocation0 [shape = 'u32[]', space=smem, size = 0x4, offset = 0x4, fixed_abs, tag = 'smem constant byte address 0x4 - core index']
  #allocation1 [shape = 'u32[144,128]{1,0:T(1,128)}', space=vmem, size = 0x12000, scoped, tag = 'internal scratch']
  %s0 = inlined_call_operand.vmem [shape: f32[16,32], index: 0, kind: input, shape index: {}]
  %s1 = inlined_call_operand.vmem [shape: f32[16,32], index: 1, kind: input, shape index: {}]
  %s2 = inlined_call_operand.vmem [shape: f32[1,32], index: 2, kind: input, shape index: {}]
  %s3 = inlined_call_operand.vmem [shape: f32[1,32], index: 3, kind: input, shape index: {}]
  %s4 = inlined_call_operand.vmem [shape: f32[16,32], index: 4, kind: output, shape index: {0}]
  %s5 = inlined_call_operand.vmem [shape: bf16[16,32], index: 5, kind: output, shape index: {1}]
  %6 = xla_tuple %s4, %s5
  %s7 = sld [smem:[#allocation0]]
  $region34: #{decoder_forward.31} parent=0
    _
  %s9 = ssub.s32 1, %s7
  %s10 = scalar_select 0, %s9, %s7
  // Predicated region
  $region2: #{decoder_forward.31} parent=0 // pred_check
    _
  $region3: #{decoder_forward.31} parent=0 // pred_check_branch
    %12 = sbr.rel (0) target = $region5
  $region4: #{decoder_forward.31} parent=0 // pred_region
    _
  $region5: #{decoder_forward.31} parent=0 // pred_fallthru
    _
  // Predicated region
  $region6: #{decoder_forward.31} parent=0 // pred_check
    _
  $region7: #{decoder_forward.31} parent=0 // pred_check_branch
    %14 = sbr.rel (0) target = $region9
  $region8: #{decoder_forward.31} parent=0 // pred_region
    _
  $region9: #{decoder_forward.31} parent=0 // pred_fallthru
    _
  // Predicated region
  $region10: #{decoder_forward.31} parent=0 // pred_check
    _
  $region11: #{decoder_forward.31} parent=0 // pred_check_branch
    %16 = sbr.rel (0) target = $region13
  $region12: #{decoder_forward.31} parent=0 // pred_region
    _
  $region13: #{decoder_forward.31} parent=0 // pred_fallthru
    _
  // Predicated region
  $region14: #{decoder_forward.31} parent=0 // pred_check
    _
  $region15: #{decoder_forward.31} parent=0 // pred_check_branch
    %18 = sbr.rel (0) target = $region17
  $region16: #{decoder_forward.31} parent=0 // pred_region
    _
  $region17: #{decoder_forward.31} parent=0 // pred_fallthru
    _
  %v19 = vld [vmem:[%s0] sm:$0xff]
  %v20 = vld [vmem:[%s0 + $0x8] sm:$0xff]
  %v21 = vld [vmem:[%s1] sm:$0xff]
  %v22 = vld [vmem:[%s1 + $0x8] sm:$0xff]
  %v23 = vadd.f32 %v19, %v21
  %v24 = vadd.f32 %v20, %v22
  %vm25 = vcmask 261120
  %v26 = vsel %vm25, %v23, 0.0
  %27 = vadd.xlane.f32.xlu0 %v26
  %v28 = vpop.xlane.xlu0 %27
  %v29 = vsel %vm25, %v24, 0.0
  %30 = vadd.xlane.f32.xlu0 %v29
  %v31 = vpop.xlane.xlu0 %30
  %v32 = vrcp.pop 32.0
  %v33 = vmul.f32 %v28, %v32
  %v34 = vmul.f32 %v31, %v32
  %v35 = vsub.f32 %v23, %v33
  %v36 = vsub.f32 %v24, %v34
  %v37 = vmul.f32 %v35, %v35
  %v38 = vmul.f32 %v36, %v36
  %v39 = vsel %vm25, %v37, 0.0
  %40 = vadd.xlane.f32.xlu0 %v39
  %v41 = vpop.xlane.xlu0 %40
  %v42 = vsel %vm25, %v38, 0.0
  %43 = vadd.xlane.f32.xlu0 %v42
  %v44 = vpop.xlane.xlu0 %43
  %v45 = vmul.f32 %v41, %v32
  %v46 = vmul.f32 %v44, %v32
  %v47 = vadd.f32 %v45, 1e-05
  %v48 = vadd.f32 %v46, 1e-05
  %v49 = vrsqrt.pop %v47
  %v50 = vrsqrt.pop %v48
  %v51 = vmul.f32 %v35, %v49
  %v52 = vmul.f32 %v36, %v50
  %v53 = vld [vmem:[%s2] sm:$0x1]
  %v55 = vlaneseq
  %v56 = vshrl.u32 %v55, 7
  %v57 = vsub.s32 0, %v56
  %v58 = vrot.slane %v53, %v57
  %v60 = vmul.f32 %v51, %v58
  %v61 = vmul.f32 %v52, %v58
  %v62 = vld [vmem:[%s3] sm:$0x1]
  %v64 = vlaneseq
  %v65 = vshrl.u32 %v64, 7
  %v66 = vsub.s32 0, %v65
  %v67 = vrot.slane %v62, %v66
  %v69 = vadd.f32 %v60, %v67
  %v70 = vadd.f32 %v61, %v67
  %71 = vst.msk [vmem:[%s4] sm:$0xff] %vm25, %v69
  %72 = vst.msk [vmem:[%s4 + $0x8] sm:$0xff] %vm25, %v70
  %v73 = vpack.c.bf16 %v70, %v69
  %v75 = vunpack.c.l.b16 %v73
  %v76 = vunpack.c.h.b16 %v73
  %v77 = vpack.c.b16 %v75, %v75
  %v78 = vpack.c.b16 %v76, %v76
  %vm81 = vcmask 257024
  %82 = vst.msk [vmem:[%s5] sm:$0xf] %vm81, %v77
  %83 = vst.msk [vmem:[%s5 + $0x4] sm:$0xf] %vm81, %v78
  // Predicated region
  $region18: #{decoder_forward.31} parent=0 // pred_check
    _
  $region19: #{decoder_forward.31} parent=0 // pred_check_branch
    %85 = sbr.rel (0) target = $region21
  $region20: #{decoder_forward.31} parent=0 // pred_region
    _
  $region21: #{decoder_forward.31} parent=0 // pred_fallthru
    _
  // Predicated region
  $region22: #{decoder_forward.31} parent=0 // pred_check
    _
  $region23: #{decoder_forward.31} parent=0 // pred_check_branch
    %87 = sbr.rel (0) target = $region25
  $region24: #{decoder_forward.31} parent=0 // pred_region
    _
  $region25: #{decoder_forward.31} parent=0 // pred_fallthru
    _
  // Predicated region
  $region26: #{decoder_forward.31} parent=0 // pred_check
    _
  $region27: #{decoder_forward.31} parent=0 // pred_check_branch
    %89 = sbr.rel (0) target = $region29
  $region28: #{decoder_forward.31} parent=0 // pred_region
    _
  $region29: #{decoder_forward.31} parent=0 // pred_fallthru
    _
  // Predicated region
  $region30: #{decoder_forward.31} parent=0 // pred_check
    _
  $region31: #{decoder_forward.31} parent=0 // pred_check_branch
    %91 = sbr.rel (0) target = $region33
  $region32: #{decoder_forward.31} parent=0 // pred_region
    _
  $region33: #{decoder_forward.31} parent=0 // pred_fallthru
    _

// kernel: decoder_forward.52
$region0: #{decoder_forward.52}
  #allocation0 [shape = 'u32[]', space=smem, size = 0x4, offset = 0x4, fixed_abs, tag = 'smem constant byte address 0x4 - core index']
  #allocation1 [shape = 'u32[144,128]{1,0:T(1,128)}', space=vmem, size = 0x12000, scoped, tag = 'internal scratch']
  %s0 = inlined_call_operand.vmem [shape: f32[16,32], index: 0, kind: input, shape index: {}]
  %s1 = inlined_call_operand.vmem [shape: f32[16,32], index: 1, kind: input, shape index: {}]
  %s2 = inlined_call_operand.vmem [shape: f32[1,32], index: 2, kind: input, shape index: {}]
  %s3 = inlined_call_operand.vmem [shape: f32[1,32], index: 3, kind: input, shape index: {}]
  %s4 = inlined_call_operand.vmem [shape: f32[16,32], index: 4, kind: output, shape index: {0}]
  %s5 = inlined_call_operand.hbm [shape: bf16[16,32], index: 5, kind: output, shape index: {1}]
  %6 = xla_tuple %s4, %s5
  %s7 = sld [smem:[#allocation0]]
  $region34: #{decoder_forward.52} parent=0
    _
  %s9 = ssub.s32 1, %s7
  %s10 = scalar_select 0, %s9, %s7
  $region1: #{decoder_forward.52} parent=0
    #allocation2 [shape = 'u8[4096]{0}', space=vmem, size = 0x1000, scoped, tag = 'output window, operand 1, single buffered']
    #allocation3 [shape = 's32[1]{0}', space=sflag, size = 0x4, scoped, tag = 'scoped memory for decoder_forward.52']
    %11 = vsyncpa [#allocation3], 0
    // Predicated region
    $region2: #{decoder_forward.52} parent=1 // pred_check
      _
    $region3: #{decoder_forward.52} parent=1 // pred_check_branch
      %13 = sbr.rel (0) target = $region5
    $region4: #{decoder_forward.52} parent=1 // pred_region
      _
    $region5: #{decoder_forward.52} parent=1 // pred_fallthru
      _
    // Predicated region
    $region6: #{decoder_forward.52} parent=1 // pred_check
      _
    $region7: #{decoder_forward.52} parent=1 // pred_check_branch
      %15 = sbr.rel (0) target = $region9
    $region8: #{decoder_forward.52} parent=1 // pred_region
      _
    $region9: #{decoder_forward.52} parent=1 // pred_fallthru
      _
    // Predicated region
    $region10: #{decoder_forward.52} parent=1 // pred_check
      _
    $region11: #{decoder_forward.52} parent=1 // pred_check_branch
      %17 = sbr.rel (0) target = $region13
    $region12: #{decoder_forward.52} parent=1 // pred_region
      _
    $region13: #{decoder_forward.52} parent=1 // pred_fallthru
      _
    // Predicated region
    $region14: #{decoder_forward.52} parent=1 // pred_check
      _
    $region15: #{decoder_forward.52} parent=1 // pred_check_branch
      %19 = sbr.rel (0) target = $region17
    $region16: #{decoder_forward.52} parent=1 // pred_region
      _
    $region17: #{decoder_forward.52} parent=1 // pred_fallthru
      _
    %v20 = vld [vmem:[%s0] sm:$0xff]
    %v21 = vld [vmem:[%s0 + $0x8] sm:$0xff]
    %v22 = vld [vmem:[%s1] sm:$0xff]
    %v23 = vld [vmem:[%s1 + $0x8] sm:$0xff]
    %v24 = vadd.f32 %v20, %v22
    %v25 = vadd.f32 %v21, %v23
    %vm26 = vcmask 261120
    %v27 = vsel %vm26, %v24, 0.0
    %28 = vadd.xlane.f32.xlu0 %v27
    %v29 = vpop.xlane.xlu0 %28
    %v30 = vsel %vm26, %v25, 0.0
    %31 = vadd.xlane.f32.xlu0 %v30
    %v32 = vpop.xlane.xlu0 %31
    %v33 = vrcp.pop 32.0
    %v34 = vmul.f32 %v29, %v33
    %v35 = vmul.f32 %v32, %v33
    %v36 = vsub.f32 %v24, %v34
    %v37 = vsub.f32 %v25, %v35
    %v38 = vmul.f32 %v36, %v36
    %v39 = vmul.f32 %v37, %v37
    %v40 = vsel %vm26, %v38, 0.0
    %41 = vadd.xlane.f32.xlu0 %v40
    %v42 = vpop.xlane.xlu0 %41
    %v43 = vsel %vm26, %v39, 0.0
    %44 = vadd.xlane.f32.xlu0 %v43
    %v45 = vpop.xlane.xlu0 %44
    %v46 = vmul.f32 %v42, %v33
    %v47 = vmul.f32 %v45, %v33
    %v48 = vadd.f32 %v46, 1e-05
    %v49 = vadd.f32 %v47, 1e-05
    %v50 = vrsqrt.pop %v48
    %v51 = vrsqrt.pop %v49
    %v52 = vmul.f32 %v36, %v50
    %v53 = vmul.f32 %v37, %v51
    %v54 = vld [vmem:[%s2] sm:$0x1]
    %v56 = vlaneseq
    %v57 = vshrl.u32 %v56, 7
    %v58 = vsub.s32 0, %v57
    %v59 = vrot.slane %v54, %v58
    %v61 = vmul.f32 %v52, %v59
    %v62 = vmul.f32 %v53, %v59
    %v63 = vld [vmem:[%s3] sm:$0x1]
    %v65 = vlaneseq
    %v66 = vshrl.u32 %v65, 7
    %v67 = vsub.s32 0, %v66
    %v68 = vrot.slane %v63, %v67
    %v70 = vadd.f32 %v61, %v68
    %v71 = vadd.f32 %v62, %v68
    %72 = vst.msk [vmem:[%s4] sm:$0xff] %vm26, %v70
    %73 = vst.msk [vmem:[%s4 + $0x8] sm:$0xff] %vm26, %v71
    %v74 = vpack.c.bf16 %v71, %v70
    %v76 = vunpack.c.l.b16 %v74
    %v77 = vunpack.c.h.b16 %v74
    %v78 = vpack.c.b16 %v76, %v76
    %v79 = vpack.c.b16 %v77, %v77
    %vm82 = vcmask 257024
    %83 = vst.msk [vmem:[#allocation2] sm:$0xf] %vm82, %v78
    %84 = vst.msk [vmem:[#allocation2 + $0x4] sm:$0xf] %vm82, %v79
    // Predicated region
    $region18: #{decoder_forward.52} parent=1 // pred_check
      _
    $region19: #{decoder_forward.52} parent=1 // pred_check_branch
      %86 = sbr.rel (0) target = $region21
    $region20: #{decoder_forward.52} parent=1 // pred_region
      _
    $region21: #{decoder_forward.52} parent=1 // pred_fallthru
      _
    // Predicated region
    $region22: #{decoder_forward.52} parent=1 // pred_check
      _
    $region23: #{decoder_forward.52} parent=1 // pred_check_branch
      %88 = sbr.rel (0) target = $region25
    $region24: #{decoder_forward.52} parent=1 // pred_region
      %s90 = ssub.s32 128, 128
      %91 = vsyncadd [#allocation3], %s90
      %s92 = sshll.u32 [#allocation2], 4
      %s93 = int_to_ptr.vmem [resolvable:$true] %s92
      %98 = dma.vmem_to_hbm [thread:$0]  %s93, 128, %s5, [#allocation3], 64, 64, 4
    $region25: #{decoder_forward.52} parent=1 // pred_fallthru
      _
    // Predicated region
    $region26: #{decoder_forward.52} parent=1 // pred_check
      _
    $region27: #{decoder_forward.52} parent=1 // pred_check_branch
      %100 = sbr.rel (0) target = $region29
    $region28: #{decoder_forward.52} parent=1 // pred_region
      _
    $region29: #{decoder_forward.52} parent=1 // pred_fallthru
      _
    // Predicated region
    $region30: #{decoder_forward.52} parent=1 // pred_check
      _
    $region31: #{decoder_forward.52} parent=1 // pred_check_branch
      %102 = sbr.rel (0) target = $region33
    $region32: #{decoder_forward.52} parent=1 // pred_region
      %103 = dma.done [#allocation3], 128
    $region33: #{decoder_forward.52} parent=1 // pred_fallthru
      _
    %104 = vsyncpa [#allocation3], 1

// kernel: decoder_forward.53
$region0: #{decoder_forward.53}
  #allocation0 [shape = 'u32[]', space=smem, size = 0x4, offset = 0x4, fixed_abs, tag = 'smem constant byte address 0x4 - core index']
  #allocation1 [shape = 'u32[144,128]{1,0:T(1,128)}', space=vmem, size = 0x12000, scoped, tag = 'internal scratch']
  %s0 = inlined_call_operand.vmem [shape: f32[16,32], index: 0, kind: input, shape index: {}]
  %s1 = inlined_call_operand.vmem [shape: f32[1,32], index: 1, kind: input, shape index: {}]
  %s2 = inlined_call_operand.vmem [shape: f32[1,32], index: 2, kind: input, shape index: {}]
  %s3 = inlined_call_operand.hbm [shape: f32[16,32], index: 3, kind: output, shape index: {}]
  %s4 = sld [smem:[#allocation0]]
  $region22: #{decoder_forward.53} parent=0
    _
  %s6 = ssub.s32 1, %s4
  %s7 = scalar_select 0, %s6, %s4
  $region1: #{decoder_forward.53} parent=0
    #allocation2 [shape = 'u8[8192]{0}', space=vmem, size = 0x2000, scoped, tag = 'output window, operand 0, single buffered']
    #allocation3 [shape = 's32[1]{0}', space=sflag, size = 0x4, scoped, tag = 'scoped memory for decoder_forward.53']
    %8 = vsyncpa [#allocation3], 0
    // Predicated region
    $region2: #{decoder_forward.53} parent=1 // pred_check
      _
    $region3: #{decoder_forward.53} parent=1 // pred_check_branch
      %10 = sbr.rel (0) target = $region5
    $region4: #{decoder_forward.53} parent=1 // pred_region
      _
    $region5: #{decoder_forward.53} parent=1 // pred_fallthru
      _
    // Predicated region
    $region6: #{decoder_forward.53} parent=1 // pred_check
      _
    $region7: #{decoder_forward.53} parent=1 // pred_check_branch
      %12 = sbr.rel (0) target = $region9
    $region8: #{decoder_forward.53} parent=1 // pred_region
      _
    $region9: #{decoder_forward.53} parent=1 // pred_fallthru
      _
    // Predicated region
    $region10: #{decoder_forward.53} parent=1 // pred_check
      _
    $region11: #{decoder_forward.53} parent=1 // pred_check_branch
      %14 = sbr.rel (0) target = $region13
    $region12: #{decoder_forward.53} parent=1 // pred_region
      _
    $region13: #{decoder_forward.53} parent=1 // pred_fallthru
      _
    %v15 = vld [vmem:[%s0] sm:$0xff]
    %v16 = vld [vmem:[%s0 + $0x8] sm:$0xff]
    %vm17 = vcmask 261120
    %v18 = vsel %vm17, %v15, 0.0
    %19 = vadd.xlane.f32.xlu0 %v18
    %v20 = vpop.xlane.xlu0 %19
    %v21 = vsel %vm17, %v16, 0.0
    %22 = vadd.xlane.f32.xlu0 %v21
    %v23 = vpop.xlane.xlu0 %22
    %v24 = vrcp.pop 32.0
    %v25 = vmul.f32 %v20, %v24
    %v26 = vmul.f32 %v23, %v24
    %v27 = vsub.f32 %v15, %v25
    %v28 = vsub.f32 %v16, %v26
    %v29 = vmul.f32 %v27, %v27
    %v30 = vmul.f32 %v28, %v28
    %v31 = vsel %vm17, %v29, 0.0
    %32 = vadd.xlane.f32.xlu0 %v31
    %v33 = vpop.xlane.xlu0 %32
    %v34 = vsel %vm17, %v30, 0.0
    %35 = vadd.xlane.f32.xlu0 %v34
    %v36 = vpop.xlane.xlu0 %35
    %v37 = vmul.f32 %v33, %v24
    %v38 = vmul.f32 %v36, %v24
    %v39 = vadd.f32 %v37, 1e-05
    %v40 = vadd.f32 %v38, 1e-05
    %v41 = vrsqrt.pop %v39
    %v42 = vrsqrt.pop %v40
    %v43 = vmul.f32 %v27, %v41
    %v44 = vmul.f32 %v28, %v42
    %v45 = vld [vmem:[%s1] sm:$0x1]
    %v47 = vlaneseq
    %v48 = vshrl.u32 %v47, 7
    %v49 = vsub.s32 0, %v48
    %v50 = vrot.slane %v45, %v49
    %v52 = vmul.f32 %v43, %v50
    %v53 = vmul.f32 %v44, %v50
    %v54 = vld [vmem:[%s2] sm:$0x1]
    %v56 = vlaneseq
    %v57 = vshrl.u32 %v56, 7
    %v58 = vsub.s32 0, %v57
    %v59 = vrot.slane %v54, %v58
    %v61 = vadd.f32 %v52, %v59
    %v62 = vadd.f32 %v53, %v59
    %63 = vst.msk [vmem:[#allocation2] sm:$0xff] %vm17, %v61
    %64 = vst.msk [vmem:[#allocation2 + $0x8] sm:$0xff] %vm17, %v62
    // Predicated region
    $region14: #{decoder_forward.53} parent=1 // pred_check
      _
    $region15: #{decoder_forward.53} parent=1 // pred_check_branch
      %66 = sbr.rel (0) target = $region17
    $region16: #{decoder_forward.53} parent=1 // pred_region
      %s68 = ssub.s32 256, 256
      %69 = vsyncadd [#allocation3], %s68
      %s70 = sshll.u32 [#allocation2], 4
      %s71 = int_to_ptr.vmem [resolvable:$true] %s70
      %76 = dma.vmem_to_hbm [thread:$0]  %s71, 256, %s3, [#allocation3], 128, 128, 8
    $region17: #{decoder_forward.53} parent=1 // pred_fallthru
      _
    // Predicated region
    $region18: #{decoder_forward.53} parent=1 // pred_check
      _
    $region19: #{decoder_forward.53} parent=1 // pred_check_branch
      %78 = sbr.rel (0) target = $region21
    $region20: #{decoder_forward.53} parent=1 // pred_region
      %79 = dma.done [#allocation3], 256
    $region21: #{decoder_forward.53} parent=1 // pred_fallthru
      _
    %80 = vsyncpa [#allocation3], 1

</llo_original>
